<compile_context>
chip_gen: v7x
topology: tpu7x:2x2x1
jax: 0.10.0
libtpu: 0.0.40
codegen_flags: <defaults>
</compile_context>

<pallas_src>
import jax
import jax.numpy as jnp
from jax import lax
from jax.experimental import pallas as pl
from jax.experimental.pallas import tpu as pltpu


def _make_pa_kernel(Bt, H, W):
    He, We = H + 2, W + 2  # conv1 is evaluated on the padded-by-1 output domain

    def pa_kernel(x_ref, w1_ref, b1_ref, w2_ref, b2_ref, o_ref, xp_ref):
        # ---- build the 2-deep zero-padded canvas in VMEM (no wrapper pad). ----
        # Re-zeroed every grid step: under "parallel" semantics each TensorCore
        # owns its own scratch, so a program_id()==0 guard could leave one
        # core's border uninitialized.  Cost is one tiny vector-zero per step.
        xp_ref[...] = jnp.zeros_like(xp_ref)
        xp_ref[:, 2:2 + H, 2:2 + W] = x_ref[...]
        xp = xp_ref[...]                                    # (Bt, H+4, W+4)

        # Border mask: conv1 is computed on the (He, We) domain and its
        # one-pixel border is zeroed, so `h` below equals
        # zero-pad(relu(conv1(map))) with no extra buffer.
        iy = lax.broadcasted_iota(jnp.int32, (Bt, He, We), 1)
        ix = lax.broadcasted_iota(jnp.int32, (Bt, He, We), 2)
        interior = (iy >= 1) & (iy <= H) & (ix >= 1) & (ix <= W)

        # ---- hoist the 9 shifted input taps (materialized once, not 8x). ----
        # index = 3*dy + dx, matching the (8, 9) weight layout.
        taps = [xp[:, dy:dy + He, dx:dx + We]
                for dy in range(3) for dx in range(3)]      # each (Bt, He, We)

        # ---- fused conv1(1->8,3x3)+ReLU  and  conv2(8->1,3x3) accumulation ----
        # Only one feature map `h` and one accumulator `acc2` are live at a time.
        acc2 = None
        for ci in range(8):
            a = taps[0] * w1_ref[ci, 0]
            for k in range(1, 9):
                a = a + taps[k] * w1_ref[ci, k]
            h = jnp.where(interior, jnp.maximum(a + b1_ref[ci], 0.0), 0.0)
            for dy in range(3):
                for dx in range(3):
                    term = w2_ref[ci, 3 * dy + dx] * h[:, dy:dy + H, dx:dx + W]
                    acc2 = term if acc2 is None else acc2 + term
        acc2 = acc2 + b2_ref[0]

        # Sigmoid gate (exp runs on the EUP) and gating of the original map.
        # Production option: pl.reciprocal(1.0 + jnp.exp(-acc2), approx=True).
        gate = 1.0 / (1.0 + jnp.exp(-acc2))
        o_ref[...] = gate * x_ref[...]

    return pa_kernel


def _pick_bt(B, H, W, budget_bytes=2 * 1024 * 1024):
    """Largest divisor of B whose per-step working set fits a small VMEM budget."""
    per_image = (H + 4) * (W + 4) * 4 * 14   # canvas + ~13 live f32 maps (rough)
    cap = max(1, budget_bytes // max(per_image, 1))
    bt = 1
    for d in range(1, B + 1):
        if B % d == 0 and d <= cap:
            bt = d
    return bt


def palayer_forward(map_nchw, params):
    B, C, H, W = map_nchw.shape
    assert C == 1, "PALayer expects a single-channel attention map"
    x = map_nchw.reshape(B, H, W).astype(jnp.float32)        # no wrapper-side pad
    w1 = params["w1"].reshape(8, 9).astype(jnp.float32)      # (out=8, 3*3 taps)
    b1 = params["b1"].astype(jnp.float32)                    # (8,)
    w2 = params["w2"].reshape(8, 9).astype(jnp.float32)      # (in=8, 3*3 taps)
    b2 = params["b2"].reshape(1).astype(jnp.float32)         # (1,)

    Bt = _pick_bt(B, H, W)
    grid = (B // Bt,)

    out = pl.pallas_call(
        _make_pa_kernel(Bt, H, W),
        out_shape=jax.ShapeDtypeStruct((B, H, W), jnp.float32),
        grid=grid,
        in_specs=[
            pl.BlockSpec((Bt, H, W), lambda b: (b, 0, 0)),
            pl.BlockSpec(memory_space=pltpu.MemorySpace.SMEM),
            pl.BlockSpec(memory_space=pltpu.MemorySpace.SMEM),
            pl.BlockSpec(memory_space=pltpu.MemorySpace.SMEM),
            pl.BlockSpec(memory_space=pltpu.MemorySpace.SMEM),
        ],
        out_specs=pl.BlockSpec((Bt, H, W), lambda b: (b, 0, 0)),
        scratch_shapes=[pltpu.VMEM((Bt, H + 4, W + 4), jnp.float32)],
        compiler_params=pltpu.CompilerParams(
            dimension_semantics=("parallel",),
            vmem_limit_bytes=32 * 1024 * 1024,
        ),
    )(x, w1, b1, w2, b2)
    return out.reshape(B, 1, H, W)


# Pure-JAX reference (matches PyTorch Conv2d cross-correlation semantics).
def palayer_ref(m, params):
    dn = ("NCHW", "OIHW", "NCHW")
    y = lax.conv_general_dilated(m, params["w1"], (1, 1), ((1, 1), (1, 1)),
                                 dimension_numbers=dn)
    y = jnp.maximum(y + params["b1"].reshape(1, 8, 1, 1), 0.0)
    y = lax.conv_general_dilated(y, params["w2"], (1, 1), ((1, 1), (1, 1)),
                                 dimension_numbers=dn)
    y = jax.nn.sigmoid(y + params["b2"].reshape(1, 1, 1, 1))
    return y * m


if __name__ == "__main__":
    B, C, H, W = 2, 1, 16, 16
    key = jax.random.PRNGKey(0)
    k_m, k_w1, k_b1, k_w2, k_b2 = jax.random.split(key, 5)

    m = jax.random.normal(k_m, (B, C, H, W), dtype=jnp.float32)
    params = {
        "w1": 0.3 * jax.random.normal(k_w1, (8, 1, 3, 3), dtype=jnp.float32),
        "b1": 0.1 * jax.random.normal(k_b1, (8,), dtype=jnp.float32),
        "w2": 0.3 * jax.random.normal(k_w2, (1, 8, 3, 3), dtype=jnp.float32),
        "b2": 0.1 * jax.random.normal(k_b2, (1,), dtype=jnp.float32),
    }

    out = palayer_forward(m, params)
    out = jax.block_until_ready(out)

    ref = palayer_ref(m, params)
    assert out.shape == (B, C, H, W)
    assert jnp.allclose(out, ref, atol=1e-4, rtol=1e-4), "mismatch vs reference"
    print("KERNEL_OK")
</pallas_src>

<mosaic_0001>
module attributes {stable_mosaic.version = 11 : i64} {
  func.func @pa_kernel(%arg0: i32, %arg1: memref<2x16x16xf32, #tpu.memory_space<vmem>>, %arg2: memref<8x9xf32, #tpu.memory_space<smem>>, %arg3: memref<8xf32, #tpu.memory_space<smem>>, %arg4: memref<8x9xf32, #tpu.memory_space<smem>>, %arg5: memref<1xf32, #tpu.memory_space<smem>>, %arg6: memref<2x16x16xf32, #tpu.memory_space<vmem>>, %arg7: memref<2x20x20xf32, #tpu.memory_space<vmem>>) attributes {dimension_semantics = [#tpu.dimension_semantics<parallel>], iteration_bounds = array<i64: 1>, scalar_prefetch = 0 : i64, scratch_operands = 1 : i64, tpu.core_type = #tpu.core_type<tc>, window_params = [{transform_indices = @transform_0, window_bounds = array<i64: 2, 16, 16>}, {transform_indices = @transform_1, window_bounds = array<i64: 8, 9>}, {transform_indices = @transform_2, window_bounds = array<i64: 8>}, {transform_indices = @transform_3, window_bounds = array<i64: 8, 9>}, {transform_indices = @transform_4, window_bounds = array<i64: 1>}, {transform_indices = @transform_5, window_bounds = array<i64: 2, 16, 16>}]} {
    %cst = arith.constant 0.000000e+00 : f32
    %0 = vector.broadcast %cst : f32 to vector<2x20x20xf32>
    %c0 = arith.constant 0 : index
    %c0_0 = arith.constant 0 : index
    %c0_1 = arith.constant 0 : index
    %1 = vector.load %arg7[%c0, %c0_0, %c0_1] : memref<2x20x20xf32, #tpu.memory_space<vmem>>, vector<2x20x20xf32>
    tpu.vector_store %arg7[%c0, %c0_0, %c0_1], %0 {strides = array<i32>} : memref<2x20x20xf32, #tpu.memory_space<vmem>>, vector<2x20x20xf32>,
    %c0_2 = arith.constant 0 : index
    %c0_3 = arith.constant 0 : index
    %c0_4 = arith.constant 0 : index
    %2 = vector.load %arg1[%c0_2, %c0_3, %c0_4] : memref<2x16x16xf32, #tpu.memory_space<vmem>>, vector<2x16x16xf32>
    %c0_5 = arith.constant 0 : index
    %c2 = arith.constant 2 : index
    %c2_6 = arith.constant 2 : index
    %3 = vector.load %arg7[%c0_5, %c2, %c2_6] : memref<2x20x20xf32, #tpu.memory_space<vmem>>, vector<2x16x16xf32>
    tpu.vector_store %arg7[%c0_5, %c2, %c2_6], %2 {strides = array<i32>} : memref<2x20x20xf32, #tpu.memory_space<vmem>>, vector<2x16x16xf32>,
    %c0_7 = arith.constant 0 : index
    %c0_8 = arith.constant 0 : index
    %c0_9 = arith.constant 0 : index
    %4 = vector.load %arg7[%c0_7, %c0_8, %c0_9] : memref<2x20x20xf32, #tpu.memory_space<vmem>>, vector<2x20x20xf32>
    %5 = tpu.iota {dimensions = array<i32: 1>} : vector<2x18x18xi32>
    %6 = tpu.iota {dimensions = array<i32: 2>} : vector<2x18x18xi32>
    %c1_i32 = arith.constant 1 : i32
    %7 = vector.broadcast %c1_i32 : i32 to vector<2x18x18xi32>
    %8 = arith.cmpi sge, %5, %7 : vector<2x18x18xi32>
    %c16_i32 = arith.constant 16 : i32
    %9 = vector.broadcast %c16_i32 : i32 to vector<2x18x18xi32>
    %10 = arith.cmpi sle, %5, %9 : vector<2x18x18xi32>
    %11 = arith.andi %8, %10 : vector<2x18x18xi1>
    %c1_i32_10 = arith.constant 1 : i32
    %12 = vector.broadcast %c1_i32_10 : i32 to vector<2x18x18xi32>
    %13 = arith.cmpi sge, %6, %12 : vector<2x18x18xi32>
    %14 = arith.andi %11, %13 : vector<2x18x18xi1>
    %c16_i32_11 = arith.constant 16 : i32
    %15 = vector.broadcast %c16_i32_11 : i32 to vector<2x18x18xi32>
    %16 = arith.cmpi sle, %6, %15 : vector<2x18x18xi32>
    %17 = arith.andi %14, %16 : vector<2x18x18xi1>
    %18 = vector.extract_strided_slice %4 {offsets = [0, 0, 0], sizes = [2, 18, 18], strides = [1, 1, 1]} : vector<2x20x20xf32> to vector<2x18x18xf32>
    %19 = vector.extract_strided_slice %4 {offsets = [0, 0, 1], sizes = [2, 18, 18], strides = [1, 1, 1]} : vector<2x20x20xf32> to vector<2x18x18xf32>
    %20 = vector.extract_strided_slice %4 {offsets = [0, 0, 2], sizes = [2, 18, 18], strides = [1, 1, 1]} : vector<2x20x20xf32> to vector<2x18x18xf32>
    %21 = vector.extract_strided_slice %4 {offsets = [0, 1, 0], sizes = [2, 18, 18], strides = [1, 1, 1]} : vector<2x20x20xf32> to vector<2x18x18xf32>
    %22 = vector.extract_strided_slice %4 {offsets = [0, 1, 1], sizes = [2, 18, 18], strides = [1, 1, 1]} : vector<2x20x20xf32> to vector<2x18x18xf32>
    %23 = vector.extract_strided_slice %4 {offsets = [0, 1, 2], sizes = [2, 18, 18], strides = [1, 1, 1]} : vector<2x20x20xf32> to vector<2x18x18xf32>
    %24 = vector.extract_strided_slice %4 {offsets = [0, 2, 0], sizes = [2, 18, 18], strides = [1, 1, 1]} : vector<2x20x20xf32> to vector<2x18x18xf32>
    %25 = vector.extract_strided_slice %4 {offsets = [0, 2, 1], sizes = [2, 18, 18], strides = [1, 1, 1]} : vector<2x20x20xf32> to vector<2x18x18xf32>
    %26 = vector.extract_strided_slice %4 {offsets = [0, 2, 2], sizes = [2, 18, 18], strides = [1, 1, 1]} : vector<2x20x20xf32> to vector<2x18x18xf32>
    %c0_12 = arith.constant 0 : index
    %c0_13 = arith.constant 0 : index
    %27 = memref.load %arg2[%c0_12, %c0_13] : memref<8x9xf32, #tpu.memory_space<smem>>
    %28 = vector.broadcast %27 : f32 to vector<2x18x18xf32>
    %29 = arith.mulf %18, %28 : vector<2x18x18xf32>
    %c0_14 = arith.constant 0 : index
    %c1 = arith.constant 1 : index
    %30 = memref.load %arg2[%c0_14, %c1] : memref<8x9xf32, #tpu.memory_space<smem>>
    %31 = vector.broadcast %30 : f32 to vector<2x18x18xf32>
    %32 = arith.mulf %19, %31 : vector<2x18x18xf32>
    %33 = arith.addf %29, %32 : vector<2x18x18xf32>
    %c0_15 = arith.constant 0 : index
    %c2_16 = arith.constant 2 : index
    %34 = memref.load %arg2[%c0_15, %c2_16] : memref<8x9xf32, #tpu.memory_space<smem>>
    %35 = vector.broadcast %34 : f32 to vector<2x18x18xf32>
    %36 = arith.mulf %20, %35 : vector<2x18x18xf32>
    %37 = arith.addf %33, %36 : vector<2x18x18xf32>
    %c0_17 = arith.constant 0 : index
    %c3 = arith.constant 3 : index
    %38 = memref.load %arg2[%c0_17, %c3] : memref<8x9xf32, #tpu.memory_space<smem>>
    %39 = vector.broadcast %38 : f32 to vector<2x18x18xf32>
    %40 = arith.mulf %21, %39 : vector<2x18x18xf32>
    %41 = arith.addf %37, %40 : vector<2x18x18xf32>
    %c0_18 = arith.constant 0 : index
    %c4 = arith.constant 4 : index
    %42 = memref.load %arg2[%c0_18, %c4] : memref<8x9xf32, #tpu.memory_space<smem>>
    %43 = vector.broadcast %42 : f32 to vector<2x18x18xf32>
    %44 = arith.mulf %22, %43 : vector<2x18x18xf32>
    %45 = arith.addf %41, %44 : vector<2x18x18xf32>
    %c0_19 = arith.constant 0 : index
    %c5 = arith.constant 5 : index
    %46 = memref.load %arg2[%c0_19, %c5] : memref<8x9xf32, #tpu.memory_space<smem>>
    %47 = vector.broadcast %46 : f32 to vector<2x18x18xf32>
    %48 = arith.mulf %23, %47 : vector<2x18x18xf32>
    %49 = arith.addf %45, %48 : vector<2x18x18xf32>
    %c0_20 = arith.constant 0 : index
    %c6 = arith.constant 6 : index
    %50 = memref.load %arg2[%c0_20, %c6] : memref<8x9xf32, #tpu.memory_space<smem>>
    %51 = vector.broadcast %50 : f32 to vector<2x18x18xf32>
    %52 = arith.mulf %24, %51 : vector<2x18x18xf32>
    %53 = arith.addf %49, %52 : vector<2x18x18xf32>
    %c0_21 = arith.constant 0 : index
    %c7 = arith.constant 7 : index
    %54 = memref.load %arg2[%c0_21, %c7] : memref<8x9xf32, #tpu.memory_space<smem>>
    %55 = vector.broadcast %54 : f32 to vector<2x18x18xf32>
    %56 = arith.mulf %25, %55 : vector<2x18x18xf32>
    %57 = arith.addf %53, %56 : vector<2x18x18xf32>
    %c0_22 = arith.constant 0 : index
    %c8 = arith.constant 8 : index
    %58 = memref.load %arg2[%c0_22, %c8] : memref<8x9xf32, #tpu.memory_space<smem>>
    %59 = vector.broadcast %58 : f32 to vector<2x18x18xf32>
    %60 = arith.mulf %26, %59 : vector<2x18x18xf32>
    %61 = arith.addf %57, %60 : vector<2x18x18xf32>
    %c0_23 = arith.constant 0 : index
    %62 = memref.load %arg3[%c0_23] : memref<8xf32, #tpu.memory_space<smem>>
    %63 = vector.broadcast %62 : f32 to vector<2x18x18xf32>
    %64 = arith.addf %61, %63 : vector<2x18x18xf32>
    %cst_24 = arith.constant 0.000000e+00 : f32
    %65 = vector.broadcast %cst_24 : f32 to vector<2x18x18xf32>
    %66 = arith.maximumf %64, %65 : vector<2x18x18xf32>
    %cst_25 = arith.constant 0.000000e+00 : f32
    %67 = vector.broadcast %cst_25 : f32 to vector<2x18x18xf32>
    %68 = arith.select %17, %66, %67 : vector<2x18x18xi1>, vector<2x18x18xf32>
    %c0_26 = arith.constant 0 : index
    %c0_27 = arith.constant 0 : index
    %69 = memref.load %arg4[%c0_26, %c0_27] : memref<8x9xf32, #tpu.memory_space<smem>>
    %70 = vector.extract_strided_slice %68 {offsets = [0, 0, 0], sizes = [2, 16, 16], strides = [1, 1, 1]} : vector<2x18x18xf32> to vector<2x16x16xf32>
    %71 = vector.broadcast %69 : f32 to vector<2x16x16xf32>
    %72 = arith.mulf %71, %70 : vector<2x16x16xf32>
    %c0_28 = arith.constant 0 : index
    %c1_29 = arith.constant 1 : index
    %73 = memref.load %arg4[%c0_28, %c1_29] : memref<8x9xf32, #tpu.memory_space<smem>>
    %74 = vector.extract_strided_slice %68 {offsets = [0, 0, 1], sizes = [2, 16, 16], strides = [1, 1, 1]} : vector<2x18x18xf32> to vector<2x16x16xf32>
    %75 = vector.broadcast %73 : f32 to vector<2x16x16xf32>
    %76 = arith.mulf %75, %74 : vector<2x16x16xf32>
    %77 = arith.addf %72, %76 : vector<2x16x16xf32>
    %c0_30 = arith.constant 0 : index
    %c2_31 = arith.constant 2 : index
    %78 = memref.load %arg4[%c0_30, %c2_31] : memref<8x9xf32, #tpu.memory_space<smem>>
    %79 = vector.extract_strided_slice %68 {offsets = [0, 0, 2], sizes = [2, 16, 16], strides = [1, 1, 1]} : vector<2x18x18xf32> to vector<2x16x16xf32>
    %80 = vector.broadcast %78 : f32 to vector<2x16x16xf32>
    %81 = arith.mulf %80, %79 : vector<2x16x16xf32>
    %82 = arith.addf %77, %81 : vector<2x16x16xf32>
    %c0_32 = arith.constant 0 : index
    %c3_33 = arith.constant 3 : index
    %83 = memref.load %arg4[%c0_32, %c3_33] : memref<8x9xf32, #tpu.memory_space<smem>>
    %84 = vector.extract_strided_slice %68 {offsets = [0, 1, 0], sizes = [2, 16, 16], strides = [1, 1, 1]} : vector<2x18x18xf32> to vector<2x16x16xf32>
    %85 = vector.broadcast %83 : f32 to vector<2x16x16xf32>
    %86 = arith.mulf %85, %84 : vector<2x16x16xf32>
    %87 = arith.addf %82, %86 : vector<2x16x16xf32>
    %c0_34 = arith.constant 0 : index
    %c4_35 = arith.constant 4 : index
    %88 = memref.load %arg4[%c0_34, %c4_35] : memref<8x9xf32, #tpu.memory_space<smem>>
    %89 = vector.extract_strided_slice %68 {offsets = [0, 1, 1], sizes = [2, 16, 16], strides = [1, 1, 1]} : vector<2x18x18xf32> to vector<2x16x16xf32>
    %90 = vector.broadcast %88 : f32 to vector<2x16x16xf32>
    %91 = arith.mulf %90, %89 : vector<2x16x16xf32>
    %92 = arith.addf %87, %91 : vector<2x16x16xf32>
    %c0_36 = arith.constant 0 : index
    %c5_37 = arith.constant 5 : index
    %93 = memref.load %arg4[%c0_36, %c5_37] : memref<8x9xf32, #tpu.memory_space<smem>>
    %94 = vector.extract_strided_slice %68 {offsets = [0, 1, 2], sizes = [2, 16, 16], strides = [1, 1, 1]} : vector<2x18x18xf32> to vector<2x16x16xf32>
    %95 = vector.broadcast %93 : f32 to vector<2x16x16xf32>
    %96 = arith.mulf %95, %94 : vector<2x16x16xf32>
    %97 = arith.addf %92, %96 : vector<2x16x16xf32>
    %c0_38 = arith.constant 0 : index
    %c6_39 = arith.constant 6 : index
    %98 = memref.load %arg4[%c0_38, %c6_39] : memref<8x9xf32, #tpu.memory_space<smem>>
    %99 = vector.extract_strided_slice %68 {offsets = [0, 2, 0], sizes = [2, 16, 16], strides = [1, 1, 1]} : vector<2x18x18xf32> to vector<2x16x16xf32>
    %100 = vector.broadcast %98 : f32 to vector<2x16x16xf32>
    %101 = arith.mulf %100, %99 : vector<2x16x16xf32>
    %102 = arith.addf %97, %101 : vector<2x16x16xf32>
    %c0_40 = arith.constant 0 : index
    %c7_41 = arith.constant 7 : index
    %103 = memref.load %arg4[%c0_40, %c7_41] : memref<8x9xf32, #tpu.memory_space<smem>>
    %104 = vector.extract_strided_slice %68 {offsets = [0, 2, 1], sizes = [2, 16, 16], strides = [1, 1, 1]} : vector<2x18x18xf32> to vector<2x16x16xf32>
    %105 = vector.broadcast %103 : f32 to vector<2x16x16xf32>
    %106 = arith.mulf %105, %104 : vector<2x16x16xf32>
    %107 = arith.addf %102, %106 : vector<2x16x16xf32>
    %c0_42 = arith.constant 0 : index
    %c8_43 = arith.constant 8 : index
    %108 = memref.load %arg4[%c0_42, %c8_43] : memref<8x9xf32, #tpu.memory_space<smem>>
    %109 = vector.extract_strided_slice %68 {offsets = [0, 2, 2], sizes = [2, 16, 16], strides = [1, 1, 1]} : vector<2x18x18xf32> to vector<2x16x16xf32>
    %110 = vector.broadcast %108 : f32 to vector<2x16x16xf32>
    %111 = arith.mulf %110, %109 : vector<2x16x16xf32>
    %112 = arith.addf %107, %111 : vector<2x16x16xf32>
    %c1_44 = arith.constant 1 : index
    %c0_45 = arith.constant 0 : index
    %113 = memref.load %arg2[%c1_44, %c0_45] : memref<8x9xf32, #tpu.memory_space<smem>>
    %114 = vector.broadcast %113 : f32 to vector<2x18x18xf32>
    %115 = arith.mulf %18, %114 : vector<2x18x18xf32>
    %c1_46 = arith.constant 1 : index
    %c1_47 = arith.constant 1 : index
    %116 = memref.load %arg2[%c1_46, %c1_47] : memref<8x9xf32, #tpu.memory_space<smem>>
    %117 = vector.broadcast %116 : f32 to vector<2x18x18xf32>
    %118 = arith.mulf %19, %117 : vector<2x18x18xf32>
    %119 = arith.addf %115, %118 : vector<2x18x18xf32>
    %c1_48 = arith.constant 1 : index
    %c2_49 = arith.constant 2 : index
    %120 = memref.load %arg2[%c1_48, %c2_49] : memref<8x9xf32, #tpu.memory_space<smem>>
    %121 = vector.broadcast %120 : f32 to vector<2x18x18xf32>
    %122 = arith.mulf %20, %121 : vector<2x18x18xf32>
    %123 = arith.addf %119, %122 : vector<2x18x18xf32>
    %c1_50 = arith.constant 1 : index
    %c3_51 = arith.constant 3 : index
    %124 = memref.load %arg2[%c1_50, %c3_51] : memref<8x9xf32, #tpu.memory_space<smem>>
    %125 = vector.broadcast %124 : f32 to vector<2x18x18xf32>
    %126 = arith.mulf %21, %125 : vector<2x18x18xf32>
    %127 = arith.addf %123, %126 : vector<2x18x18xf32>
    %c1_52 = arith.constant 1 : index
    %c4_53 = arith.constant 4 : index
    %128 = memref.load %arg2[%c1_52, %c4_53] : memref<8x9xf32, #tpu.memory_space<smem>>
    %129 = vector.broadcast %128 : f32 to vector<2x18x18xf32>
    %130 = arith.mulf %22, %129 : vector<2x18x18xf32>
    %131 = arith.addf %127, %130 : vector<2x18x18xf32>
    %c1_54 = arith.constant 1 : index
    %c5_55 = arith.constant 5 : index
    %132 = memref.load %arg2[%c1_54, %c5_55] : memref<8x9xf32, #tpu.memory_space<smem>>
    %133 = vector.broadcast %132 : f32 to vector<2x18x18xf32>
    %134 = arith.mulf %23, %133 : vector<2x18x18xf32>
    %135 = arith.addf %131, %134 : vector<2x18x18xf32>
    %c1_56 = arith.constant 1 : index
    %c6_57 = arith.constant 6 : index
    %136 = memref.load %arg2[%c1_56, %c6_57] : memref<8x9xf32, #tpu.memory_space<smem>>
    %137 = vector.broadcast %136 : f32 to vector<2x18x18xf32>
    %138 = arith.mulf %24, %137 : vector<2x18x18xf32>
    %139 = arith.addf %135, %138 : vector<2x18x18xf32>
    %c1_58 = arith.constant 1 : index
    %c7_59 = arith.constant 7 : index
    %140 = memref.load %arg2[%c1_58, %c7_59] : memref<8x9xf32, #tpu.memory_space<smem>>
    %141 = vector.broadcast %140 : f32 to vector<2x18x18xf32>
    %142 = arith.mulf %25, %141 : vector<2x18x18xf32>
    %143 = arith.addf %139, %142 : vector<2x18x18xf32>
    %c1_60 = arith.constant 1 : index
    %c8_61 = arith.constant 8 : index
    %144 = memref.load %arg2[%c1_60, %c8_61] : memref<8x9xf32, #tpu.memory_space<smem>>
    %145 = vector.broadcast %144 : f32 to vector<2x18x18xf32>
    %146 = arith.mulf %26, %145 : vector<2x18x18xf32>
    %147 = arith.addf %143, %146 : vector<2x18x18xf32>
    %c1_62 = arith.constant 1 : index
    %148 = memref.load %arg3[%c1_62] : memref<8xf32, #tpu.memory_space<smem>>
    %149 = vector.broadcast %148 : f32 to vector<2x18x18xf32>
    %150 = arith.addf %147, %149 : vector<2x18x18xf32>
    %cst_63 = arith.constant 0.000000e+00 : f32
    %151 = vector.broadcast %cst_63 : f32 to vector<2x18x18xf32>
    %152 = arith.maximumf %150, %151 : vector<2x18x18xf32>
    %cst_64 = arith.constant 0.000000e+00 : f32
    %153 = vector.broadcast %cst_64 : f32 to vector<2x18x18xf32>
    %154 = arith.select %17, %152, %153 : vector<2x18x18xi1>, vector<2x18x18xf32>
    %c1_65 = arith.constant 1 : index
    %c0_66 = arith.constant 0 : index
    %155 = memref.load %arg4[%c1_65, %c0_66] : memref<8x9xf32, #tpu.memory_space<smem>>
    %156 = vector.extract_strided_slice %154 {offsets = [0, 0, 0], sizes = [2, 16, 16], strides = [1, 1, 1]} : vector<2x18x18xf32> to vector<2x16x16xf32>
    %157 = vector.broadcast %155 : f32 to vector<2x16x16xf32>
    %158 = arith.mulf %157, %156 : vector<2x16x16xf32>
    %159 = arith.addf %112, %158 : vector<2x16x16xf32>
    %c1_67 = arith.constant 1 : index
    %c1_68 = arith.constant 1 : index
    %160 = memref.load %arg4[%c1_67, %c1_68] : memref<8x9xf32, #tpu.memory_space<smem>>
    %161 = vector.extract_strided_slice %154 {offsets = [0, 0, 1], sizes = [2, 16, 16], strides = [1, 1, 1]} : vector<2x18x18xf32> to vector<2x16x16xf32>
    %162 = vector.broadcast %160 : f32 to vector<2x16x16xf32>
    %163 = arith.mulf %162, %161 : vector<2x16x16xf32>
    %164 = arith.addf %159, %163 : vector<2x16x16xf32>
    %c1_69 = arith.constant 1 : index
    %c2_70 = arith.constant 2 : index
    %165 = memref.load %arg4[%c1_69, %c2_70] : memref<8x9xf32, #tpu.memory_space<smem>>
    %166 = vector.extract_strided_slice %154 {offsets = [0, 0, 2], sizes = [2, 16, 16], strides = [1, 1, 1]} : vector<2x18x18xf32> to vector<2x16x16xf32>
    %167 = vector.broadcast %165 : f32 to vector<2x16x16xf32>
    %168 = arith.mulf %167, %166 : vector<2x16x16xf32>
    %169 = arith.addf %164, %168 : vector<2x16x16xf32>
    %c1_71 = arith.constant 1 : index
    %c3_72 = arith.constant 3 : index
    %170 = memref.load %arg4[%c1_71, %c3_72] : memref<8x9xf32, #tpu.memory_space<smem>>
    %171 = vector.extract_strided_slice %154 {offsets = [0, 1, 0], sizes = [2, 16, 16], strides = [1, 1, 1]} : vector<2x18x18xf32> to vector<2x16x16xf32>
    %172 = vector.broadcast %170 : f32 to vector<2x16x16xf32>
    %173 = arith.mulf %172, %171 : vector<2x16x16xf32>
    %174 = arith.addf %169, %173 : vector<2x16x16xf32>
    %c1_73 = arith.constant 1 : index
    %c4_74 = arith.constant 4 : index
    %175 = memref.load %arg4[%c1_73, %c4_74] : memref<8x9xf32, #tpu.memory_space<smem>>
    %176 = vector.extract_strided_slice %154 {offsets = [0, 1, 1], sizes = [2, 16, 16], strides = [1, 1, 1]} : vector<2x18x18xf32> to vector<2x16x16xf32>
    %177 = vector.broadcast %175 : f32 to vector<2x16x16xf32>
    %178 = arith.mulf %177, %176 : vector<2x16x16xf32>
    %179 = arith.addf %174, %178 : vector<2x16x16xf32>
    %c1_75 = arith.constant 1 : index
    %c5_76 = arith.constant 5 : index
    %180 = memref.load %arg4[%c1_75, %c5_76] : memref<8x9xf32, #tpu.memory_space<smem>>
    %181 = vector.extract_strided_slice %154 {offsets = [0, 1, 2], sizes = [2, 16, 16], strides = [1, 1, 1]} : vector<2x18x18xf32> to vector<2x16x16xf32>
    %182 = vector.broadcast %180 : f32 to vector<2x16x16xf32>
    %183 = arith.mulf %182, %181 : vector<2x16x16xf32>
    %184 = arith.addf %179, %183 : vector<2x16x16xf32>
    %c1_77 = arith.constant 1 : index
    %c6_78 = arith.constant 6 : index
    %185 = memref.load %arg4[%c1_77, %c6_78] : memref<8x9xf32, #tpu.memory_space<smem>>
    %186 = vector.extract_strided_slice %154 {offsets = [0, 2, 0], sizes = [2, 16, 16], strides = [1, 1, 1]} : vector<2x18x18xf32> to vector<2x16x16xf32>
    %187 = vector.broadcast %185 : f32 to vector<2x16x16xf32>
    %188 = arith.mulf %187, %186 : vector<2x16x16xf32>
    %189 = arith.addf %184, %188 : vector<2x16x16xf32>
    %c1_79 = arith.constant 1 : index
    %c7_80 = arith.constant 7 : index
    %190 = memref.load %arg4[%c1_79, %c7_80] : memref<8x9xf32, #tpu.memory_space<smem>>
    %191 = vector.extract_strided_slice %154 {offsets = [0, 2, 1], sizes = [2, 16, 16], strides = [1, 1, 1]} : vector<2x18x18xf32> to vector<2x16x16xf32>
    %192 = vector.broadcast %190 : f32 to vector<2x16x16xf32>
    %193 = arith.mulf %192, %191 : vector<2x16x16xf32>
    %194 = arith.addf %189, %193 : vector<2x16x16xf32>
    %c1_81 = arith.constant 1 : index
    %c8_82 = arith.constant 8 : index
    %195 = memref.load %arg4[%c1_81, %c8_82] : memref<8x9xf32, #tpu.memory_space<smem>>
    %196 = vector.extract_strided_slice %154 {offsets = [0, 2, 2], sizes = [2, 16, 16], strides = [1, 1, 1]} : vector<2x18x18xf32> to vector<2x16x16xf32>
    %197 = vector.broadcast %195 : f32 to vector<2x16x16xf32>
    %198 = arith.mulf %197, %196 : vector<2x16x16xf32>
    %199 = arith.addf %194, %198 : vector<2x16x16xf32>
    %c2_83 = arith.constant 2 : index
    %c0_84 = arith.constant 0 : index
    %200 = memref.load %arg2[%c2_83, %c0_84] : memref<8x9xf32, #tpu.memory_space<smem>>
    %201 = vector.broadcast %200 : f32 to vector<2x18x18xf32>
    %202 = arith.mulf %18, %201 : vector<2x18x18xf32>
    %c2_85 = arith.constant 2 : index
    %c1_86 = arith.constant 1 : index
    %203 = memref.load %arg2[%c2_85, %c1_86] : memref<8x9xf32, #tpu.memory_space<smem>>
    %204 = vector.broadcast %203 : f32 to vector<2x18x18xf32>
    %205 = arith.mulf %19, %204 : vector<2x18x18xf32>
    %206 = arith.addf %202, %205 : vector<2x18x18xf32>
    %c2_87 = arith.constant 2 : index
    %c2_88 = arith.constant 2 : index
    %207 = memref.load %arg2[%c2_87, %c2_88] : memref<8x9xf32, #tpu.memory_space<smem>>
    %208 = vector.broadcast %207 : f32 to vector<2x18x18xf32>
    %209 = arith.mulf %20, %208 : vector<2x18x18xf32>
    %210 = arith.addf %206, %209 : vector<2x18x18xf32>
    %c2_89 = arith.constant 2 : index
    %c3_90 = arith.constant 3 : index
    %211 = memref.load %arg2[%c2_89, %c3_90] : memref<8x9xf32, #tpu.memory_space<smem>>
    %212 = vector.broadcast %211 : f32 to vector<2x18x18xf32>
    %213 = arith.mulf %21, %212 : vector<2x18x18xf32>
    %214 = arith.addf %210, %213 : vector<2x18x18xf32>
    %c2_91 = arith.constant 2 : index
    %c4_92 = arith.constant 4 : index
    %215 = memref.load %arg2[%c2_91, %c4_92] : memref<8x9xf32, #tpu.memory_space<smem>>
    %216 = vector.broadcast %215 : f32 to vector<2x18x18xf32>
    %217 = arith.mulf %22, %216 : vector<2x18x18xf32>
    %218 = arith.addf %214, %217 : vector<2x18x18xf32>
    %c2_93 = arith.constant 2 : index
    %c5_94 = arith.constant 5 : index
    %219 = memref.load %arg2[%c2_93, %c5_94] : memref<8x9xf32, #tpu.memory_space<smem>>
    %220 = vector.broadcast %219 : f32 to vector<2x18x18xf32>
    %221 = arith.mulf %23, %220 : vector<2x18x18xf32>
    %222 = arith.addf %218, %221 : vector<2x18x18xf32>
    %c2_95 = arith.constant 2 : index
    %c6_96 = arith.constant 6 : index
    %223 = memref.load %arg2[%c2_95, %c6_96] : memref<8x9xf32, #tpu.memory_space<smem>>
    %224 = vector.broadcast %223 : f32 to vector<2x18x18xf32>
    %225 = arith.mulf %24, %224 : vector<2x18x18xf32>
    %226 = arith.addf %222, %225 : vector<2x18x18xf32>
    %c2_97 = arith.constant 2 : index
    %c7_98 = arith.constant 7 : index
    %227 = memref.load %arg2[%c2_97, %c7_98] : memref<8x9xf32, #tpu.memory_space<smem>>
    %228 = vector.broadcast %227 : f32 to vector<2x18x18xf32>
    %229 = arith.mulf %25, %228 : vector<2x18x18xf32>
    %230 = arith.addf %226, %229 : vector<2x18x18xf32>
    %c2_99 = arith.constant 2 : index
    %c8_100 = arith.constant 8 : index
    %231 = memref.load %arg2[%c2_99, %c8_100] : memref<8x9xf32, #tpu.memory_space<smem>>
    %232 = vector.broadcast %231 : f32 to vector<2x18x18xf32>
    %233 = arith.mulf %26, %232 : vector<2x18x18xf32>
    %234 = arith.addf %230, %233 : vector<2x18x18xf32>
    %c2_101 = arith.constant 2 : index
    %235 = memref.load %arg3[%c2_101] : memref<8xf32, #tpu.memory_space<smem>>
    %236 = vector.broadcast %235 : f32 to vector<2x18x18xf32>
    %237 = arith.addf %234, %236 : vector<2x18x18xf32>
    %cst_102 = arith.constant 0.000000e+00 : f32
    %238 = vector.broadcast %cst_102 : f32 to vector<2x18x18xf32>
    %239 = arith.maximumf %237, %238 : vector<2x18x18xf32>
    %cst_103 = arith.constant 0.000000e+00 : f32
    %240 = vector.broadcast %cst_103 : f32 to vector<2x18x18xf32>
    %241 = arith.select %17, %239, %240 : vector<2x18x18xi1>, vector<2x18x18xf32>
    %c2_104 = arith.constant 2 : index
    %c0_105 = arith.constant 0 : index
    %242 = memref.load %arg4[%c2_104, %c0_105] : memref<8x9xf32, #tpu.memory_space<smem>>
    %243 = vector.extract_strided_slice %241 {offsets = [0, 0, 0], sizes = [2, 16, 16], strides = [1, 1, 1]} : vector<2x18x18xf32> to vector<2x16x16xf32>
    %244 = vector.broadcast %242 : f32 to vector<2x16x16xf32>
    %245 = arith.mulf %244, %243 : vector<2x16x16xf32>
    %246 = arith.addf %199, %245 : vector<2x16x16xf32>
    %c2_106 = arith.constant 2 : index
    %c1_107 = arith.constant 1 : index
    %247 = memref.load %arg4[%c2_106, %c1_107] : memref<8x9xf32, #tpu.memory_space<smem>>
    %248 = vector.extract_strided_slice %241 {offsets = [0, 0, 1], sizes = [2, 16, 16], strides = [1, 1, 1]} : vector<2x18x18xf32> to vector<2x16x16xf32>
    %249 = vector.broadcast %247 : f32 to vector<2x16x16xf32>
    %250 = arith.mulf %249, %248 : vector<2x16x16xf32>
    %251 = arith.addf %246, %250 : vector<2x16x16xf32>
    %c2_108 = arith.constant 2 : index
    %c2_109 = arith.constant 2 : index
    %252 = memref.load %arg4[%c2_108, %c2_109] : memref<8x9xf32, #tpu.memory_space<smem>>
    %253 = vector.extract_strided_slice %241 {offsets = [0, 0, 2], sizes = [2, 16, 16], strides = [1, 1, 1]} : vector<2x18x18xf32> to vector<2x16x16xf32>
    %254 = vector.broadcast %252 : f32 to vector<2x16x16xf32>
    %255 = arith.mulf %254, %253 : vector<2x16x16xf32>
    %256 = arith.addf %251, %255 : vector<2x16x16xf32>
    %c2_110 = arith.constant 2 : index
    %c3_111 = arith.constant 3 : index
    %257 = memref.load %arg4[%c2_110, %c3_111] : memref<8x9xf32, #tpu.memory_space<smem>>
    %258 = vector.extract_strided_slice %241 {offsets = [0, 1, 0], sizes = [2, 16, 16], strides = [1, 1, 1]} : vector<2x18x18xf32> to vector<2x16x16xf32>
    %259 = vector.broadcast %257 : f32 to vector<2x16x16xf32>
    %260 = arith.mulf %259, %258 : vector<2x16x16xf32>
    %261 = arith.addf %256, %260 : vector<2x16x16xf32>
    %c2_112 = arith.constant 2 : index
    %c4_113 = arith.constant 4 : index
    %262 = memref.load %arg4[%c2_112, %c4_113] : memref<8x9xf32, #tpu.memory_space<smem>>
    %263 = vector.extract_strided_slice %241 {offsets = [0, 1, 1], sizes = [2, 16, 16], strides = [1, 1, 1]} : vector<2x18x18xf32> to vector<2x16x16xf32>
    %264 = vector.broadcast %262 : f32 to vector<2x16x16xf32>
    %265 = arith.mulf %264, %263 : vector<2x16x16xf32>
    %266 = arith.addf %261, %265 : vector<2x16x16xf32>
    %c2_114 = arith.constant 2 : index
    %c5_115 = arith.constant 5 : index
    %267 = memref.load %arg4[%c2_114, %c5_115] : memref<8x9xf32, #tpu.memory_space<smem>>
    %268 = vector.extract_strided_slice %241 {offsets = [0, 1, 2], sizes = [2, 16, 16], strides = [1, 1, 1]} : vector<2x18x18xf32> to vector<2x16x16xf32>
    %269 = vector.broadcast %267 : f32 to vector<2x16x16xf32>
    %270 = arith.mulf %269, %268 : vector<2x16x16xf32>
    %271 = arith.addf %266, %270 : vector<2x16x16xf32>
    %c2_116 = arith.constant 2 : index
    %c6_117 = arith.constant 6 : index
    %272 = memref.load %arg4[%c2_116, %c6_117] : memref<8x9xf32, #tpu.memory_space<smem>>
    %273 = vector.extract_strided_slice %241 {offsets = [0, 2, 0], sizes = [2, 16, 16], strides = [1, 1, 1]} : vector<2x18x18xf32> to vector<2x16x16xf32>
    %274 = vector.broadcast %272 : f32 to vector<2x16x16xf32>
    %275 = arith.mulf %274, %273 : vector<2x16x16xf32>
    %276 = arith.addf %271, %275 : vector<2x16x16xf32>
    %c2_118 = arith.constant 2 : index
    %c7_119 = arith.constant 7 : index
    %277 = memref.load %arg4[%c2_118, %c7_119] : memref<8x9xf32, #tpu.memory_space<smem>>
    %278 = vector.extract_strided_slice %241 {offsets = [0, 2, 1], sizes = [2, 16, 16], strides = [1, 1, 1]} : vector<2x18x18xf32> to vector<2x16x16xf32>
    %279 = vector.broadcast %277 : f32 to vector<2x16x16xf32>
    %280 = arith.mulf %279, %278 : vector<2x16x16xf32>
    %281 = arith.addf %276, %280 : vector<2x16x16xf32>
    %c2_120 = arith.constant 2 : index
    %c8_121 = arith.constant 8 : index
    %282 = memref.load %arg4[%c2_120, %c8_121] : memref<8x9xf32, #tpu.memory_space<smem>>
    %283 = vector.extract_strided_slice %241 {offsets = [0, 2, 2], sizes = [2, 16, 16], strides = [1, 1, 1]} : vector<2x18x18xf32> to vector<2x16x16xf32>
    %284 = vector.broadcast %282 : f32 to vector<2x16x16xf32>
    %285 = arith.mulf %284, %283 : vector<2x16x16xf32>
    %286 = arith.addf %281, %285 : vector<2x16x16xf32>
    %c3_122 = arith.constant 3 : index
    %c0_123 = arith.constant 0 : index
    %287 = memref.load %arg2[%c3_122, %c0_123] : memref<8x9xf32, #tpu.memory_space<smem>>
    %288 = vector.broadcast %287 : f32 to vector<2x18x18xf32>
    %289 = arith.mulf %18, %288 : vector<2x18x18xf32>
    %c3_124 = arith.constant 3 : index
    %c1_125 = arith.constant 1 : index
    %290 = memref.load %arg2[%c3_124, %c1_125] : memref<8x9xf32, #tpu.memory_space<smem>>
    %291 = vector.broadcast %290 : f32 to vector<2x18x18xf32>
    %292 = arith.mulf %19, %291 : vector<2x18x18xf32>
    %293 = arith.addf %289, %292 : vector<2x18x18xf32>
    %c3_126 = arith.constant 3 : index
    %c2_127 = arith.constant 2 : index
    %294 = memref.load %arg2[%c3_126, %c2_127] : memref<8x9xf32, #tpu.memory_space<smem>>
    %295 = vector.broadcast %294 : f32 to vector<2x18x18xf32>
    %296 = arith.mulf %20, %295 : vector<2x18x18xf32>
    %297 = arith.addf %293, %296 : vector<2x18x18xf32>
    %c3_128 = arith.constant 3 : index
    %c3_129 = arith.constant 3 : index
    %298 = memref.load %arg2[%c3_128, %c3_129] : memref<8x9xf32, #tpu.memory_space<smem>>
    %299 = vector.broadcast %298 : f32 to vector<2x18x18xf32>
    %300 = arith.mulf %21, %299 : vector<2x18x18xf32>
    %301 = arith.addf %297, %300 : vector<2x18x18xf32>
    %c3_130 = arith.constant 3 : index
    %c4_131 = arith.constant 4 : index
    %302 = memref.load %arg2[%c3_130, %c4_131] : memref<8x9xf32, #tpu.memory_space<smem>>
    %303 = vector.broadcast %302 : f32 to vector<2x18x18xf32>
    %304 = arith.mulf %22, %303 : vector<2x18x18xf32>
    %305 = arith.addf %301, %304 : vector<2x18x18xf32>
    %c3_132 = arith.constant 3 : index
    %c5_133 = arith.constant 5 : index
    %306 = memref.load %arg2[%c3_132, %c5_133] : memref<8x9xf32, #tpu.memory_space<smem>>
    %307 = vector.broadcast %306 : f32 to vector<2x18x18xf32>
    %308 = arith.mulf %23, %307 : vector<2x18x18xf32>
    %309 = arith.addf %305, %308 : vector<2x18x18xf32>
    %c3_134 = arith.constant 3 : index
    %c6_135 = arith.constant 6 : index
    %310 = memref.load %arg2[%c3_134, %c6_135] : memref<8x9xf32, #tpu.memory_space<smem>>
    %311 = vector.broadcast %310 : f32 to vector<2x18x18xf32>
    %312 = arith.mulf %24, %311 : vector<2x18x18xf32>
    %313 = arith.addf %309, %312 : vector<2x18x18xf32>
    %c3_136 = arith.constant 3 : index
    %c7_137 = arith.constant 7 : index
    %314 = memref.load %arg2[%c3_136, %c7_137] : memref<8x9xf32, #tpu.memory_space<smem>>
    %315 = vector.broadcast %314 : f32 to vector<2x18x18xf32>
    %316 = arith.mulf %25, %315 : vector<2x18x18xf32>
    %317 = arith.addf %313, %316 : vector<2x18x18xf32>
    %c3_138 = arith.constant 3 : index
    %c8_139 = arith.constant 8 : index
    %318 = memref.load %arg2[%c3_138, %c8_139] : memref<8x9xf32, #tpu.memory_space<smem>>
    %319 = vector.broadcast %318 : f32 to vector<2x18x18xf32>
    %320 = arith.mulf %26, %319 : vector<2x18x18xf32>
    %321 = arith.addf %317, %320 : vector<2x18x18xf32>
    %c3_140 = arith.constant 3 : index
    %322 = memref.load %arg3[%c3_140] : memref<8xf32, #tpu.memory_space<smem>>
    %323 = vector.broadcast %322 : f32 to vector<2x18x18xf32>
    %324 = arith.addf %321, %323 : vector<2x18x18xf32>
    %cst_141 = arith.constant 0.000000e+00 : f32
    %325 = vector.broadcast %cst_141 : f32 to vector<2x18x18xf32>
    %326 = arith.maximumf %324, %325 : vector<2x18x18xf32>
    %cst_142 = arith.constant 0.000000e+00 : f32
    %327 = vector.broadcast %cst_142 : f32 to vector<2x18x18xf32>
    %328 = arith.select %17, %326, %327 : vector<2x18x18xi1>, vector<2x18x18xf32>
    %c3_143 = arith.constant 3 : index
    %c0_144 = arith.constant 0 : index
    %329 = memref.load %arg4[%c3_143, %c0_144] : memref<8x9xf32, #tpu.memory_space<smem>>
    %330 = vector.extract_strided_slice %328 {offsets = [0, 0, 0], sizes = [2, 16, 16], strides = [1, 1, 1]} : vector<2x18x18xf32> to vector<2x16x16xf32>
    %331 = vector.broadcast %329 : f32 to vector<2x16x16xf32>
    %332 = arith.mulf %331, %330 : vector<2x16x16xf32>
    %333 = arith.addf %286, %332 : vector<2x16x16xf32>
    %c3_145 = arith.constant 3 : index
    %c1_146 = arith.constant 1 : index
    %334 = memref.load %arg4[%c3_145, %c1_146] : memref<8x9xf32, #tpu.memory_space<smem>>
    %335 = vector.extract_strided_slice %328 {offsets = [0, 0, 1], sizes = [2, 16, 16], strides = [1, 1, 1]} : vector<2x18x18xf32> to vector<2x16x16xf32>
    %336 = vector.broadcast %334 : f32 to vector<2x16x16xf32>
    %337 = arith.mulf %336, %335 : vector<2x16x16xf32>
    %338 = arith.addf %333, %337 : vector<2x16x16xf32>
    %c3_147 = arith.constant 3 : index
    %c2_148 = arith.constant 2 : index
    %339 = memref.load %arg4[%c3_147, %c2_148] : memref<8x9xf32, #tpu.memory_space<smem>>
    %340 = vector.extract_strided_slice %328 {offsets = [0, 0, 2], sizes = [2, 16, 16], strides = [1, 1, 1]} : vector<2x18x18xf32> to vector<2x16x16xf32>
    %341 = vector.broadcast %339 : f32 to vector<2x16x16xf32>
    %342 = arith.mulf %341, %340 : vector<2x16x16xf32>
    %343 = arith.addf %338, %342 : vector<2x16x16xf32>
    %c3_149 = arith.constant 3 : index
    %c3_150 = arith.constant 3 : index
    %344 = memref.load %arg4[%c3_149, %c3_150] : memref<8x9xf32, #tpu.memory_space<smem>>
    %345 = vector.extract_strided_slice %328 {offsets = [0, 1, 0], sizes = [2, 16, 16], strides = [1, 1, 1]} : vector<2x18x18xf32> to vector<2x16x16xf32>
    %346 = vector.broadcast %344 : f32 to vector<2x16x16xf32>
    %347 = arith.mulf %346, %345 : vector<2x16x16xf32>
    %348 = arith.addf %343, %347 : vector<2x16x16xf32>
    %c3_151 = arith.constant 3 : index
    %c4_152 = arith.constant 4 : index
    %349 = memref.load %arg4[%c3_151, %c4_152] : memref<8x9xf32, #tpu.memory_space<smem>>
    %350 = vector.extract_strided_slice %328 {offsets = [0, 1, 1], sizes = [2, 16, 16], strides = [1, 1, 1]} : vector<2x18x18xf32> to vector<2x16x16xf32>
    %351 = vector.broadcast %349 : f32 to vector<2x16x16xf32>
    %352 = arith.mulf %351, %350 : vector<2x16x16xf32>
    %353 = arith.addf %348, %352 : vector<2x16x16xf32>
    %c3_153 = arith.constant 3 : index
    %c5_154 = arith.constant 5 : index
    %354 = memref.load %arg4[%c3_153, %c5_154] : memref<8x9xf32, #tpu.memory_space<smem>>
    %355 = vector.extract_strided_slice %328 {offsets = [0, 1, 2], sizes = [2, 16, 16], strides = [1, 1, 1]} : vector<2x18x18xf32> to vector<2x16x16xf32>
    %356 = vector.broadcast %354 : f32 to vector<2x16x16xf32>
    %357 = arith.mulf %356, %355 : vector<2x16x16xf32>
    %358 = arith.addf %353, %357 : vector<2x16x16xf32>
    %c3_155 = arith.constant 3 : index
    %c6_156 = arith.constant 6 : index
    %359 = memref.load %arg4[%c3_155, %c6_156] : memref<8x9xf32, #tpu.memory_space<smem>>
    %360 = vector.extract_strided_slice %328 {offsets = [0, 2, 0], sizes = [2, 16, 16], strides = [1, 1, 1]} : vector<2x18x18xf32> to vector<2x16x16xf32>
    %361 = vector.broadcast %359 : f32 to vector<2x16x16xf32>
    %362 = arith.mulf %361, %360 : vector<2x16x16xf32>
    %363 = arith.addf %358, %362 : vector<2x16x16xf32>
    %c3_157 = arith.constant 3 : index
    %c7_158 = arith.constant 7 : index
    %364 = memref.load %arg4[%c3_157, %c7_158] : memref<8x9xf32, #tpu.memory_space<smem>>
    %365 = vector.extract_strided_slice %328 {offsets = [0, 2, 1], sizes = [2, 16, 16], strides = [1, 1, 1]} : vector<2x18x18xf32> to vector<2x16x16xf32>
    %366 = vector.broadcast %364 : f32 to vector<2x16x16xf32>
    %367 = arith.mulf %366, %365 : vector<2x16x16xf32>
    %368 = arith.addf %363, %367 : vector<2x16x16xf32>
    %c3_159 = arith.constant 3 : index
    %c8_160 = arith.constant 8 : index
    %369 = memref.load %arg4[%c3_159, %c8_160] : memref<8x9xf32, #tpu.memory_space<smem>>
    %370 = vector.extract_strided_slice %328 {offsets = [0, 2, 2], sizes = [2, 16, 16], strides = [1, 1, 1]} : vector<2x18x18xf32> to vector<2x16x16xf32>
    %371 = vector.broadcast %369 : f32 to vector<2x16x16xf32>
    %372 = arith.mulf %371, %370 : vector<2x16x16xf32>
    %373 = arith.addf %368, %372 : vector<2x16x16xf32>
    %c4_161 = arith.constant 4 : index
    %c0_162 = arith.constant 0 : index
    %374 = memref.load %arg2[%c4_161, %c0_162] : memref<8x9xf32, #tpu.memory_space<smem>>
    %375 = vector.broadcast %374 : f32 to vector<2x18x18xf32>
    %376 = arith.mulf %18, %375 : vector<2x18x18xf32>
    %c4_163 = arith.constant 4 : index
    %c1_164 = arith.constant 1 : index
    %377 = memref.load %arg2[%c4_163, %c1_164] : memref<8x9xf32, #tpu.memory_space<smem>>
    %378 = vector.broadcast %377 : f32 to vector<2x18x18xf32>
    %379 = arith.mulf %19, %378 : vector<2x18x18xf32>
    %380 = arith.addf %376, %379 : vector<2x18x18xf32>
    %c4_165 = arith.constant 4 : index
    %c2_166 = arith.constant 2 : index
    %381 = memref.load %arg2[%c4_165, %c2_166] : memref<8x9xf32, #tpu.memory_space<smem>>
    %382 = vector.broadcast %381 : f32 to vector<2x18x18xf32>
    %383 = arith.mulf %20, %382 : vector<2x18x18xf32>
    %384 = arith.addf %380, %383 : vector<2x18x18xf32>
    %c4_167 = arith.constant 4 : index
    %c3_168 = arith.constant 3 : index
    %385 = memref.load %arg2[%c4_167, %c3_168] : memref<8x9xf32, #tpu.memory_space<smem>>
    %386 = vector.broadcast %385 : f32 to vector<2x18x18xf32>
    %387 = arith.mulf %21, %386 : vector<2x18x18xf32>
    %388 = arith.addf %384, %387 : vector<2x18x18xf32>
    %c4_169 = arith.constant 4 : index
    %c4_170 = arith.constant 4 : index
    %389 = memref.load %arg2[%c4_169, %c4_170] : memref<8x9xf32, #tpu.memory_space<smem>>
    %390 = vector.broadcast %389 : f32 to vector<2x18x18xf32>
    %391 = arith.mulf %22, %390 : vector<2x18x18xf32>
    %392 = arith.addf %388, %391 : vector<2x18x18xf32>
    %c4_171 = arith.constant 4 : index
    %c5_172 = arith.constant 5 : index
    %393 = memref.load %arg2[%c4_171, %c5_172] : memref<8x9xf32, #tpu.memory_space<smem>>
    %394 = vector.broadcast %393 : f32 to vector<2x18x18xf32>
    %395 = arith.mulf %23, %394 : vector<2x18x18xf32>
    %396 = arith.addf %392, %395 : vector<2x18x18xf32>
    %c4_173 = arith.constant 4 : index
    %c6_174 = arith.constant 6 : index
    %397 = memref.load %arg2[%c4_173, %c6_174] : memref<8x9xf32, #tpu.memory_space<smem>>
    %398 = vector.broadcast %397 : f32 to vector<2x18x18xf32>
    %399 = arith.mulf %24, %398 : vector<2x18x18xf32>
    %400 = arith.addf %396, %399 : vector<2x18x18xf32>
    %c4_175 = arith.constant 4 : index
    %c7_176 = arith.constant 7 : index
    %401 = memref.load %arg2[%c4_175, %c7_176] : memref<8x9xf32, #tpu.memory_space<smem>>
    %402 = vector.broadcast %401 : f32 to vector<2x18x18xf32>
    %403 = arith.mulf %25, %402 : vector<2x18x18xf32>
    %404 = arith.addf %400, %403 : vector<2x18x18xf32>
    %c4_177 = arith.constant 4 : index
    %c8_178 = arith.constant 8 : index
    %405 = memref.load %arg2[%c4_177, %c8_178] : memref<8x9xf32, #tpu.memory_space<smem>>
    %406 = vector.broadcast %405 : f32 to vector<2x18x18xf32>
    %407 = arith.mulf %26, %406 : vector<2x18x18xf32>
    %408 = arith.addf %404, %407 : vector<2x18x18xf32>
    %c4_179 = arith.constant 4 : index
    %409 = memref.load %arg3[%c4_179] : memref<8xf32, #tpu.memory_space<smem>>
    %410 = vector.broadcast %409 : f32 to vector<2x18x18xf32>
    %411 = arith.addf %408, %410 : vector<2x18x18xf32>
    %cst_180 = arith.constant 0.000000e+00 : f32
    %412 = vector.broadcast %cst_180 : f32 to vector<2x18x18xf32>
    %413 = arith.maximumf %411, %412 : vector<2x18x18xf32>
    %cst_181 = arith.constant 0.000000e+00 : f32
    %414 = vector.broadcast %cst_181 : f32 to vector<2x18x18xf32>
    %415 = arith.select %17, %413, %414 : vector<2x18x18xi1>, vector<2x18x18xf32>
    %c4_182 = arith.constant 4 : index
    %c0_183 = arith.constant 0 : index
    %416 = memref.load %arg4[%c4_182, %c0_183] : memref<8x9xf32, #tpu.memory_space<smem>>
    %417 = vector.extract_strided_slice %415 {offsets = [0, 0, 0], sizes = [2, 16, 16], strides = [1, 1, 1]} : vector<2x18x18xf32> to vector<2x16x16xf32>
    %418 = vector.broadcast %416 : f32 to vector<2x16x16xf32>
    %419 = arith.mulf %418, %417 : vector<2x16x16xf32>
    %420 = arith.addf %373, %419 : vector<2x16x16xf32>
    %c4_184 = arith.constant 4 : index
    %c1_185 = arith.constant 1 : index
    %421 = memref.load %arg4[%c4_184, %c1_185] : memref<8x9xf32, #tpu.memory_space<smem>>
    %422 = vector.extract_strided_slice %415 {offsets = [0, 0, 1], sizes = [2, 16, 16], strides = [1, 1, 1]} : vector<2x18x18xf32> to vector<2x16x16xf32>
    %423 = vector.broadcast %421 : f32 to vector<2x16x16xf32>
    %424 = arith.mulf %423, %422 : vector<2x16x16xf32>
    %425 = arith.addf %420, %424 : vector<2x16x16xf32>
    %c4_186 = arith.constant 4 : index
    %c2_187 = arith.constant 2 : index
    %426 = memref.load %arg4[%c4_186, %c2_187] : memref<8x9xf32, #tpu.memory_space<smem>>
    %427 = vector.extract_strided_slice %415 {offsets = [0, 0, 2], sizes = [2, 16, 16], strides = [1, 1, 1]} : vector<2x18x18xf32> to vector<2x16x16xf32>
    %428 = vector.broadcast %426 : f32 to vector<2x16x16xf32>
    %429 = arith.mulf %428, %427 : vector<2x16x16xf32>
    %430 = arith.addf %425, %429 : vector<2x16x16xf32>
    %c4_188 = arith.constant 4 : index
    %c3_189 = arith.constant 3 : index
    %431 = memref.load %arg4[%c4_188, %c3_189] : memref<8x9xf32, #tpu.memory_space<smem>>
    %432 = vector.extract_strided_slice %415 {offsets = [0, 1, 0], sizes = [2, 16, 16], strides = [1, 1, 1]} : vector<2x18x18xf32> to vector<2x16x16xf32>
    %433 = vector.broadcast %431 : f32 to vector<2x16x16xf32>
    %434 = arith.mulf %433, %432 : vector<2x16x16xf32>
    %435 = arith.addf %430, %434 : vector<2x16x16xf32>
    %c4_190 = arith.constant 4 : index
    %c4_191 = arith.constant 4 : index
    %436 = memref.load %arg4[%c4_190, %c4_191] : memref<8x9xf32, #tpu.memory_space<smem>>
    %437 = vector.extract_strided_slice %415 {offsets = [0, 1, 1], sizes = [2, 16, 16], strides = [1, 1, 1]} : vector<2x18x18xf32> to vector<2x16x16xf32>
    %438 = vector.broadcast %436 : f32 to vector<2x16x16xf32>
    %439 = arith.mulf %438, %437 : vector<2x16x16xf32>
    %440 = arith.addf %435, %439 : vector<2x16x16xf32>
    %c4_192 = arith.constant 4 : index
    %c5_193 = arith.constant 5 : index
    %441 = memref.load %arg4[%c4_192, %c5_193] : memref<8x9xf32, #tpu.memory_space<smem>>
    %442 = vector.extract_strided_slice %415 {offsets = [0, 1, 2], sizes = [2, 16, 16], strides = [1, 1, 1]} : vector<2x18x18xf32> to vector<2x16x16xf32>
    %443 = vector.broadcast %441 : f32 to vector<2x16x16xf32>
    %444 = arith.mulf %443, %442 : vector<2x16x16xf32>
    %445 = arith.addf %440, %444 : vector<2x16x16xf32>
    %c4_194 = arith.constant 4 : index
    %c6_195 = arith.constant 6 : index
    %446 = memref.load %arg4[%c4_194, %c6_195] : memref<8x9xf32, #tpu.memory_space<smem>>
    %447 = vector.extract_strided_slice %415 {offsets = [0, 2, 0], sizes = [2, 16, 16], strides = [1, 1, 1]} : vector<2x18x18xf32> to vector<2x16x16xf32>
    %448 = vector.broadcast %446 : f32 to vector<2x16x16xf32>
    %449 = arith.mulf %448, %447 : vector<2x16x16xf32>
    %450 = arith.addf %445, %449 : vector<2x16x16xf32>
    %c4_196 = arith.constant 4 : index
    %c7_197 = arith.constant 7 : index
    %451 = memref.load %arg4[%c4_196, %c7_197] : memref<8x9xf32, #tpu.memory_space<smem>>
    %452 = vector.extract_strided_slice %415 {offsets = [0, 2, 1], sizes = [2, 16, 16], strides = [1, 1, 1]} : vector<2x18x18xf32> to vector<2x16x16xf32>
    %453 = vector.broadcast %451 : f32 to vector<2x16x16xf32>
    %454 = arith.mulf %453, %452 : vector<2x16x16xf32>
    %455 = arith.addf %450, %454 : vector<2x16x16xf32>
    %c4_198 = arith.constant 4 : index
    %c8_199 = arith.constant 8 : index
    %456 = memref.load %arg4[%c4_198, %c8_199] : memref<8x9xf32, #tpu.memory_space<smem>>
    %457 = vector.extract_strided_slice %415 {offsets = [0, 2, 2], sizes = [2, 16, 16], strides = [1, 1, 1]} : vector<2x18x18xf32> to vector<2x16x16xf32>
    %458 = vector.broadcast %456 : f32 to vector<2x16x16xf32>
    %459 = arith.mulf %458, %457 : vector<2x16x16xf32>
    %460 = arith.addf %455, %459 : vector<2x16x16xf32>
    %c5_200 = arith.constant 5 : index
    %c0_201 = arith.constant 0 : index
    %461 = memref.load %arg2[%c5_200, %c0_201] : memref<8x9xf32, #tpu.memory_space<smem>>
    %462 = vector.broadcast %461 : f32 to vector<2x18x18xf32>
    %463 = arith.mulf %18, %462 : vector<2x18x18xf32>
    %c5_202 = arith.constant 5 : index
    %c1_203 = arith.constant 1 : index
    %464 = memref.load %arg2[%c5_202, %c1_203] : memref<8x9xf32, #tpu.memory_space<smem>>
    %465 = vector.broadcast %464 : f32 to vector<2x18x18xf32>
    %466 = arith.mulf %19, %465 : vector<2x18x18xf32>
    %467 = arith.addf %463, %466 : vector<2x18x18xf32>
    %c5_204 = arith.constant 5 : index
    %c2_205 = arith.constant 2 : index
    %468 = memref.load %arg2[%c5_204, %c2_205] : memref<8x9xf32, #tpu.memory_space<smem>>
    %469 = vector.broadcast %468 : f32 to vector<2x18x18xf32>
    %470 = arith.mulf %20, %469 : vector<2x18x18xf32>
    %471 = arith.addf %467, %470 : vector<2x18x18xf32>
    %c5_206 = arith.constant 5 : index
    %c3_207 = arith.constant 3 : index
    %472 = memref.load %arg2[%c5_206, %c3_207] : memref<8x9xf32, #tpu.memory_space<smem>>
    %473 = vector.broadcast %472 : f32 to vector<2x18x18xf32>
    %474 = arith.mulf %21, %473 : vector<2x18x18xf32>
    %475 = arith.addf %471, %474 : vector<2x18x18xf32>
    %c5_208 = arith.constant 5 : index
    %c4_209 = arith.constant 4 : index
    %476 = memref.load %arg2[%c5_208, %c4_209] : memref<8x9xf32, #tpu.memory_space<smem>>
    %477 = vector.broadcast %476 : f32 to vector<2x18x18xf32>
    %478 = arith.mulf %22, %477 : vector<2x18x18xf32>
    %479 = arith.addf %475, %478 : vector<2x18x18xf32>
    %c5_210 = arith.constant 5 : index
    %c5_211 = arith.constant 5 : index
    %480 = memref.load %arg2[%c5_210, %c5_211] : memref<8x9xf32, #tpu.memory_space<smem>>
    %481 = vector.broadcast %480 : f32 to vector<2x18x18xf32>
    %482 = arith.mulf %23, %481 : vector<2x18x18xf32>
    %483 = arith.addf %479, %482 : vector<2x18x18xf32>
    %c5_212 = arith.constant 5 : index
    %c6_213 = arith.constant 6 : index
    %484 = memref.load %arg2[%c5_212, %c6_213] : memref<8x9xf32, #tpu.memory_space<smem>>
    %485 = vector.broadcast %484 : f32 to vector<2x18x18xf32>
    %486 = arith.mulf %24, %485 : vector<2x18x18xf32>
    %487 = arith.addf %483, %486 : vector<2x18x18xf32>
    %c5_214 = arith.constant 5 : index
    %c7_215 = arith.constant 7 : index
    %488 = memref.load %arg2[%c5_214, %c7_215] : memref<8x9xf32, #tpu.memory_space<smem>>
    %489 = vector.broadcast %488 : f32 to vector<2x18x18xf32>
    %490 = arith.mulf %25, %489 : vector<2x18x18xf32>
    %491 = arith.addf %487, %490 : vector<2x18x18xf32>
    %c5_216 = arith.constant 5 : index
    %c8_217 = arith.constant 8 : index
    %492 = memref.load %arg2[%c5_216, %c8_217] : memref<8x9xf32, #tpu.memory_space<smem>>
    %493 = vector.broadcast %492 : f32 to vector<2x18x18xf32>
    %494 = arith.mulf %26, %493 : vector<2x18x18xf32>
    %495 = arith.addf %491, %494 : vector<2x18x18xf32>
    %c5_218 = arith.constant 5 : index
    %496 = memref.load %arg3[%c5_218] : memref<8xf32, #tpu.memory_space<smem>>
    %497 = vector.broadcast %496 : f32 to vector<2x18x18xf32>
    %498 = arith.addf %495, %497 : vector<2x18x18xf32>
    %cst_219 = arith.constant 0.000000e+00 : f32
    %499 = vector.broadcast %cst_219 : f32 to vector<2x18x18xf32>
    %500 = arith.maximumf %498, %499 : vector<2x18x18xf32>
    %cst_220 = arith.constant 0.000000e+00 : f32
    %501 = vector.broadcast %cst_220 : f32 to vector<2x18x18xf32>
    %502 = arith.select %17, %500, %501 : vector<2x18x18xi1>, vector<2x18x18xf32>
    %c5_221 = arith.constant 5 : index
    %c0_222 = arith.constant 0 : index
    %503 = memref.load %arg4[%c5_221, %c0_222] : memref<8x9xf32, #tpu.memory_space<smem>>
    %504 = vector.extract_strided_slice %502 {offsets = [0, 0, 0], sizes = [2, 16, 16], strides = [1, 1, 1]} : vector<2x18x18xf32> to vector<2x16x16xf32>
    %505 = vector.broadcast %503 : f32 to vector<2x16x16xf32>
    %506 = arith.mulf %505, %504 : vector<2x16x16xf32>
    %507 = arith.addf %460, %506 : vector<2x16x16xf32>
    %c5_223 = arith.constant 5 : index
    %c1_224 = arith.constant 1 : index
    %508 = memref.load %arg4[%c5_223, %c1_224] : memref<8x9xf32, #tpu.memory_space<smem>>
    %509 = vector.extract_strided_slice %502 {offsets = [0, 0, 1], sizes = [2, 16, 16], strides = [1, 1, 1]} : vector<2x18x18xf32> to vector<2x16x16xf32>
    %510 = vector.broadcast %508 : f32 to vector<2x16x16xf32>
    %511 = arith.mulf %510, %509 : vector<2x16x16xf32>
    %512 = arith.addf %507, %511 : vector<2x16x16xf32>
    %c5_225 = arith.constant 5 : index
    %c2_226 = arith.constant 2 : index
    %513 = memref.load %arg4[%c5_225, %c2_226] : memref<8x9xf32, #tpu.memory_space<smem>>
    %514 = vector.extract_strided_slice %502 {offsets = [0, 0, 2], sizes = [2, 16, 16], strides = [1, 1, 1]} : vector<2x18x18xf32> to vector<2x16x16xf32>
    %515 = vector.broadcast %513 : f32 to vector<2x16x16xf32>
    %516 = arith.mulf %515, %514 : vector<2x16x16xf32>
    %517 = arith.addf %512, %516 : vector<2x16x16xf32>
    %c5_227 = arith.constant 5 : index
    %c3_228 = arith.constant 3 : index
    %518 = memref.load %arg4[%c5_227, %c3_228] : memref<8x9xf32, #tpu.memory_space<smem>>
    %519 = vector.extract_strided_slice %502 {offsets = [0, 1, 0], sizes = [2, 16, 16], strides = [1, 1, 1]} : vector<2x18x18xf32> to vector<2x16x16xf32>
    %520 = vector.broadcast %518 : f32 to vector<2x16x16xf32>
    %521 = arith.mulf %520, %519 : vector<2x16x16xf32>
    %522 = arith.addf %517, %521 : vector<2x16x16xf32>
    %c5_229 = arith.constant 5 : index
    %c4_230 = arith.constant 4 : index
    %523 = memref.load %arg4[%c5_229, %c4_230] : memref<8x9xf32, #tpu.memory_space<smem>>
    %524 = vector.extract_strided_slice %502 {offsets = [0, 1, 1], sizes = [2, 16, 16], strides = [1, 1, 1]} : vector<2x18x18xf32> to vector<2x16x16xf32>
    %525 = vector.broadcast %523 : f32 to vector<2x16x16xf32>
    %526 = arith.mulf %525, %524 : vector<2x16x16xf32>
    %527 = arith.addf %522, %526 : vector<2x16x16xf32>
    %c5_231 = arith.constant 5 : index
    %c5_232 = arith.constant 5 : index
    %528 = memref.load %arg4[%c5_231, %c5_232] : memref<8x9xf32, #tpu.memory_space<smem>>
    %529 = vector.extract_strided_slice %502 {offsets = [0, 1, 2], sizes = [2, 16, 16], strides = [1, 1, 1]} : vector<2x18x18xf32> to vector<2x16x16xf32>
    %530 = vector.broadcast %528 : f32 to vector<2x16x16xf32>
    %531 = arith.mulf %530, %529 : vector<2x16x16xf32>
    %532 = arith.addf %527, %531 : vector<2x16x16xf32>
    %c5_233 = arith.constant 5 : index
    %c6_234 = arith.constant 6 : index
    %533 = memref.load %arg4[%c5_233, %c6_234] : memref<8x9xf32, #tpu.memory_space<smem>>
    %534 = vector.extract_strided_slice %502 {offsets = [0, 2, 0], sizes = [2, 16, 16], strides = [1, 1, 1]} : vector<2x18x18xf32> to vector<2x16x16xf32>
    %535 = vector.broadcast %533 : f32 to vector<2x16x16xf32>
    %536 = arith.mulf %535, %534 : vector<2x16x16xf32>
    %537 = arith.addf %532, %536 : vector<2x16x16xf32>
    %c5_235 = arith.constant 5 : index
    %c7_236 = arith.constant 7 : index
    %538 = memref.load %arg4[%c5_235, %c7_236] : memref<8x9xf32, #tpu.memory_space<smem>>
    %539 = vector.extract_strided_slice %502 {offsets = [0, 2, 1], sizes = [2, 16, 16], strides = [1, 1, 1]} : vector<2x18x18xf32> to vector<2x16x16xf32>
    %540 = vector.broadcast %538 : f32 to vector<2x16x16xf32>
    %541 = arith.mulf %540, %539 : vector<2x16x16xf32>
    %542 = arith.addf %537, %541 : vector<2x16x16xf32>
    %c5_237 = arith.constant 5 : index
    %c8_238 = arith.constant 8 : index
    %543 = memref.load %arg4[%c5_237, %c8_238] : memref<8x9xf32, #tpu.memory_space<smem>>
    %544 = vector.extract_strided_slice %502 {offsets = [0, 2, 2], sizes = [2, 16, 16], strides = [1, 1, 1]} : vector<2x18x18xf32> to vector<2x16x16xf32>
    %545 = vector.broadcast %543 : f32 to vector<2x16x16xf32>
    %546 = arith.mulf %545, %544 : vector<2x16x16xf32>
    %547 = arith.addf %542, %546 : vector<2x16x16xf32>
    %c6_239 = arith.constant 6 : index
    %c0_240 = arith.constant 0 : index
    %548 = memref.load %arg2[%c6_239, %c0_240] : memref<8x9xf32, #tpu.memory_space<smem>>
    %549 = vector.broadcast %548 : f32 to vector<2x18x18xf32>
    %550 = arith.mulf %18, %549 : vector<2x18x18xf32>
    %c6_241 = arith.constant 6 : index
    %c1_242 = arith.constant 1 : index
    %551 = memref.load %arg2[%c6_241, %c1_242] : memref<8x9xf32, #tpu.memory_space<smem>>
    %552 = vector.broadcast %551 : f32 to vector<2x18x18xf32>
    %553 = arith.mulf %19, %552 : vector<2x18x18xf32>
    %554 = arith.addf %550, %553 : vector<2x18x18xf32>
    %c6_243 = arith.constant 6 : index
    %c2_244 = arith.constant 2 : index
    %555 = memref.load %arg2[%c6_243, %c2_244] : memref<8x9xf32, #tpu.memory_space<smem>>
    %556 = vector.broadcast %555 : f32 to vector<2x18x18xf32>
    %557 = arith.mulf %20, %556 : vector<2x18x18xf32>
    %558 = arith.addf %554, %557 : vector<2x18x18xf32>
    %c6_245 = arith.constant 6 : index
    %c3_246 = arith.constant 3 : index
    %559 = memref.load %arg2[%c6_245, %c3_246] : memref<8x9xf32, #tpu.memory_space<smem>>
    %560 = vector.broadcast %559 : f32 to vector<2x18x18xf32>
    %561 = arith.mulf %21, %560 : vector<2x18x18xf32>
    %562 = arith.addf %558, %561 : vector<2x18x18xf32>
    %c6_247 = arith.constant 6 : index
    %c4_248 = arith.constant 4 : index
    %563 = memref.load %arg2[%c6_247, %c4_248] : memref<8x9xf32, #tpu.memory_space<smem>>
    %564 = vector.broadcast %563 : f32 to vector<2x18x18xf32>
    %565 = arith.mulf %22, %564 : vector<2x18x18xf32>
    %566 = arith.addf %562, %565 : vector<2x18x18xf32>
    %c6_249 = arith.constant 6 : index
    %c5_250 = arith.constant 5 : index
    %567 = memref.load %arg2[%c6_249, %c5_250] : memref<8x9xf32, #tpu.memory_space<smem>>
    %568 = vector.broadcast %567 : f32 to vector<2x18x18xf32>
    %569 = arith.mulf %23, %568 : vector<2x18x18xf32>
    %570 = arith.addf %566, %569 : vector<2x18x18xf32>
    %c6_251 = arith.constant 6 : index
    %c6_252 = arith.constant 6 : index
    %571 = memref.load %arg2[%c6_251, %c6_252] : memref<8x9xf32, #tpu.memory_space<smem>>
    %572 = vector.broadcast %571 : f32 to vector<2x18x18xf32>
    %573 = arith.mulf %24, %572 : vector<2x18x18xf32>
    %574 = arith.addf %570, %573 : vector<2x18x18xf32>
    %c6_253 = arith.constant 6 : index
    %c7_254 = arith.constant 7 : index
    %575 = memref.load %arg2[%c6_253, %c7_254] : memref<8x9xf32, #tpu.memory_space<smem>>
    %576 = vector.broadcast %575 : f32 to vector<2x18x18xf32>
    %577 = arith.mulf %25, %576 : vector<2x18x18xf32>
    %578 = arith.addf %574, %577 : vector<2x18x18xf32>
    %c6_255 = arith.constant 6 : index
    %c8_256 = arith.constant 8 : index
    %579 = memref.load %arg2[%c6_255, %c8_256] : memref<8x9xf32, #tpu.memory_space<smem>>
    %580 = vector.broadcast %579 : f32 to vector<2x18x18xf32>
    %581 = arith.mulf %26, %580 : vector<2x18x18xf32>
    %582 = arith.addf %578, %581 : vector<2x18x18xf32>
    %c6_257 = arith.constant 6 : index
    %583 = memref.load %arg3[%c6_257] : memref<8xf32, #tpu.memory_space<smem>>
    %584 = vector.broadcast %583 : f32 to vector<2x18x18xf32>
    %585 = arith.addf %582, %584 : vector<2x18x18xf32>
    %cst_258 = arith.constant 0.000000e+00 : f32
    %586 = vector.broadcast %cst_258 : f32 to vector<2x18x18xf32>
    %587 = arith.maximumf %585, %586 : vector<2x18x18xf32>
    %cst_259 = arith.constant 0.000000e+00 : f32
    %588 = vector.broadcast %cst_259 : f32 to vector<2x18x18xf32>
    %589 = arith.select %17, %587, %588 : vector<2x18x18xi1>, vector<2x18x18xf32>
    %c6_260 = arith.constant 6 : index
    %c0_261 = arith.constant 0 : index
    %590 = memref.load %arg4[%c6_260, %c0_261] : memref<8x9xf32, #tpu.memory_space<smem>>
    %591 = vector.extract_strided_slice %589 {offsets = [0, 0, 0], sizes = [2, 16, 16], strides = [1, 1, 1]} : vector<2x18x18xf32> to vector<2x16x16xf32>
    %592 = vector.broadcast %590 : f32 to vector<2x16x16xf32>
    %593 = arith.mulf %592, %591 : vector<2x16x16xf32>
    %594 = arith.addf %547, %593 : vector<2x16x16xf32>
    %c6_262 = arith.constant 6 : index
    %c1_263 = arith.constant 1 : index
    %595 = memref.load %arg4[%c6_262, %c1_263] : memref<8x9xf32, #tpu.memory_space<smem>>
    %596 = vector.extract_strided_slice %589 {offsets = [0, 0, 1], sizes = [2, 16, 16], strides = [1, 1, 1]} : vector<2x18x18xf32> to vector<2x16x16xf32>
    %597 = vector.broadcast %595 : f32 to vector<2x16x16xf32>
    %598 = arith.mulf %597, %596 : vector<2x16x16xf32>
    %599 = arith.addf %594, %598 : vector<2x16x16xf32>
    %c6_264 = arith.constant 6 : index
    %c2_265 = arith.constant 2 : index
    %600 = memref.load %arg4[%c6_264, %c2_265] : memref<8x9xf32, #tpu.memory_space<smem>>
    %601 = vector.extract_strided_slice %589 {offsets = [0, 0, 2], sizes = [2, 16, 16], strides = [1, 1, 1]} : vector<2x18x18xf32> to vector<2x16x16xf32>
    %602 = vector.broadcast %600 : f32 to vector<2x16x16xf32>
    %603 = arith.mulf %602, %601 : vector<2x16x16xf32>
    %604 = arith.addf %599, %603 : vector<2x16x16xf32>
    %c6_266 = arith.constant 6 : index
    %c3_267 = arith.constant 3 : index
    %605 = memref.load %arg4[%c6_266, %c3_267] : memref<8x9xf32, #tpu.memory_space<smem>>
    %606 = vector.extract_strided_slice %589 {offsets = [0, 1, 0], sizes = [2, 16, 16], strides = [1, 1, 1]} : vector<2x18x18xf32> to vector<2x16x16xf32>
    %607 = vector.broadcast %605 : f32 to vector<2x16x16xf32>
    %608 = arith.mulf %607, %606 : vector<2x16x16xf32>
    %609 = arith.addf %604, %608 : vector<2x16x16xf32>
    %c6_268 = arith.constant 6 : index
    %c4_269 = arith.constant 4 : index
    %610 = memref.load %arg4[%c6_268, %c4_269] : memref<8x9xf32, #tpu.memory_space<smem>>
    %611 = vector.extract_strided_slice %589 {offsets = [0, 1, 1], sizes = [2, 16, 16], strides = [1, 1, 1]} : vector<2x18x18xf32> to vector<2x16x16xf32>
    %612 = vector.broadcast %610 : f32 to vector<2x16x16xf32>
    %613 = arith.mulf %612, %611 : vector<2x16x16xf32>
    %614 = arith.addf %609, %613 : vector<2x16x16xf32>
    %c6_270 = arith.constant 6 : index
    %c5_271 = arith.constant 5 : index
    %615 = memref.load %arg4[%c6_270, %c5_271] : memref<8x9xf32, #tpu.memory_space<smem>>
    %616 = vector.extract_strided_slice %589 {offsets = [0, 1, 2], sizes = [2, 16, 16], strides = [1, 1, 1]} : vector<2x18x18xf32> to vector<2x16x16xf32>
    %617 = vector.broadcast %615 : f32 to vector<2x16x16xf32>
    %618 = arith.mulf %617, %616 : vector<2x16x16xf32>
    %619 = arith.addf %614, %618 : vector<2x16x16xf32>
    %c6_272 = arith.constant 6 : index
    %c6_273 = arith.constant 6 : index
    %620 = memref.load %arg4[%c6_272, %c6_273] : memref<8x9xf32, #tpu.memory_space<smem>>
    %621 = vector.extract_strided_slice %589 {offsets = [0, 2, 0], sizes = [2, 16, 16], strides = [1, 1, 1]} : vector<2x18x18xf32> to vector<2x16x16xf32>
    %622 = vector.broadcast %620 : f32 to vector<2x16x16xf32>
    %623 = arith.mulf %622, %621 : vector<2x16x16xf32>
    %624 = arith.addf %619, %623 : vector<2x16x16xf32>
    %c6_274 = arith.constant 6 : index
    %c7_275 = arith.constant 7 : index
    %625 = memref.load %arg4[%c6_274, %c7_275] : memref<8x9xf32, #tpu.memory_space<smem>>
    %626 = vector.extract_strided_slice %589 {offsets = [0, 2, 1], sizes = [2, 16, 16], strides = [1, 1, 1]} : vector<2x18x18xf32> to vector<2x16x16xf32>
    %627 = vector.broadcast %625 : f32 to vector<2x16x16xf32>
    %628 = arith.mulf %627, %626 : vector<2x16x16xf32>
    %629 = arith.addf %624, %628 : vector<2x16x16xf32>
    %c6_276 = arith.constant 6 : index
    %c8_277 = arith.constant 8 : index
    %630 = memref.load %arg4[%c6_276, %c8_277] : memref<8x9xf32, #tpu.memory_space<smem>>
    %631 = vector.extract_strided_slice %589 {offsets = [0, 2, 2], sizes = [2, 16, 16], strides = [1, 1, 1]} : vector<2x18x18xf32> to vector<2x16x16xf32>
    %632 = vector.broadcast %630 : f32 to vector<2x16x16xf32>
    %633 = arith.mulf %632, %631 : vector<2x16x16xf32>
    %634 = arith.addf %629, %633 : vector<2x16x16xf32>
    %c7_278 = arith.constant 7 : index
    %c0_279 = arith.constant 0 : index
    %635 = memref.load %arg2[%c7_278, %c0_279] : memref<8x9xf32, #tpu.memory_space<smem>>
    %636 = vector.broadcast %635 : f32 to vector<2x18x18xf32>
    %637 = arith.mulf %18, %636 : vector<2x18x18xf32>
    %c7_280 = arith.constant 7 : index
    %c1_281 = arith.constant 1 : index
    %638 = memref.load %arg2[%c7_280, %c1_281] : memref<8x9xf32, #tpu.memory_space<smem>>
    %639 = vector.broadcast %638 : f32 to vector<2x18x18xf32>
    %640 = arith.mulf %19, %639 : vector<2x18x18xf32>
    %641 = arith.addf %637, %640 : vector<2x18x18xf32>
    %c7_282 = arith.constant 7 : index
    %c2_283 = arith.constant 2 : index
    %642 = memref.load %arg2[%c7_282, %c2_283] : memref<8x9xf32, #tpu.memory_space<smem>>
    %643 = vector.broadcast %642 : f32 to vector<2x18x18xf32>
    %644 = arith.mulf %20, %643 : vector<2x18x18xf32>
    %645 = arith.addf %641, %644 : vector<2x18x18xf32>
    %c7_284 = arith.constant 7 : index
    %c3_285 = arith.constant 3 : index
    %646 = memref.load %arg2[%c7_284, %c3_285] : memref<8x9xf32, #tpu.memory_space<smem>>
    %647 = vector.broadcast %646 : f32 to vector<2x18x18xf32>
    %648 = arith.mulf %21, %647 : vector<2x18x18xf32>
    %649 = arith.addf %645, %648 : vector<2x18x18xf32>
    %c7_286 = arith.constant 7 : index
    %c4_287 = arith.constant 4 : index
    %650 = memref.load %arg2[%c7_286, %c4_287] : memref<8x9xf32, #tpu.memory_space<smem>>
    %651 = vector.broadcast %650 : f32 to vector<2x18x18xf32>
    %652 = arith.mulf %22, %651 : vector<2x18x18xf32>
    %653 = arith.addf %649, %652 : vector<2x18x18xf32>
    %c7_288 = arith.constant 7 : index
    %c5_289 = arith.constant 5 : index
    %654 = memref.load %arg2[%c7_288, %c5_289] : memref<8x9xf32, #tpu.memory_space<smem>>
    %655 = vector.broadcast %654 : f32 to vector<2x18x18xf32>
    %656 = arith.mulf %23, %655 : vector<2x18x18xf32>
    %657 = arith.addf %653, %656 : vector<2x18x18xf32>
    %c7_290 = arith.constant 7 : index
    %c6_291 = arith.constant 6 : index
    %658 = memref.load %arg2[%c7_290, %c6_291] : memref<8x9xf32, #tpu.memory_space<smem>>
    %659 = vector.broadcast %658 : f32 to vector<2x18x18xf32>
    %660 = arith.mulf %24, %659 : vector<2x18x18xf32>
    %661 = arith.addf %657, %660 : vector<2x18x18xf32>
    %c7_292 = arith.constant 7 : index
    %c7_293 = arith.constant 7 : index
    %662 = memref.load %arg2[%c7_292, %c7_293] : memref<8x9xf32, #tpu.memory_space<smem>>
    %663 = vector.broadcast %662 : f32 to vector<2x18x18xf32>
    %664 = arith.mulf %25, %663 : vector<2x18x18xf32>
    %665 = arith.addf %661, %664 : vector<2x18x18xf32>
    %c7_294 = arith.constant 7 : index
    %c8_295 = arith.constant 8 : index
    %666 = memref.load %arg2[%c7_294, %c8_295] : memref<8x9xf32, #tpu.memory_space<smem>>
    %667 = vector.broadcast %666 : f32 to vector<2x18x18xf32>
    %668 = arith.mulf %26, %667 : vector<2x18x18xf32>
    %669 = arith.addf %665, %668 : vector<2x18x18xf32>
    %c7_296 = arith.constant 7 : index
    %670 = memref.load %arg3[%c7_296] : memref<8xf32, #tpu.memory_space<smem>>
    %671 = vector.broadcast %670 : f32 to vector<2x18x18xf32>
    %672 = arith.addf %669, %671 : vector<2x18x18xf32>
    %cst_297 = arith.constant 0.000000e+00 : f32
    %673 = vector.broadcast %cst_297 : f32 to vector<2x18x18xf32>
    %674 = arith.maximumf %672, %673 : vector<2x18x18xf32>
    %cst_298 = arith.constant 0.000000e+00 : f32
    %675 = vector.broadcast %cst_298 : f32 to vector<2x18x18xf32>
    %676 = arith.select %17, %674, %675 : vector<2x18x18xi1>, vector<2x18x18xf32>
    %c7_299 = arith.constant 7 : index
    %c0_300 = arith.constant 0 : index
    %677 = memref.load %arg4[%c7_299, %c0_300] : memref<8x9xf32, #tpu.memory_space<smem>>
    %678 = vector.extract_strided_slice %676 {offsets = [0, 0, 0], sizes = [2, 16, 16], strides = [1, 1, 1]} : vector<2x18x18xf32> to vector<2x16x16xf32>
    %679 = vector.broadcast %677 : f32 to vector<2x16x16xf32>
    %680 = arith.mulf %679, %678 : vector<2x16x16xf32>
    %681 = arith.addf %634, %680 : vector<2x16x16xf32>
    %c7_301 = arith.constant 7 : index
    %c1_302 = arith.constant 1 : index
    %682 = memref.load %arg4[%c7_301, %c1_302] : memref<8x9xf32, #tpu.memory_space<smem>>
    %683 = vector.extract_strided_slice %676 {offsets = [0, 0, 1], sizes = [2, 16, 16], strides = [1, 1, 1]} : vector<2x18x18xf32> to vector<2x16x16xf32>
    %684 = vector.broadcast %682 : f32 to vector<2x16x16xf32>
    %685 = arith.mulf %684, %683 : vector<2x16x16xf32>
    %686 = arith.addf %681, %685 : vector<2x16x16xf32>
    %c7_303 = arith.constant 7 : index
    %c2_304 = arith.constant 2 : index
    %687 = memref.load %arg4[%c7_303, %c2_304] : memref<8x9xf32, #tpu.memory_space<smem>>
    %688 = vector.extract_strided_slice %676 {offsets = [0, 0, 2], sizes = [2, 16, 16], strides = [1, 1, 1]} : vector<2x18x18xf32> to vector<2x16x16xf32>
    %689 = vector.broadcast %687 : f32 to vector<2x16x16xf32>
    %690 = arith.mulf %689, %688 : vector<2x16x16xf32>
    %691 = arith.addf %686, %690 : vector<2x16x16xf32>
    %c7_305 = arith.constant 7 : index
    %c3_306 = arith.constant 3 : index
    %692 = memref.load %arg4[%c7_305, %c3_306] : memref<8x9xf32, #tpu.memory_space<smem>>
    %693 = vector.extract_strided_slice %676 {offsets = [0, 1, 0], sizes = [2, 16, 16], strides = [1, 1, 1]} : vector<2x18x18xf32> to vector<2x16x16xf32>
    %694 = vector.broadcast %692 : f32 to vector<2x16x16xf32>
    %695 = arith.mulf %694, %693 : vector<2x16x16xf32>
    %696 = arith.addf %691, %695 : vector<2x16x16xf32>
    %c7_307 = arith.constant 7 : index
    %c4_308 = arith.constant 4 : index
    %697 = memref.load %arg4[%c7_307, %c4_308] : memref<8x9xf32, #tpu.memory_space<smem>>
    %698 = vector.extract_strided_slice %676 {offsets = [0, 1, 1], sizes = [2, 16, 16], strides = [1, 1, 1]} : vector<2x18x18xf32> to vector<2x16x16xf32>
    %699 = vector.broadcast %697 : f32 to vector<2x16x16xf32>
    %700 = arith.mulf %699, %698 : vector<2x16x16xf32>
    %701 = arith.addf %696, %700 : vector<2x16x16xf32>
    %c7_309 = arith.constant 7 : index
    %c5_310 = arith.constant 5 : index
    %702 = memref.load %arg4[%c7_309, %c5_310] : memref<8x9xf32, #tpu.memory_space<smem>>
    %703 = vector.extract_strided_slice %676 {offsets = [0, 1, 2], sizes = [2, 16, 16], strides = [1, 1, 1]} : vector<2x18x18xf32> to vector<2x16x16xf32>
    %704 = vector.broadcast %702 : f32 to vector<2x16x16xf32>
    %705 = arith.mulf %704, %703 : vector<2x16x16xf32>
    %706 = arith.addf %701, %705 : vector<2x16x16xf32>
    %c7_311 = arith.constant 7 : index
    %c6_312 = arith.constant 6 : index
    %707 = memref.load %arg4[%c7_311, %c6_312] : memref<8x9xf32, #tpu.memory_space<smem>>
    %708 = vector.extract_strided_slice %676 {offsets = [0, 2, 0], sizes = [2, 16, 16], strides = [1, 1, 1]} : vector<2x18x18xf32> to vector<2x16x16xf32>
    %709 = vector.broadcast %707 : f32 to vector<2x16x16xf32>
    %710 = arith.mulf %709, %708 : vector<2x16x16xf32>
    %711 = arith.addf %706, %710 : vector<2x16x16xf32>
    %c7_313 = arith.constant 7 : index
    %c7_314 = arith.constant 7 : index
    %712 = memref.load %arg4[%c7_313, %c7_314] : memref<8x9xf32, #tpu.memory_space<smem>>
    %713 = vector.extract_strided_slice %676 {offsets = [0, 2, 1], sizes = [2, 16, 16], strides = [1, 1, 1]} : vector<2x18x18xf32> to vector<2x16x16xf32>
    %714 = vector.broadcast %712 : f32 to vector<2x16x16xf32>
    %715 = arith.mulf %714, %713 : vector<2x16x16xf32>
    %716 = arith.addf %711, %715 : vector<2x16x16xf32>
    %c7_315 = arith.constant 7 : index
    %c8_316 = arith.constant 8 : index
    %717 = memref.load %arg4[%c7_315, %c8_316] : memref<8x9xf32, #tpu.memory_space<smem>>
    %718 = vector.extract_strided_slice %676 {offsets = [0, 2, 2], sizes = [2, 16, 16], strides = [1, 1, 1]} : vector<2x18x18xf32> to vector<2x16x16xf32>
    %719 = vector.broadcast %717 : f32 to vector<2x16x16xf32>
    %720 = arith.mulf %719, %718 : vector<2x16x16xf32>
    %721 = arith.addf %716, %720 : vector<2x16x16xf32>
    %c0_317 = arith.constant 0 : index
    %722 = memref.load %arg5[%c0_317] : memref<1xf32, #tpu.memory_space<smem>>
    %723 = vector.broadcast %722 : f32 to vector<2x16x16xf32>
    %724 = arith.addf %721, %723 : vector<2x16x16xf32>
    %cst_318 = arith.constant 0.000000e+00 : f32
    %725 = vector.broadcast %cst_318 : f32 to vector<2x16x16xf32>
    %726 = arith.subf %725, %724 : vector<2x16x16xf32>
    %727 = math.exp %726 : vector<2x16x16xf32>
    %cst_319 = arith.constant 1.000000e+00 : f32
    %728 = vector.broadcast %cst_319 : f32 to vector<2x16x16xf32>
    %729 = arith.addf %728, %727 : vector<2x16x16xf32>
    %cst_320 = arith.constant 1.000000e+00 : f32
    %730 = vector.broadcast %cst_320 : f32 to vector<2x16x16xf32>
    %731 = arith.divf %730, %729 : vector<2x16x16xf32>
    %c0_321 = arith.constant 0 : index
    %c0_322 = arith.constant 0 : index
    %c0_323 = arith.constant 0 : index
    %732 = vector.load %arg1[%c0_321, %c0_322, %c0_323] : memref<2x16x16xf32, #tpu.memory_space<vmem>>, vector<2x16x16xf32>
    %733 = arith.mulf %731, %732 : vector<2x16x16xf32>
    %c0_324 = arith.constant 0 : index
    %c0_325 = arith.constant 0 : index
    %c0_326 = arith.constant 0 : index
    %734 = vector.load %arg6[%c0_324, %c0_325, %c0_326] : memref<2x16x16xf32, #tpu.memory_space<vmem>>, vector<2x16x16xf32>
    tpu.vector_store %arg6[%c0_324, %c0_325, %c0_326], %733 {strides = array<i32>} : memref<2x16x16xf32, #tpu.memory_space<vmem>>, vector<2x16x16xf32>,
    return
  }
  func.func @transform_0(%arg0: i32) -> (i32, i32, i32) {
    %c0_i32 = arith.constant 0 : i32
    %c0_i32_0 = arith.constant 0 : i32
    %c0_i32_1 = arith.constant 0 : i32
    return %arg0, %c0_i32, %c0_i32_0 : i32, i32, i32
  }
  func.func @transform_1(%arg0: i32) -> (i32, i32) {
    %c0_i32 = arith.constant 0 : i32
    %c0_i32_0 = arith.constant 0 : i32
    %c0_i32_1 = arith.constant 0 : i32
    return %c0_i32, %c0_i32_0 : i32, i32
  }
  func.func @transform_2(%arg0: i32) -> i32 {
    %c0_i32 = arith.constant 0 : i32
    %c0_i32_0 = arith.constant 0 : i32
    return %c0_i32 : i32
  }
  func.func @transform_3(%arg0: i32) -> (i32, i32) {
    %c0_i32 = arith.constant 0 : i32
    %c0_i32_0 = arith.constant 0 : i32
    %c0_i32_1 = arith.constant 0 : i32
    return %c0_i32, %c0_i32_0 : i32, i32
  }
  func.func @transform_4(%arg0: i32) -> i32 {
    %c0_i32 = arith.constant 0 : i32
    %c0_i32_0 = arith.constant 0 : i32
    return %c0_i32 : i32
  }
  func.func @transform_5(%arg0: i32) -> (i32, i32, i32) {
    %c0_i32 = arith.constant 0 : i32
    %c0_i32_0 = arith.constant 0 : i32
    %c0_i32_1 = arith.constant 0 : i32
    return %arg0, %c0_i32, %c0_i32_0 : i32, i32, i32
  }
}

</mosaic_0001>

<llo_original>
// kernel: tpu_custom_call.1
$region0: #{tpu_custom_call.1}
  #allocation0 [shape = 'u32[]', space=smem, size = 0x4, offset = 0x4, fixed_abs, tag = 'smem constant byte address 0x4 - core index']
  #allocation1 [shape = 'u32[144,128]{1,0:T(1,128)}', space=vmem, size = 0x12000, scoped, tag = 'internal scratch']
  #allocation2 [shape = 'f32[2,20,20]{2,1,0:T(8,128)}', space=vmem, size = 0x6000, scoped, tag = 'scratch operand']
  #allocation3 [shape = 'f32[1]{0:T(128)S(6)}', space=smem, size = 0x200, scoped, tag = 'scoped memory for tpu_custom_call.1']
  %s0 = inlined_call_operand.hbm [shape: f32[2,16,16], index: 0, kind: input, shape index: {}]
  %s1 = inlined_call_operand.hbm [shape: f32[8,9], index: 1, kind: input, shape index: {}]
  %s2 = inlined_call_operand.vmem [shape: f32[8], index: 2, kind: input, shape index: {}]
  %s3 = inlined_call_operand.vmem [shape: f32[8,9], index: 3, kind: input, shape index: {}]
  %s4 = inlined_call_operand.<no memory space> [shape: f32[1], index: 4, kind: input, shape index: {}]
  %s5 = inlined_call_operand.hbm [shape: f32[2,16,16], index: 5, kind: output, shape index: {}]
  %s6 = sld [smem:[#allocation0]]
  $region46: #{tpu_custom_call.1} parent=0
    _
  %s8 = ssub.s32 1, %s6
  %s9 = scalar_select 0, %s8, %s6
  %10 = sst [smem:[#allocation3]] %s4
  $region1: #{tpu_custom_call.1} parent=0
    #allocation4 [shape = 'u8[16384]{0}', space=vmem, size = 0x4000, scoped, tag = 'input window, operand 0, single buffered']
    #allocation5 [shape = 's32[1]{0}', space=sflag, size = 0x4, scoped, tag = 'scoped memory for tpu_custom_call.1']
    #allocation6 [shape = 's32[1]{0}', space=sflag, size = 0x4, scoped, tag = 'scoped memory for tpu_custom_call.1']
    #allocation7 [shape = 's32[1]{0}', space=sflag, size = 0x4, scoped, tag = 'scoped memory for tpu_custom_call.1']
    #allocation8 [shape = 's32[1]{0}', space=sflag, size = 0x4, scoped, tag = 'scoped memory for tpu_custom_call.1']
    #allocation9 [shape = 'u8[4096]{0}', space=smem, size = 0x1000, scoped, tag = 'input window, operand 1, single buffered']
    #allocation10 [shape = 'u8[512]{0}', space=smem, size = 0x200, scoped, tag = 'input window, operand 2, single buffered']
    #allocation11 [shape = 'u8[4096]{0}', space=smem, size = 0x1000, scoped, tag = 'input window, operand 3, single buffered']
    #allocation12 [shape = 's32[1]{0}', space=sflag, size = 0x4, scoped, tag = 'scoped memory for tpu_custom_call.1']
    #allocation13 [shape = 'u8[16384]{0}', space=vmem, size = 0x4000, scoped, tag = 'output window, operand 0, single buffered']
    %11 = vsyncpa [#allocation5], 0
    %12 = vsyncpa [#allocation7], 0
    %13 = vsyncpa [#allocation8], 0
    %14 = vsyncpa [#allocation12], 0
    %15 = vsyncpa [#allocation6], 0
    // Predicated region
    $region2: #{tpu_custom_call.1} parent=1 // pred_check
      _
    $region3: #{tpu_custom_call.1} parent=1 // pred_check_branch
      %17 = sbr.rel (0) target = $region5
    $region4: #{tpu_custom_call.1} parent=1 // pred_region
      %s19 = ssub.s32 512, 512
      %20 = vsyncadd [#allocation5], %s19
      %s21 = sshll.u32 [#allocation4], 4
      %s22 = int_to_ptr.vmem [resolvable:$true] %s21
      %27 = dma.hbm_to_vmem [thread:$0]  %s0, 512, %s22, [#allocation5], 128, 128, 8
    $region5: #{tpu_custom_call.1} parent=1 // pred_fallthru
      _
    // Predicated region
    $region6: #{tpu_custom_call.1} parent=1 // pred_check
      _
    $region7: #{tpu_custom_call.1} parent=1 // pred_check_branch
      %29 = sbr.rel (0) target = $region9
    $region8: #{tpu_custom_call.1} parent=1 // pred_region
      %s31 = ssub.s32 128, 128
      %32 = vsyncadd [#allocation7], %s31
      %35 = dma.hbm_to_smem %s1, 128, [#allocation9], [#allocation7]
    $region9: #{tpu_custom_call.1} parent=1 // pred_fallthru
      _
    // Predicated region
    $region10: #{tpu_custom_call.1} parent=1 // pred_check
      _
    $region11: #{tpu_custom_call.1} parent=1 // pred_check_branch
      %37 = sbr.rel (0) target = $region13
    $region12: #{tpu_custom_call.1} parent=1 // pred_region
      %s39 = ssub.s32 16, 16
      %40 = vsyncadd [#allocation8], %s39
      %s42 = sshll.u32 %s2, 4
      %s43 = int_to_ptr.vmem [resolvable:$true] %s42
      %45 = dma.vmem_to_smem %s43, 16, [#allocation10], [#allocation8]
    $region13: #{tpu_custom_call.1} parent=1 // pred_fallthru
      _
    // Predicated region
    $region14: #{tpu_custom_call.1} parent=1 // pred_check
      _
    $region15: #{tpu_custom_call.1} parent=1 // pred_check_branch
      %47 = sbr.rel (0) target = $region17
    $region16: #{tpu_custom_call.1} parent=1 // pred_region
      %s49 = ssub.s32 128, 128
      %50 = vsyncadd [#allocation12], %s49
      %s52 = sshll.u32 %s3, 4
      %s53 = int_to_ptr.vmem [resolvable:$true] %s52
      %55 = dma.vmem_to_smem %s53, 128, [#allocation11], [#allocation12]
    $region17: #{tpu_custom_call.1} parent=1 // pred_fallthru
      _
    // Predicated region
    $region18: #{tpu_custom_call.1} parent=1 // pred_check
      _
    $region19: #{tpu_custom_call.1} parent=1 // pred_check_branch
      %57 = sbr.rel (0) target = $region21
    $region20: #{tpu_custom_call.1} parent=1 // pred_region
      _
    $region21: #{tpu_custom_call.1} parent=1 // pred_fallthru
      _
    // Predicated region
    $region22: #{tpu_custom_call.1} parent=1 // pred_check
      _
    $region23: #{tpu_custom_call.1} parent=1 // pred_check_branch
      %59 = sbr.rel (0) target = $region25
    $region24: #{tpu_custom_call.1} parent=1 // pred_region
      %60 = dma.done [#allocation5], 512
    $region25: #{tpu_custom_call.1} parent=1 // pred_fallthru
      _
    // Predicated region
    $region26: #{tpu_custom_call.1} parent=1 // pred_check
      _
    $region27: #{tpu_custom_call.1} parent=1 // pred_check_branch
      %62 = sbr.rel (0) target = $region29
    $region28: #{tpu_custom_call.1} parent=1 // pred_region
      %63 = dma.done [#allocation7], 128
    $region29: #{tpu_custom_call.1} parent=1 // pred_fallthru
      _
    // Predicated region
    $region30: #{tpu_custom_call.1} parent=1 // pred_check
      _
    $region31: #{tpu_custom_call.1} parent=1 // pred_check_branch
      %65 = sbr.rel (0) target = $region33
    $region32: #{tpu_custom_call.1} parent=1 // pred_region
      %66 = dma.done [#allocation8], 16
    $region33: #{tpu_custom_call.1} parent=1 // pred_fallthru
      _
    // Predicated region
    $region34: #{tpu_custom_call.1} parent=1 // pred_check
      _
    $region35: #{tpu_custom_call.1} parent=1 // pred_check_branch
      %68 = sbr.rel (0) target = $region37
    $region36: #{tpu_custom_call.1} parent=1 // pred_region
      %69 = dma.done [#allocation12], 128
    $region37: #{tpu_custom_call.1} parent=1 // pred_fallthru
      _
    %70 = sfence
    %vm71 = vcmask 162816
    %72 = vst.msk [vmem:[#allocation2] sm:$0xff] %vm71, 0.0
    %73 = vst.msk [vmem:[#allocation2 + $0x8] sm:$0xff] %vm71, 0.0
    %vm74 = vcmask 158720
    %75 = vst.msk [vmem:[#allocation2 + $0x10] sm:$0xf] %vm74, 0.0
    %76 = vst.msk [vmem:[#allocation2 + $0x18] sm:$0xff] %vm71, 0.0
    %77 = vst.msk [vmem:[#allocation2 + $0x20] sm:$0xff] %vm71, 0.0
    %78 = vst.msk [vmem:[#allocation2 + $0x28] sm:$0xf] %vm74, 0.0
    %v79 = vld [vmem:[#allocation4] sm:$0xff]
    %v80 = vld [vmem:[#allocation4 + $0x8] sm:$0xff]
    %v81 = vld [vmem:[#allocation4 + $0x10] sm:$0xff]
    %v82 = vld [vmem:[#allocation4 + $0x18] sm:$0xff]
    %87 = vrot.lane.b32.xlu0 %v79, 2
    %v88 = vpop.permute.xlu0 %87
    %89 = vrot.lane.b32.xlu0 %v80, 2
    %v90 = vpop.permute.xlu0 %89
    %91 = vrot.lane.b32.xlu0 %v81, 2
    %v92 = vpop.permute.xlu0 %91
    %93 = vrot.lane.b32.xlu0 %v82, 2
    %v94 = vpop.permute.xlu0 %93
    %vm99 = vcmask 146448
    %100 = vst.msk [vmem:[#allocation2 + $0x2] sm:$0xff] %vm99, %v88
    %101 = vst.msk [vmem:[#allocation2 + $0xa] sm:$0xff] %vm99, %v90
    %102 = vst.msk [vmem:[#allocation2 + $0x1a] sm:$0xff] %vm99, %v92
    %103 = vst.msk [vmem:[#allocation2 + $0x22] sm:$0xff] %vm99, %v94
    %v104 = vld [vmem:[#allocation2] sm:$0xff]
    %v105 = vld [vmem:[#allocation2 + $0x8] sm:$0xff]
    %v106 = vld [vmem:[#allocation2 + $0x10] sm:$0xf]
    %v107 = vld [vmem:[#allocation2 + $0x18] sm:$0xff]
    %v108 = vld [vmem:[#allocation2 + $0x20] sm:$0xff]
    %v109 = vld [vmem:[#allocation2 + $0x28] sm:$0xf]
    %v110 = vlaneseq
    %v111 = vshrl.u32 %v110, 7
    %v112 = vadd.s32 %v111, 8
    %v113 = vadd.s32 %v111, 16
    %v114 = vlaneseq
    %v115 = vand.u32 %v114, 127
    %vm116 = vcmp.ge.s32.totalorder %v111, 1
    %vm117 = vcmp.ge.s32.totalorder %v112, 1
    %vm118 = vcmp.ge.s32.totalorder %v113, 1
    %vm119 = vcmp.le.s32.totalorder %v111, 16
    %vm120 = vcmp.le.s32.totalorder %v112, 16
    %vm121 = vcmp.le.s32.totalorder %v113, 16
    %vm122 = vmand %vm116, %vm119
    %vm123 = vmand %vm117, %vm120
    %vm124 = vmand %vm118, %vm121
    %vm125 = vcmp.ge.s32.totalorder %v115, 1
    %vm126 = vmand %vm122, %vm125
    %vm127 = vmand %vm123, %vm125
    %vm128 = vmand %vm124, %vm125
    %vm129 = vcmp.le.s32.totalorder %v115, 16
    %vm130 = vmand %vm126, %vm129
    %vm131 = vmand %vm127, %vm129
    %vm132 = vmand %vm128, %vm129
    %s133 = sld [smem:[#allocation9]]
    %v134 = vstv %s133
    %v135 = vmul.f32 %v104, %v134
    %v136 = vmul.f32 %v105, %v134
    %v137 = vmul.f32 %v106, %v134
    %v138 = vmul.f32 %v107, %v134
    %v139 = vmul.f32 %v108, %v134
    %v140 = vmul.f32 %v109, %v134
    %s141 = sld [smem:[#allocation9 + $0x1]]
    %v142 = vstv %s141
    %v143 = vmul.f32 %v104, %v142
    %v144 = vmul.f32 %v105, %v142
    %v145 = vmul.f32 %v106, %v142
    %v146 = vmul.f32 %v107, %v142
    %v147 = vmul.f32 %v108, %v142
    %v148 = vmul.f32 %v109, %v142
    %155 = vrot.lane.b32.xlu0 %v143, 127
    %v156 = vpop.permute.xlu0 %155
    %157 = vrot.lane.b32.xlu0 %v144, 127
    %v158 = vpop.permute.xlu0 %157
    %159 = vrot.lane.b32.xlu0 %v145, 127
    %v160 = vpop.permute.xlu0 %159
    %161 = vrot.lane.b32.xlu0 %v146, 127
    %v162 = vpop.permute.xlu0 %161
    %163 = vrot.lane.b32.xlu0 %v147, 127
    %v164 = vpop.permute.xlu0 %163
    %165 = vrot.lane.b32.xlu0 %v148, 127
    %v166 = vpop.permute.xlu0 %165
    %v173 = vadd.f32 %v135, %v156
    %v174 = vadd.f32 %v136, %v158
    %v175 = vadd.f32 %v137, %v160
    %v176 = vadd.f32 %v138, %v162
    %v177 = vadd.f32 %v139, %v164
    %v178 = vadd.f32 %v140, %v166
    %s179 = sld [smem:[#allocation9 + $0x2]]
    %v180 = vstv %s179
    %v181 = vmul.f32 %v104, %v180
    %v182 = vmul.f32 %v105, %v180
    %v183 = vmul.f32 %v106, %v180
    %v184 = vmul.f32 %v107, %v180
    %v185 = vmul.f32 %v108, %v180
    %v186 = vmul.f32 %v109, %v180
    %193 = vrot.lane.b32.xlu0 %v181, 126
    %v194 = vpop.permute.xlu0 %193
    %195 = vrot.lane.b32.xlu0 %v182, 126
    %v196 = vpop.permute.xlu0 %195
    %197 = vrot.lane.b32.xlu0 %v183, 126
    %v198 = vpop.permute.xlu0 %197
    %199 = vrot.lane.b32.xlu0 %v184, 126
    %v200 = vpop.permute.xlu0 %199
    %201 = vrot.lane.b32.xlu0 %v185, 126
    %v202 = vpop.permute.xlu0 %201
    %203 = vrot.lane.b32.xlu0 %v186, 126
    %v204 = vpop.permute.xlu0 %203
    %v211 = vadd.f32 %v173, %v194
    %v212 = vadd.f32 %v174, %v196
    %v213 = vadd.f32 %v175, %v198
    %v214 = vadd.f32 %v176, %v200
    %v215 = vadd.f32 %v177, %v202
    %v216 = vadd.f32 %v178, %v204
    %s217 = sld [smem:[#allocation9 + $0x3]]
    %v218 = vstv %s217
    %v219 = vmul.f32 %v104, %v218
    %v220 = vmul.f32 %v105, %v218
    %v221 = vmul.f32 %v106, %v218
    %v222 = vmul.f32 %v107, %v218
    %v223 = vmul.f32 %v108, %v218
    %v224 = vmul.f32 %v109, %v218
    %vm231 = vcmask 1046528
    %v232 = vrot.slane %v219, 1
    %v233 = vrot.slane %v220, 1
    %v234 = vsel %vm231, %v232, %v233
    %v235 = vrot.slane %v221, 1
    %v236 = vsel %vm231, %v233, %v235
    %v237 = vrot.slane %v222, 1
    %v238 = vrot.slane %v223, 1
    %v239 = vsel %vm231, %v237, %v238
    %v240 = vrot.slane %v224, 1
    %v241 = vsel %vm231, %v238, %v240
    %v248 = vadd.f32 %v211, %v234
    %v249 = vadd.f32 %v212, %v236
    %v250 = vadd.f32 %v213, %v235
    %v251 = vadd.f32 %v214, %v239
    %v252 = vadd.f32 %v215, %v241
    %v253 = vadd.f32 %v216, %v240
    %s254 = sld [smem:[#allocation9 + $0x4]]
    %v255 = vstv %s254
    %v256 = vmul.f32 %v104, %v255
    %v257 = vmul.f32 %v105, %v255
    %v258 = vmul.f32 %v106, %v255
    %v259 = vmul.f32 %v107, %v255
    %v260 = vmul.f32 %v108, %v255
    %v261 = vmul.f32 %v109, %v255
    %v268 = vrot.slane %v256, 1
    %v269 = vrot.slane %v257, 1
    %v270 = vsel %vm231, %v268, %v269
    %v271 = vrot.slane %v258, 1
    %v272 = vsel %vm231, %v269, %v271
    %v273 = vrot.slane %v259, 1
    %v274 = vrot.slane %v260, 1
    %v275 = vsel %vm231, %v273, %v274
    %v276 = vrot.slane %v261, 1
    %v277 = vsel %vm231, %v274, %v276
    %278 = vrot.lane.b32.xlu0 %v270, 127
    %v279 = vpop.permute.xlu0 %278
    %280 = vrot.lane.b32.xlu0 %v272, 127
    %v281 = vpop.permute.xlu0 %280
    %282 = vrot.lane.b32.xlu0 %v271, 127
    %v283 = vpop.permute.xlu0 %282
    %284 = vrot.lane.b32.xlu0 %v275, 127
    %v285 = vpop.permute.xlu0 %284
    %286 = vrot.lane.b32.xlu0 %v277, 127
    %v287 = vpop.permute.xlu0 %286
    %288 = vrot.lane.b32.xlu0 %v276, 127
    %v289 = vpop.permute.xlu0 %288
    %v296 = vadd.f32 %v248, %v279
    %v297 = vadd.f32 %v249, %v281
    %v298 = vadd.f32 %v250, %v283
    %v299 = vadd.f32 %v251, %v285
    %v300 = vadd.f32 %v252, %v287
    %v301 = vadd.f32 %v253, %v289
    %s302 = sld [smem:[#allocation9 + $0x5]]
    %v303 = vstv %s302
    %v304 = vmul.f32 %v104, %v303
    %v305 = vmul.f32 %v105, %v303
    %v306 = vmul.f32 %v106, %v303
    %v307 = vmul.f32 %v107, %v303
    %v308 = vmul.f32 %v108, %v303
    %v309 = vmul.f32 %v109, %v303
    %v316 = vrot.slane %v304, 1
    %v317 = vrot.slane %v305, 1
    %v318 = vsel %vm231, %v316, %v317
    %v319 = vrot.slane %v306, 1
    %v320 = vsel %vm231, %v317, %v319
    %v321 = vrot.slane %v307, 1
    %v322 = vrot.slane %v308, 1
    %v323 = vsel %vm231, %v321, %v322
    %v324 = vrot.slane %v309, 1
    %v325 = vsel %vm231, %v322, %v324
    %326 = vrot.lane.b32.xlu0 %v318, 126
    %v327 = vpop.permute.xlu0 %326
    %328 = vrot.lane.b32.xlu0 %v320, 126
    %v329 = vpop.permute.xlu0 %328
    %330 = vrot.lane.b32.xlu0 %v319, 126
    %v331 = vpop.permute.xlu0 %330
    %332 = vrot.lane.b32.xlu0 %v323, 126
    %v333 = vpop.permute.xlu0 %332
    %334 = vrot.lane.b32.xlu0 %v325, 126
    %v335 = vpop.permute.xlu0 %334
    %336 = vrot.lane.b32.xlu0 %v324, 126
    %v337 = vpop.permute.xlu0 %336
    %v344 = vadd.f32 %v296, %v327
    %v345 = vadd.f32 %v297, %v329
    %v346 = vadd.f32 %v298, %v331
    %v347 = vadd.f32 %v299, %v333
    %v348 = vadd.f32 %v300, %v335
    %v349 = vadd.f32 %v301, %v337
    %s350 = sld [smem:[#allocation9 + $0x6]]
    %v351 = vstv %s350
    %v352 = vmul.f32 %v104, %v351
    %v353 = vmul.f32 %v105, %v351
    %v354 = vmul.f32 %v106, %v351
    %v355 = vmul.f32 %v107, %v351
    %v356 = vmul.f32 %v108, %v351
    %v357 = vmul.f32 %v109, %v351
    %vm364 = vcmask 1045504
    %v365 = vrot.slane %v352, 2
    %v366 = vrot.slane %v353, 2
    %v367 = vsel %vm364, %v365, %v366
    %v368 = vrot.slane %v354, 2
    %v369 = vsel %vm364, %v366, %v368
    %v370 = vrot.slane %v355, 2
    %v371 = vrot.slane %v356, 2
    %v372 = vsel %vm364, %v370, %v371
    %v373 = vrot.slane %v357, 2
    %v374 = vsel %vm364, %v371, %v373
    %v381 = vadd.f32 %v344, %v367
    %v382 = vadd.f32 %v345, %v369
    %v383 = vadd.f32 %v346, %v368
    %v384 = vadd.f32 %v347, %v372
    %v385 = vadd.f32 %v348, %v374
    %v386 = vadd.f32 %v349, %v373
    %s387 = sld [smem:[#allocation9 + $0x7]]
    %v388 = vstv %s387
    %v389 = vmul.f32 %v104, %v388
    %v390 = vmul.f32 %v105, %v388
    %v391 = vmul.f32 %v106, %v388
    %v392 = vmul.f32 %v107, %v388
    %v393 = vmul.f32 %v108, %v388
    %v394 = vmul.f32 %v109, %v388
    %v401 = vrot.slane %v389, 2
    %v402 = vrot.slane %v390, 2
    %v403 = vsel %vm364, %v401, %v402
    %v404 = vrot.slane %v391, 2
    %v405 = vsel %vm364, %v402, %v404
    %v406 = vrot.slane %v392, 2
    %v407 = vrot.slane %v393, 2
    %v408 = vsel %vm364, %v406, %v407
    %v409 = vrot.slane %v394, 2
    %v410 = vsel %vm364, %v407, %v409
    %411 = vrot.lane.b32.xlu0 %v403, 127
    %v412 = vpop.permute.xlu0 %411
    %413 = vrot.lane.b32.xlu0 %v405, 127
    %v414 = vpop.permute.xlu0 %413
    %415 = vrot.lane.b32.xlu0 %v404, 127
    %v416 = vpop.permute.xlu0 %415
    %417 = vrot.lane.b32.xlu0 %v408, 127
    %v418 = vpop.permute.xlu0 %417
    %419 = vrot.lane.b32.xlu0 %v410, 127
    %v420 = vpop.permute.xlu0 %419
    %421 = vrot.lane.b32.xlu0 %v409, 127
    %v422 = vpop.permute.xlu0 %421
    %v429 = vadd.f32 %v381, %v412
    %v430 = vadd.f32 %v382, %v414
    %v431 = vadd.f32 %v383, %v416
    %v432 = vadd.f32 %v384, %v418
    %v433 = vadd.f32 %v385, %v420
    %v434 = vadd.f32 %v386, %v422
    %s435 = sld [smem:[#allocation9 + $0x8]]
    %v436 = vstv %s435
    %v437 = vmul.f32 %v104, %v436
    %v438 = vmul.f32 %v105, %v436
    %v439 = vmul.f32 %v106, %v436
    %v440 = vmul.f32 %v107, %v436
    %v441 = vmul.f32 %v108, %v436
    %v442 = vmul.f32 %v109, %v436
    %v449 = vrot.slane %v437, 2
    %v450 = vrot.slane %v438, 2
    %v451 = vsel %vm364, %v449, %v450
    %v452 = vrot.slane %v439, 2
    %v453 = vsel %vm364, %v450, %v452
    %v454 = vrot.slane %v440, 2
    %v455 = vrot.slane %v441, 2
    %v456 = vsel %vm364, %v454, %v455
    %v457 = vrot.slane %v442, 2
    %v458 = vsel %vm364, %v455, %v457
    %459 = vrot.lane.b32.xlu0 %v451, 126
    %v460 = vpop.permute.xlu0 %459
    %461 = vrot.lane.b32.xlu0 %v453, 126
    %v462 = vpop.permute.xlu0 %461
    %463 = vrot.lane.b32.xlu0 %v452, 126
    %v464 = vpop.permute.xlu0 %463
    %465 = vrot.lane.b32.xlu0 %v456, 126
    %v466 = vpop.permute.xlu0 %465
    %467 = vrot.lane.b32.xlu0 %v458, 126
    %v468 = vpop.permute.xlu0 %467
    %469 = vrot.lane.b32.xlu0 %v457, 126
    %v470 = vpop.permute.xlu0 %469
    %v477 = vadd.f32 %v429, %v460
    %v478 = vadd.f32 %v430, %v462
    %v479 = vadd.f32 %v431, %v464
    %v480 = vadd.f32 %v432, %v466
    %v481 = vadd.f32 %v433, %v468
    %v482 = vadd.f32 %v434, %v470
    %s483 = sld [smem:[#allocation10]]
    %v484 = vstv %s483
    %v485 = vadd.f32 %v477, %v484
    %v486 = vadd.f32 %v478, %v484
    %v487 = vadd.f32 %v479, %v484
    %v488 = vadd.f32 %v480, %v484
    %v489 = vadd.f32 %v481, %v484
    %v490 = vadd.f32 %v482, %v484
    %v491 = vmax.f32 %v485, 0.0
    %v492 = vmax.f32 %v486, 0.0
    %v493 = vmax.f32 %v487, 0.0
    %v494 = vmax.f32 %v488, 0.0
    %v495 = vmax.f32 %v489, 0.0
    %v496 = vmax.f32 %v490, 0.0
    %v497 = vsel %vm130, %v491, 0.0
    %v498 = vsel %vm131, %v492, 0.0
    %v499 = vsel %vm132, %v493, 0.0
    %v500 = vsel %vm130, %v494, 0.0
    %v501 = vsel %vm131, %v495, 0.0
    %v502 = vsel %vm132, %v496, 0.0
    %s503 = sld [smem:[#allocation11]]
    %v504 = vstv %s503
    %v505 = vmul.f32 %v504, %v497
    %v506 = vmul.f32 %v504, %v498
    %v507 = vmul.f32 %v504, %v500
    %v508 = vmul.f32 %v504, %v501
    %s509 = sld [smem:[#allocation11 + $0x1]]
    %v510 = vstv %s509
    %v511 = vmul.f32 %v510, %v497
    %v512 = vmul.f32 %v510, %v498
    %v513 = vmul.f32 %v510, %v500
    %v514 = vmul.f32 %v510, %v501
    %519 = vrot.lane.b32.xlu0 %v511, 127
    %v520 = vpop.permute.xlu0 %519
    %521 = vrot.lane.b32.xlu0 %v512, 127
    %v522 = vpop.permute.xlu0 %521
    %523 = vrot.lane.b32.xlu0 %v513, 127
    %v524 = vpop.permute.xlu0 %523
    %525 = vrot.lane.b32.xlu0 %v514, 127
    %v526 = vpop.permute.xlu0 %525
    %v531 = vadd.f32 %v505, %v520
    %v532 = vadd.f32 %v506, %v522
    %v533 = vadd.f32 %v507, %v524
    %v534 = vadd.f32 %v508, %v526
    %s535 = sld [smem:[#allocation11 + $0x2]]
    %v536 = vstv %s535
    %v537 = vmul.f32 %v536, %v497
    %v538 = vmul.f32 %v536, %v498
    %v539 = vmul.f32 %v536, %v500
    %v540 = vmul.f32 %v536, %v501
    %545 = vrot.lane.b32.xlu0 %v537, 126
    %v546 = vpop.permute.xlu0 %545
    %547 = vrot.lane.b32.xlu0 %v538, 126
    %v548 = vpop.permute.xlu0 %547
    %549 = vrot.lane.b32.xlu0 %v539, 126
    %v550 = vpop.permute.xlu0 %549
    %551 = vrot.lane.b32.xlu0 %v540, 126
    %v552 = vpop.permute.xlu0 %551
    %v557 = vadd.f32 %v531, %v546
    %v558 = vadd.f32 %v532, %v548
    %v559 = vadd.f32 %v533, %v550
    %v560 = vadd.f32 %v534, %v552
    %s561 = sld [smem:[#allocation11 + $0x3]]
    %v562 = vstv %s561
    %v563 = vmul.f32 %v562, %v497
    %v564 = vmul.f32 %v562, %v498
    %v565 = vmul.f32 %v562, %v499
    %v566 = vmul.f32 %v562, %v500
    %v567 = vmul.f32 %v562, %v501
    %v568 = vmul.f32 %v562, %v502
    %v575 = vrot.slane %v563, 1
    %v576 = vrot.slane %v564, 1
    %v577 = vsel %vm231, %v575, %v576
    %v578 = vrot.slane %v565, 1
    %v579 = vsel %vm231, %v576, %v578
    %v580 = vrot.slane %v566, 1
    %v581 = vrot.slane %v567, 1
    %v582 = vsel %vm231, %v580, %v581
    %v583 = vrot.slane %v568, 1
    %v584 = vsel %vm231, %v581, %v583
    %v589 = vadd.f32 %v557, %v577
    %v590 = vadd.f32 %v558, %v579
    %v591 = vadd.f32 %v559, %v582
    %v592 = vadd.f32 %v560, %v584
    %s593 = sld [smem:[#allocation11 + $0x4]]
    %v594 = vstv %s593
    %v595 = vmul.f32 %v594, %v497
    %v596 = vmul.f32 %v594, %v498
    %v597 = vmul.f32 %v594, %v499
    %v598 = vmul.f32 %v594, %v500
    %v599 = vmul.f32 %v594, %v501
    %v600 = vmul.f32 %v594, %v502
    %v607 = vrot.slane %v595, 1
    %v608 = vrot.slane %v596, 1
    %v609 = vsel %vm231, %v607, %v608
    %v610 = vrot.slane %v597, 1
    %v611 = vsel %vm231, %v608, %v610
    %v612 = vrot.slane %v598, 1
    %v613 = vrot.slane %v599, 1
    %v614 = vsel %vm231, %v612, %v613
    %v615 = vrot.slane %v600, 1
    %v616 = vsel %vm231, %v613, %v615
    %617 = vrot.lane.b32.xlu0 %v609, 127
    %v618 = vpop.permute.xlu0 %617
    %619 = vrot.lane.b32.xlu0 %v611, 127
    %v620 = vpop.permute.xlu0 %619
    %621 = vrot.lane.b32.xlu0 %v614, 127
    %v622 = vpop.permute.xlu0 %621
    %623 = vrot.lane.b32.xlu0 %v616, 127
    %v624 = vpop.permute.xlu0 %623
    %v629 = vadd.f32 %v589, %v618
    %v630 = vadd.f32 %v590, %v620
    %v631 = vadd.f32 %v591, %v622
    %v632 = vadd.f32 %v592, %v624
    %s633 = sld [smem:[#allocation11 + $0x5]]
    %v634 = vstv %s633
    %v635 = vmul.f32 %v634, %v497
    %v636 = vmul.f32 %v634, %v498
    %v637 = vmul.f32 %v634, %v499
    %v638 = vmul.f32 %v634, %v500
    %v639 = vmul.f32 %v634, %v501
    %v640 = vmul.f32 %v634, %v502
    %v647 = vrot.slane %v635, 1
    %v648 = vrot.slane %v636, 1
    %v649 = vsel %vm231, %v647, %v648
    %v650 = vrot.slane %v637, 1
    %v651 = vsel %vm231, %v648, %v650
    %v652 = vrot.slane %v638, 1
    %v653 = vrot.slane %v639, 1
    %v654 = vsel %vm231, %v652, %v653
    %v655 = vrot.slane %v640, 1
    %v656 = vsel %vm231, %v653, %v655
    %657 = vrot.lane.b32.xlu0 %v649, 126
    %v658 = vpop.permute.xlu0 %657
    %659 = vrot.lane.b32.xlu0 %v651, 126
    %v660 = vpop.permute.xlu0 %659
    %661 = vrot.lane.b32.xlu0 %v654, 126
    %v662 = vpop.permute.xlu0 %661
    %663 = vrot.lane.b32.xlu0 %v656, 126
    %v664 = vpop.permute.xlu0 %663
    %v669 = vadd.f32 %v629, %v658
    %v670 = vadd.f32 %v630, %v660
    %v671 = vadd.f32 %v631, %v662
    %v672 = vadd.f32 %v632, %v664
    %s673 = sld [smem:[#allocation11 + $0x6]]
    %v674 = vstv %s673
    %v675 = vmul.f32 %v674, %v497
    %v676 = vmul.f32 %v674, %v498
    %v677 = vmul.f32 %v674, %v499
    %v678 = vmul.f32 %v674, %v500
    %v679 = vmul.f32 %v674, %v501
    %v680 = vmul.f32 %v674, %v502
    %v687 = vrot.slane %v675, 2
    %v688 = vrot.slane %v676, 2
    %v689 = vsel %vm364, %v687, %v688
    %v690 = vrot.slane %v677, 2
    %v691 = vsel %vm364, %v688, %v690
    %v692 = vrot.slane %v678, 2
    %v693 = vrot.slane %v679, 2
    %v694 = vsel %vm364, %v692, %v693
    %v695 = vrot.slane %v680, 2
    %v696 = vsel %vm364, %v693, %v695
    %v701 = vadd.f32 %v669, %v689
    %v702 = vadd.f32 %v670, %v691
    %v703 = vadd.f32 %v671, %v694
    %v704 = vadd.f32 %v672, %v696
    %s705 = sld [smem:[#allocation11 + $0x7]]
    %v706 = vstv %s705
    %v707 = vmul.f32 %v706, %v497
    %v708 = vmul.f32 %v706, %v498
    %v709 = vmul.f32 %v706, %v499
    %v710 = vmul.f32 %v706, %v500
    %v711 = vmul.f32 %v706, %v501
    %v712 = vmul.f32 %v706, %v502
    %v719 = vrot.slane %v707, 2
    %v720 = vrot.slane %v708, 2
    %v721 = vsel %vm364, %v719, %v720
    %v722 = vrot.slane %v709, 2
    %v723 = vsel %vm364, %v720, %v722
    %v724 = vrot.slane %v710, 2
    %v725 = vrot.slane %v711, 2
    %v726 = vsel %vm364, %v724, %v725
    %v727 = vrot.slane %v712, 2
    %v728 = vsel %vm364, %v725, %v727
    %729 = vrot.lane.b32.xlu0 %v721, 127
    %v730 = vpop.permute.xlu0 %729
    %731 = vrot.lane.b32.xlu0 %v723, 127
    %v732 = vpop.permute.xlu0 %731
    %733 = vrot.lane.b32.xlu0 %v726, 127
    %v734 = vpop.permute.xlu0 %733
    %735 = vrot.lane.b32.xlu0 %v728, 127
    %v736 = vpop.permute.xlu0 %735
    %v741 = vadd.f32 %v701, %v730
    %v742 = vadd.f32 %v702, %v732
    %v743 = vadd.f32 %v703, %v734
    %v744 = vadd.f32 %v704, %v736
    %s745 = sld [smem:[#allocation11 + $0x8]]
    %v746 = vstv %s745
    %v747 = vmul.f32 %v746, %v497
    %v748 = vmul.f32 %v746, %v498
    %v749 = vmul.f32 %v746, %v499
    %v750 = vmul.f32 %v746, %v500
    %v751 = vmul.f32 %v746, %v501
    %v752 = vmul.f32 %v746, %v502
    %v759 = vrot.slane %v747, 2
    %v760 = vrot.slane %v748, 2
    %v761 = vsel %vm364, %v759, %v760
    %v762 = vrot.slane %v749, 2
    %v763 = vsel %vm364, %v760, %v762
    %v764 = vrot.slane %v750, 2
    %v765 = vrot.slane %v751, 2
    %v766 = vsel %vm364, %v764, %v765
    %v767 = vrot.slane %v752, 2
    %v768 = vsel %vm364, %v765, %v767
    %769 = vrot.lane.b32.xlu0 %v761, 126
    %v770 = vpop.permute.xlu0 %769
    %771 = vrot.lane.b32.xlu0 %v763, 126
    %v772 = vpop.permute.xlu0 %771
    %773 = vrot.lane.b32.xlu0 %v766, 126
    %v774 = vpop.permute.xlu0 %773
    %775 = vrot.lane.b32.xlu0 %v768, 126
    %v776 = vpop.permute.xlu0 %775
    %v781 = vadd.f32 %v741, %v770
    %v782 = vadd.f32 %v742, %v772
    %v783 = vadd.f32 %v743, %v774
    %v784 = vadd.f32 %v744, %v776
    %s785 = sld [smem:[#allocation9 + $0x80]]
    %v786 = vstv %s785
    %v787 = vmul.f32 %v104, %v786
    %v788 = vmul.f32 %v105, %v786
    %v789 = vmul.f32 %v106, %v786
    %v790 = vmul.f32 %v107, %v786
    %v791 = vmul.f32 %v108, %v786
    %v792 = vmul.f32 %v109, %v786
    %s793 = sld [smem:[#allocation9 + $0x81]]
    %v794 = vstv %s793
    %v795 = vmul.f32 %v104, %v794
    %v796 = vmul.f32 %v105, %v794
    %v797 = vmul.f32 %v106, %v794
    %v798 = vmul.f32 %v107, %v794
    %v799 = vmul.f32 %v108, %v794
    %v800 = vmul.f32 %v109, %v794
    %807 = vrot.lane.b32.xlu0 %v795, 127
    %v808 = vpop.permute.xlu0 %807
    %809 = vrot.lane.b32.xlu0 %v796, 127
    %v810 = vpop.permute.xlu0 %809
    %811 = vrot.lane.b32.xlu0 %v797, 127
    %v812 = vpop.permute.xlu0 %811
    %813 = vrot.lane.b32.xlu0 %v798, 127
    %v814 = vpop.permute.xlu0 %813
    %815 = vrot.lane.b32.xlu0 %v799, 127
    %v816 = vpop.permute.xlu0 %815
    %817 = vrot.lane.b32.xlu0 %v800, 127
    %v818 = vpop.permute.xlu0 %817
    %v825 = vadd.f32 %v787, %v808
    %v826 = vadd.f32 %v788, %v810
    %v827 = vadd.f32 %v789, %v812
    %v828 = vadd.f32 %v790, %v814
    %v829 = vadd.f32 %v791, %v816
    %v830 = vadd.f32 %v792, %v818
    %s831 = sld [smem:[#allocation9 + $0x82]]
    %v832 = vstv %s831
    %v833 = vmul.f32 %v104, %v832
    %v834 = vmul.f32 %v105, %v832
    %v835 = vmul.f32 %v106, %v832
    %v836 = vmul.f32 %v107, %v832
    %v837 = vmul.f32 %v108, %v832
    %v838 = vmul.f32 %v109, %v832
    %845 = vrot.lane.b32.xlu0 %v833, 126
    %v846 = vpop.permute.xlu0 %845
    %847 = vrot.lane.b32.xlu0 %v834, 126
    %v848 = vpop.permute.xlu0 %847
    %849 = vrot.lane.b32.xlu0 %v835, 126
    %v850 = vpop.permute.xlu0 %849
    %851 = vrot.lane.b32.xlu0 %v836, 126
    %v852 = vpop.permute.xlu0 %851
    %853 = vrot.lane.b32.xlu0 %v837, 126
    %v854 = vpop.permute.xlu0 %853
    %855 = vrot.lane.b32.xlu0 %v838, 126
    %v856 = vpop.permute.xlu0 %855
    %v863 = vadd.f32 %v825, %v846
    %v864 = vadd.f32 %v826, %v848
    %v865 = vadd.f32 %v827, %v850
    %v866 = vadd.f32 %v828, %v852
    %v867 = vadd.f32 %v829, %v854
    %v868 = vadd.f32 %v830, %v856
    %s869 = sld [smem:[#allocation9 + $0x83]]
    %v870 = vstv %s869
    %v871 = vmul.f32 %v104, %v870
    %v872 = vmul.f32 %v105, %v870
    %v873 = vmul.f32 %v106, %v870
    %v874 = vmul.f32 %v107, %v870
    %v875 = vmul.f32 %v108, %v870
    %v876 = vmul.f32 %v109, %v870
    %v883 = vrot.slane %v871, 1
    %v884 = vrot.slane %v872, 1
    %v885 = vsel %vm231, %v883, %v884
    %v886 = vrot.slane %v873, 1
    %v887 = vsel %vm231, %v884, %v886
    %v888 = vrot.slane %v874, 1
    %v889 = vrot.slane %v875, 1
    %v890 = vsel %vm231, %v888, %v889
    %v891 = vrot.slane %v876, 1
    %v892 = vsel %vm231, %v889, %v891
    %v899 = vadd.f32 %v863, %v885
    %v900 = vadd.f32 %v864, %v887
    %v901 = vadd.f32 %v865, %v886
    %v902 = vadd.f32 %v866, %v890
    %v903 = vadd.f32 %v867, %v892
    %v904 = vadd.f32 %v868, %v891
    %s905 = sld [smem:[#allocation9 + $0x84]]
    %v906 = vstv %s905
    %v907 = vmul.f32 %v104, %v906
    %v908 = vmul.f32 %v105, %v906
    %v909 = vmul.f32 %v106, %v906
    %v910 = vmul.f32 %v107, %v906
    %v911 = vmul.f32 %v108, %v906
    %v912 = vmul.f32 %v109, %v906
    %v919 = vrot.slane %v907, 1
    %v920 = vrot.slane %v908, 1
    %v921 = vsel %vm231, %v919, %v920
    %v922 = vrot.slane %v909, 1
    %v923 = vsel %vm231, %v920, %v922
    %v924 = vrot.slane %v910, 1
    %v925 = vrot.slane %v911, 1
    %v926 = vsel %vm231, %v924, %v925
    %v927 = vrot.slane %v912, 1
    %v928 = vsel %vm231, %v925, %v927
    %929 = vrot.lane.b32.xlu0 %v921, 127
    %v930 = vpop.permute.xlu0 %929
    %931 = vrot.lane.b32.xlu0 %v923, 127
    %v932 = vpop.permute.xlu0 %931
    %933 = vrot.lane.b32.xlu0 %v922, 127
    %v934 = vpop.permute.xlu0 %933
    %935 = vrot.lane.b32.xlu0 %v926, 127
    %v936 = vpop.permute.xlu0 %935
    %937 = vrot.lane.b32.xlu0 %v928, 127
    %v938 = vpop.permute.xlu0 %937
    %939 = vrot.lane.b32.xlu0 %v927, 127
    %v940 = vpop.permute.xlu0 %939
    %v947 = vadd.f32 %v899, %v930
    %v948 = vadd.f32 %v900, %v932
    %v949 = vadd.f32 %v901, %v934
    %v950 = vadd.f32 %v902, %v936
    %v951 = vadd.f32 %v903, %v938
    %v952 = vadd.f32 %v904, %v940
    %s953 = sld [smem:[#allocation9 + $0x85]]
    %v954 = vstv %s953
    %v955 = vmul.f32 %v104, %v954
    %v956 = vmul.f32 %v105, %v954
    %v957 = vmul.f32 %v106, %v954
    %v958 = vmul.f32 %v107, %v954
    %v959 = vmul.f32 %v108, %v954
    %v960 = vmul.f32 %v109, %v954
    %v967 = vrot.slane %v955, 1
    %v968 = vrot.slane %v956, 1
    %v969 = vsel %vm231, %v967, %v968
    %v970 = vrot.slane %v957, 1
    %v971 = vsel %vm231, %v968, %v970
    %v972 = vrot.slane %v958, 1
    %v973 = vrot.slane %v959, 1
    %v974 = vsel %vm231, %v972, %v973
    %v975 = vrot.slane %v960, 1
    %v976 = vsel %vm231, %v973, %v975
    %977 = vrot.lane.b32.xlu0 %v969, 126
    %v978 = vpop.permute.xlu0 %977
    %979 = vrot.lane.b32.xlu0 %v971, 126
    %v980 = vpop.permute.xlu0 %979
    %981 = vrot.lane.b32.xlu0 %v970, 126
    %v982 = vpop.permute.xlu0 %981
    %983 = vrot.lane.b32.xlu0 %v974, 126
    %v984 = vpop.permute.xlu0 %983
    %985 = vrot.lane.b32.xlu0 %v976, 126
    %v986 = vpop.permute.xlu0 %985
    %987 = vrot.lane.b32.xlu0 %v975, 126
    %v988 = vpop.permute.xlu0 %987
    %v995 = vadd.f32 %v947, %v978
    %v996 = vadd.f32 %v948, %v980
    %v997 = vadd.f32 %v949, %v982
    %v998 = vadd.f32 %v950, %v984
    %v999 = vadd.f32 %v951, %v986
    %v1000 = vadd.f32 %v952, %v988
    %s1001 = sld [smem:[#allocation9 + $0x86]]
    %v1002 = vstv %s1001
    %v1003 = vmul.f32 %v104, %v1002
    %v1004 = vmul.f32 %v105, %v1002
    %v1005 = vmul.f32 %v106, %v1002
    %v1006 = vmul.f32 %v107, %v1002
    %v1007 = vmul.f32 %v108, %v1002
    %v1008 = vmul.f32 %v109, %v1002
    %v1015 = vrot.slane %v1003, 2
    %v1016 = vrot.slane %v1004, 2
    %v1017 = vsel %vm364, %v1015, %v1016
    %v1018 = vrot.slane %v1005, 2
    %v1019 = vsel %vm364, %v1016, %v1018
    %v1020 = vrot.slane %v1006, 2
    %v1021 = vrot.slane %v1007, 2
    %v1022 = vsel %vm364, %v1020, %v1021
    %v1023 = vrot.slane %v1008, 2
    %v1024 = vsel %vm364, %v1021, %v1023
    %v1031 = vadd.f32 %v995, %v1017
    %v1032 = vadd.f32 %v996, %v1019
    %v1033 = vadd.f32 %v997, %v1018
    %v1034 = vadd.f32 %v998, %v1022
    %v1035 = vadd.f32 %v999, %v1024
    %v1036 = vadd.f32 %v1000, %v1023
    %s1037 = sld [smem:[#allocation9 + $0x87]]
    %v1038 = vstv %s1037
    %v1039 = vmul.f32 %v104, %v1038
    %v1040 = vmul.f32 %v105, %v1038
    %v1041 = vmul.f32 %v106, %v1038
    %v1042 = vmul.f32 %v107, %v1038
    %v1043 = vmul.f32 %v108, %v1038
    %v1044 = vmul.f32 %v109, %v1038
    %v1051 = vrot.slane %v1039, 2
    %v1052 = vrot.slane %v1040, 2
    %v1053 = vsel %vm364, %v1051, %v1052
    %v1054 = vrot.slane %v1041, 2
    %v1055 = vsel %vm364, %v1052, %v1054
    %v1056 = vrot.slane %v1042, 2
    %v1057 = vrot.slane %v1043, 2
    %v1058 = vsel %vm364, %v1056, %v1057
    %v1059 = vrot.slane %v1044, 2
    %v1060 = vsel %vm364, %v1057, %v1059
    %1061 = vrot.lane.b32.xlu0 %v1053, 127
    %v1062 = vpop.permute.xlu0 %1061
    %1063 = vrot.lane.b32.xlu0 %v1055, 127
    %v1064 = vpop.permute.xlu0 %1063
    %1065 = vrot.lane.b32.xlu0 %v1054, 127
    %v1066 = vpop.permute.xlu0 %1065
    %1067 = vrot.lane.b32.xlu0 %v1058, 127
    %v1068 = vpop.permute.xlu0 %1067
    %1069 = vrot.lane.b32.xlu0 %v1060, 127
    %v1070 = vpop.permute.xlu0 %1069
    %1071 = vrot.lane.b32.xlu0 %v1059, 127
    %v1072 = vpop.permute.xlu0 %1071
    %v1079 = vadd.f32 %v1031, %v1062
    %v1080 = vadd.f32 %v1032, %v1064
    %v1081 = vadd.f32 %v1033, %v1066
    %v1082 = vadd.f32 %v1034, %v1068
    %v1083 = vadd.f32 %v1035, %v1070
    %v1084 = vadd.f32 %v1036, %v1072
    %s1085 = sld [smem:[#allocation9 + $0x88]]
    %v1086 = vstv %s1085
    %v1087 = vmul.f32 %v104, %v1086
    %v1088 = vmul.f32 %v105, %v1086
    %v1089 = vmul.f32 %v106, %v1086
    %v1090 = vmul.f32 %v107, %v1086
    %v1091 = vmul.f32 %v108, %v1086
    %v1092 = vmul.f32 %v109, %v1086
    %v1099 = vrot.slane %v1087, 2
    %v1100 = vrot.slane %v1088, 2
    %v1101 = vsel %vm364, %v1099, %v1100
    %v1102 = vrot.slane %v1089, 2
    %v1103 = vsel %vm364, %v1100, %v1102
    %v1104 = vrot.slane %v1090, 2
    %v1105 = vrot.slane %v1091, 2
    %v1106 = vsel %vm364, %v1104, %v1105
    %v1107 = vrot.slane %v1092, 2
    %v1108 = vsel %vm364, %v1105, %v1107
    %1109 = vrot.lane.b32.xlu0 %v1101, 126
    %v1110 = vpop.permute.xlu0 %1109
    %1111 = vrot.lane.b32.xlu0 %v1103, 126
    %v1112 = vpop.permute.xlu0 %1111
    %1113 = vrot.lane.b32.xlu0 %v1102, 126
    %v1114 = vpop.permute.xlu0 %1113
    %1115 = vrot.lane.b32.xlu0 %v1106, 126
    %v1116 = vpop.permute.xlu0 %1115
    %1117 = vrot.lane.b32.xlu0 %v1108, 126
    %v1118 = vpop.permute.xlu0 %1117
    %1119 = vrot.lane.b32.xlu0 %v1107, 126
    %v1120 = vpop.permute.xlu0 %1119
    %v1127 = vadd.f32 %v1079, %v1110
    %v1128 = vadd.f32 %v1080, %v1112
    %v1129 = vadd.f32 %v1081, %v1114
    %v1130 = vadd.f32 %v1082, %v1116
    %v1131 = vadd.f32 %v1083, %v1118
    %v1132 = vadd.f32 %v1084, %v1120
    %s1133 = sld [smem:[#allocation10 + $0x1]]
    %v1134 = vstv %s1133
    %v1135 = vadd.f32 %v1127, %v1134
    %v1136 = vadd.f32 %v1128, %v1134
    %v1137 = vadd.f32 %v1129, %v1134
    %v1138 = vadd.f32 %v1130, %v1134
    %v1139 = vadd.f32 %v1131, %v1134
    %v1140 = vadd.f32 %v1132, %v1134
    %v1141 = vmax.f32 %v1135, 0.0
    %v1142 = vmax.f32 %v1136, 0.0
    %v1143 = vmax.f32 %v1137, 0.0
    %v1144 = vmax.f32 %v1138, 0.0
    %v1145 = vmax.f32 %v1139, 0.0
    %v1146 = vmax.f32 %v1140, 0.0
    %v1147 = vsel %vm130, %v1141, 0.0
    %v1148 = vsel %vm131, %v1142, 0.0
    %v1149 = vsel %vm132, %v1143, 0.0
    %v1150 = vsel %vm130, %v1144, 0.0
    %v1151 = vsel %vm131, %v1145, 0.0
    %v1152 = vsel %vm132, %v1146, 0.0
    %s1153 = sld [smem:[#allocation11 + $0x80]]
    %v1154 = vstv %s1153
    %v1155 = vmul.f32 %v1154, %v1147
    %v1156 = vmul.f32 %v1154, %v1148
    %v1157 = vmul.f32 %v1154, %v1150
    %v1158 = vmul.f32 %v1154, %v1151
    %v1159 = vadd.f32 %v781, %v1155
    %v1160 = vadd.f32 %v782, %v1156
    %v1161 = vadd.f32 %v783, %v1157
    %v1162 = vadd.f32 %v784, %v1158
    %s1163 = sld [smem:[#allocation11 + $0x81]]
    %v1164 = vstv %s1163
    %v1165 = vmul.f32 %v1164, %v1147
    %v1166 = vmul.f32 %v1164, %v1148
    %v1167 = vmul.f32 %v1164, %v1150
    %v1168 = vmul.f32 %v1164, %v1151
    %1173 = vrot.lane.b32.xlu0 %v1165, 127
    %v1174 = vpop.permute.xlu0 %1173
    %1175 = vrot.lane.b32.xlu0 %v1166, 127
    %v1176 = vpop.permute.xlu0 %1175
    %1177 = vrot.lane.b32.xlu0 %v1167, 127
    %v1178 = vpop.permute.xlu0 %1177
    %1179 = vrot.lane.b32.xlu0 %v1168, 127
    %v1180 = vpop.permute.xlu0 %1179
    %v1185 = vadd.f32 %v1159, %v1174
    %v1186 = vadd.f32 %v1160, %v1176
    %v1187 = vadd.f32 %v1161, %v1178
    %v1188 = vadd.f32 %v1162, %v1180
    %s1189 = sld [smem:[#allocation11 + $0x82]]
    %v1190 = vstv %s1189
    %v1191 = vmul.f32 %v1190, %v1147
    %v1192 = vmul.f32 %v1190, %v1148
    %v1193 = vmul.f32 %v1190, %v1150
    %v1194 = vmul.f32 %v1190, %v1151
    %1199 = vrot.lane.b32.xlu0 %v1191, 126
    %v1200 = vpop.permute.xlu0 %1199
    %1201 = vrot.lane.b32.xlu0 %v1192, 126
    %v1202 = vpop.permute.xlu0 %1201
    %1203 = vrot.lane.b32.xlu0 %v1193, 126
    %v1204 = vpop.permute.xlu0 %1203
    %1205 = vrot.lane.b32.xlu0 %v1194, 126
    %v1206 = vpop.permute.xlu0 %1205
    %v1211 = vadd.f32 %v1185, %v1200
    %v1212 = vadd.f32 %v1186, %v1202
    %v1213 = vadd.f32 %v1187, %v1204
    %v1214 = vadd.f32 %v1188, %v1206
    %s1215 = sld [smem:[#allocation11 + $0x83]]
    %v1216 = vstv %s1215
    %v1217 = vmul.f32 %v1216, %v1147
    %v1218 = vmul.f32 %v1216, %v1148
    %v1219 = vmul.f32 %v1216, %v1149
    %v1220 = vmul.f32 %v1216, %v1150
    %v1221 = vmul.f32 %v1216, %v1151
    %v1222 = vmul.f32 %v1216, %v1152
    %v1229 = vrot.slane %v1217, 1
    %v1230 = vrot.slane %v1218, 1
    %v1231 = vsel %vm231, %v1229, %v1230
    %v1232 = vrot.slane %v1219, 1
    %v1233 = vsel %vm231, %v1230, %v1232
    %v1234 = vrot.slane %v1220, 1
    %v1235 = vrot.slane %v1221, 1
    %v1236 = vsel %vm231, %v1234, %v1235
    %v1237 = vrot.slane %v1222, 1
    %v1238 = vsel %vm231, %v1235, %v1237
    %v1243 = vadd.f32 %v1211, %v1231
    %v1244 = vadd.f32 %v1212, %v1233
    %v1245 = vadd.f32 %v1213, %v1236
    %v1246 = vadd.f32 %v1214, %v1238
    %s1247 = sld [smem:[#allocation11 + $0x84]]
    %v1248 = vstv %s1247
    %v1249 = vmul.f32 %v1248, %v1147
    %v1250 = vmul.f32 %v1248, %v1148
    %v1251 = vmul.f32 %v1248, %v1149
    %v1252 = vmul.f32 %v1248, %v1150
    %v1253 = vmul.f32 %v1248, %v1151
    %v1254 = vmul.f32 %v1248, %v1152
    %v1261 = vrot.slane %v1249, 1
    %v1262 = vrot.slane %v1250, 1
    %v1263 = vsel %vm231, %v1261, %v1262
    %v1264 = vrot.slane %v1251, 1
    %v1265 = vsel %vm231, %v1262, %v1264
    %v1266 = vrot.slane %v1252, 1
    %v1267 = vrot.slane %v1253, 1
    %v1268 = vsel %vm231, %v1266, %v1267
    %v1269 = vrot.slane %v1254, 1
    %v1270 = vsel %vm231, %v1267, %v1269
    %1271 = vrot.lane.b32.xlu0 %v1263, 127
    %v1272 = vpop.permute.xlu0 %1271
    %1273 = vrot.lane.b32.xlu0 %v1265, 127
    %v1274 = vpop.permute.xlu0 %1273
    %1275 = vrot.lane.b32.xlu0 %v1268, 127
    %v1276 = vpop.permute.xlu0 %1275
    %1277 = vrot.lane.b32.xlu0 %v1270, 127
    %v1278 = vpop.permute.xlu0 %1277
    %v1283 = vadd.f32 %v1243, %v1272
    %v1284 = vadd.f32 %v1244, %v1274
    %v1285 = vadd.f32 %v1245, %v1276
    %v1286 = vadd.f32 %v1246, %v1278
    %s1287 = sld [smem:[#allocation11 + $0x85]]
    %v1288 = vstv %s1287
    %v1289 = vmul.f32 %v1288, %v1147
    %v1290 = vmul.f32 %v1288, %v1148
    %v1291 = vmul.f32 %v1288, %v1149
    %v1292 = vmul.f32 %v1288, %v1150
    %v1293 = vmul.f32 %v1288, %v1151
    %v1294 = vmul.f32 %v1288, %v1152
    %v1301 = vrot.slane %v1289, 1
    %v1302 = vrot.slane %v1290, 1
    %v1303 = vsel %vm231, %v1301, %v1302
    %v1304 = vrot.slane %v1291, 1
    %v1305 = vsel %vm231, %v1302, %v1304
    %v1306 = vrot.slane %v1292, 1
    %v1307 = vrot.slane %v1293, 1
    %v1308 = vsel %vm231, %v1306, %v1307
    %v1309 = vrot.slane %v1294, 1
    %v1310 = vsel %vm231, %v1307, %v1309
    %1311 = vrot.lane.b32.xlu0 %v1303, 126
    %v1312 = vpop.permute.xlu0 %1311
    %1313 = vrot.lane.b32.xlu0 %v1305, 126
    %v1314 = vpop.permute.xlu0 %1313
    %1315 = vrot.lane.b32.xlu0 %v1308, 126
    %v1316 = vpop.permute.xlu0 %1315
    %1317 = vrot.lane.b32.xlu0 %v1310, 126
    %v1318 = vpop.permute.xlu0 %1317
    %v1323 = vadd.f32 %v1283, %v1312
    %v1324 = vadd.f32 %v1284, %v1314
    %v1325 = vadd.f32 %v1285, %v1316
    %v1326 = vadd.f32 %v1286, %v1318
    %s1327 = sld [smem:[#allocation11 + $0x86]]
    %v1328 = vstv %s1327
    %v1329 = vmul.f32 %v1328, %v1147
    %v1330 = vmul.f32 %v1328, %v1148
    %v1331 = vmul.f32 %v1328, %v1149
    %v1332 = vmul.f32 %v1328, %v1150
    %v1333 = vmul.f32 %v1328, %v1151
    %v1334 = vmul.f32 %v1328, %v1152
    %v1341 = vrot.slane %v1329, 2
    %v1342 = vrot.slane %v1330, 2
    %v1343 = vsel %vm364, %v1341, %v1342
    %v1344 = vrot.slane %v1331, 2
    %v1345 = vsel %vm364, %v1342, %v1344
    %v1346 = vrot.slane %v1332, 2
    %v1347 = vrot.slane %v1333, 2
    %v1348 = vsel %vm364, %v1346, %v1347
    %v1349 = vrot.slane %v1334, 2
    %v1350 = vsel %vm364, %v1347, %v1349
    %v1355 = vadd.f32 %v1323, %v1343
    %v1356 = vadd.f32 %v1324, %v1345
    %v1357 = vadd.f32 %v1325, %v1348
    %v1358 = vadd.f32 %v1326, %v1350
    %s1359 = sld [smem:[#allocation11 + $0x87]]
    %v1360 = vstv %s1359
    %v1361 = vmul.f32 %v1360, %v1147
    %v1362 = vmul.f32 %v1360, %v1148
    %v1363 = vmul.f32 %v1360, %v1149
    %v1364 = vmul.f32 %v1360, %v1150
    %v1365 = vmul.f32 %v1360, %v1151
    %v1366 = vmul.f32 %v1360, %v1152
    %v1373 = vrot.slane %v1361, 2
    %v1374 = vrot.slane %v1362, 2
    %v1375 = vsel %vm364, %v1373, %v1374
    %v1376 = vrot.slane %v1363, 2
    %v1377 = vsel %vm364, %v1374, %v1376
    %v1378 = vrot.slane %v1364, 2
    %v1379 = vrot.slane %v1365, 2
    %v1380 = vsel %vm364, %v1378, %v1379
    %v1381 = vrot.slane %v1366, 2
    %v1382 = vsel %vm364, %v1379, %v1381
    %1383 = vrot.lane.b32.xlu0 %v1375, 127
    %v1384 = vpop.permute.xlu0 %1383
    %1385 = vrot.lane.b32.xlu0 %v1377, 127
    %v1386 = vpop.permute.xlu0 %1385
    %1387 = vrot.lane.b32.xlu0 %v1380, 127
    %v1388 = vpop.permute.xlu0 %1387
    %1389 = vrot.lane.b32.xlu0 %v1382, 127
    %v1390 = vpop.permute.xlu0 %1389
    %v1395 = vadd.f32 %v1355, %v1384
    %v1396 = vadd.f32 %v1356, %v1386
    %v1397 = vadd.f32 %v1357, %v1388
    %v1398 = vadd.f32 %v1358, %v1390
    %s1399 = sld [smem:[#allocation11 + $0x88]]
    %v1400 = vstv %s1399
    %v1401 = vmul.f32 %v1400, %v1147
    %v1402 = vmul.f32 %v1400, %v1148
    %v1403 = vmul.f32 %v1400, %v1149
    %v1404 = vmul.f32 %v1400, %v1150
    %v1405 = vmul.f32 %v1400, %v1151
    %v1406 = vmul.f32 %v1400, %v1152
    %v1413 = vrot.slane %v1401, 2
    %v1414 = vrot.slane %v1402, 2
    %v1415 = vsel %vm364, %v1413, %v1414
    %v1416 = vrot.slane %v1403, 2
    %v1417 = vsel %vm364, %v1414, %v1416
    %v1418 = vrot.slane %v1404, 2
    %v1419 = vrot.slane %v1405, 2
    %v1420 = vsel %vm364, %v1418, %v1419
    %v1421 = vrot.slane %v1406, 2
    %v1422 = vsel %vm364, %v1419, %v1421
    %1423 = vrot.lane.b32.xlu0 %v1415, 126
    %v1424 = vpop.permute.xlu0 %1423
    %1425 = vrot.lane.b32.xlu0 %v1417, 126
    %v1426 = vpop.permute.xlu0 %1425
    %1427 = vrot.lane.b32.xlu0 %v1420, 126
    %v1428 = vpop.permute.xlu0 %1427
    %1429 = vrot.lane.b32.xlu0 %v1422, 126
    %v1430 = vpop.permute.xlu0 %1429
    %v1435 = vadd.f32 %v1395, %v1424
    %v1436 = vadd.f32 %v1396, %v1426
    %v1437 = vadd.f32 %v1397, %v1428
    %v1438 = vadd.f32 %v1398, %v1430
    %s1439 = sld [smem:[#allocation9 + $0x100]]
    %v1440 = vstv %s1439
    %v1441 = vmul.f32 %v104, %v1440
    %v1442 = vmul.f32 %v105, %v1440
    %v1443 = vmul.f32 %v106, %v1440
    %v1444 = vmul.f32 %v107, %v1440
    %v1445 = vmul.f32 %v108, %v1440
    %v1446 = vmul.f32 %v109, %v1440
    %s1447 = sld [smem:[#allocation9 + $0x101]]
    %v1448 = vstv %s1447
    %v1449 = vmul.f32 %v104, %v1448
    %v1450 = vmul.f32 %v105, %v1448
    %v1451 = vmul.f32 %v106, %v1448
    %v1452 = vmul.f32 %v107, %v1448
    %v1453 = vmul.f32 %v108, %v1448
    %v1454 = vmul.f32 %v109, %v1448
    %1461 = vrot.lane.b32.xlu0 %v1449, 127
    %v1462 = vpop.permute.xlu0 %1461
    %1463 = vrot.lane.b32.xlu0 %v1450, 127
    %v1464 = vpop.permute.xlu0 %1463
    %1465 = vrot.lane.b32.xlu0 %v1451, 127
    %v1466 = vpop.permute.xlu0 %1465
    %1467 = vrot.lane.b32.xlu0 %v1452, 127
    %v1468 = vpop.permute.xlu0 %1467
    %1469 = vrot.lane.b32.xlu0 %v1453, 127
    %v1470 = vpop.permute.xlu0 %1469
    %1471 = vrot.lane.b32.xlu0 %v1454, 127
    %v1472 = vpop.permute.xlu0 %1471
    %v1479 = vadd.f32 %v1441, %v1462
    %v1480 = vadd.f32 %v1442, %v1464
    %v1481 = vadd.f32 %v1443, %v1466
    %v1482 = vadd.f32 %v1444, %v1468
    %v1483 = vadd.f32 %v1445, %v1470
    %v1484 = vadd.f32 %v1446, %v1472
    %s1485 = sld [smem:[#allocation9 + $0x102]]
    %v1486 = vstv %s1485
    %v1487 = vmul.f32 %v104, %v1486
    %v1488 = vmul.f32 %v105, %v1486
    %v1489 = vmul.f32 %v106, %v1486
    %v1490 = vmul.f32 %v107, %v1486
    %v1491 = vmul.f32 %v108, %v1486
    %v1492 = vmul.f32 %v109, %v1486
    %1499 = vrot.lane.b32.xlu0 %v1487, 126
    %v1500 = vpop.permute.xlu0 %1499
    %1501 = vrot.lane.b32.xlu0 %v1488, 126
    %v1502 = vpop.permute.xlu0 %1501
    %1503 = vrot.lane.b32.xlu0 %v1489, 126
    %v1504 = vpop.permute.xlu0 %1503
    %1505 = vrot.lane.b32.xlu0 %v1490, 126
    %v1506 = vpop.permute.xlu0 %1505
    %1507 = vrot.lane.b32.xlu0 %v1491, 126
    %v1508 = vpop.permute.xlu0 %1507
    %1509 = vrot.lane.b32.xlu0 %v1492, 126
    %v1510 = vpop.permute.xlu0 %1509
    %v1517 = vadd.f32 %v1479, %v1500
    %v1518 = vadd.f32 %v1480, %v1502
    %v1519 = vadd.f32 %v1481, %v1504
    %v1520 = vadd.f32 %v1482, %v1506
    %v1521 = vadd.f32 %v1483, %v1508
    %v1522 = vadd.f32 %v1484, %v1510
    %s1523 = sld [smem:[#allocation9 + $0x103]]
    %v1524 = vstv %s1523
    %v1525 = vmul.f32 %v104, %v1524
    %v1526 = vmul.f32 %v105, %v1524
    %v1527 = vmul.f32 %v106, %v1524
    %v1528 = vmul.f32 %v107, %v1524
    %v1529 = vmul.f32 %v108, %v1524
    %v1530 = vmul.f32 %v109, %v1524
    %v1537 = vrot.slane %v1525, 1
    %v1538 = vrot.slane %v1526, 1
    %v1539 = vsel %vm231, %v1537, %v1538
    %v1540 = vrot.slane %v1527, 1
    %v1541 = vsel %vm231, %v1538, %v1540
    %v1542 = vrot.slane %v1528, 1
    %v1543 = vrot.slane %v1529, 1
    %v1544 = vsel %vm231, %v1542, %v1543
    %v1545 = vrot.slane %v1530, 1
    %v1546 = vsel %vm231, %v1543, %v1545
    %v1553 = vadd.f32 %v1517, %v1539
    %v1554 = vadd.f32 %v1518, %v1541
    %v1555 = vadd.f32 %v1519, %v1540
    %v1556 = vadd.f32 %v1520, %v1544
    %v1557 = vadd.f32 %v1521, %v1546
    %v1558 = vadd.f32 %v1522, %v1545
    %s1559 = sld [smem:[#allocation9 + $0x104]]
    %v1560 = vstv %s1559
    %v1561 = vmul.f32 %v104, %v1560
    %v1562 = vmul.f32 %v105, %v1560
    %v1563 = vmul.f32 %v106, %v1560
    %v1564 = vmul.f32 %v107, %v1560
    %v1565 = vmul.f32 %v108, %v1560
    %v1566 = vmul.f32 %v109, %v1560
    %v1573 = vrot.slane %v1561, 1
    %v1574 = vrot.slane %v1562, 1
    %v1575 = vsel %vm231, %v1573, %v1574
    %v1576 = vrot.slane %v1563, 1
    %v1577 = vsel %vm231, %v1574, %v1576
    %v1578 = vrot.slane %v1564, 1
    %v1579 = vrot.slane %v1565, 1
    %v1580 = vsel %vm231, %v1578, %v1579
    %v1581 = vrot.slane %v1566, 1
    %v1582 = vsel %vm231, %v1579, %v1581
    %1583 = vrot.lane.b32.xlu0 %v1575, 127
    %v1584 = vpop.permute.xlu0 %1583
    %1585 = vrot.lane.b32.xlu0 %v1577, 127
    %v1586 = vpop.permute.xlu0 %1585
    %1587 = vrot.lane.b32.xlu0 %v1576, 127
    %v1588 = vpop.permute.xlu0 %1587
    %1589 = vrot.lane.b32.xlu0 %v1580, 127
    %v1590 = vpop.permute.xlu0 %1589
    %1591 = vrot.lane.b32.xlu0 %v1582, 127
    %v1592 = vpop.permute.xlu0 %1591
    %1593 = vrot.lane.b32.xlu0 %v1581, 127
    %v1594 = vpop.permute.xlu0 %1593
    %v1601 = vadd.f32 %v1553, %v1584
    %v1602 = vadd.f32 %v1554, %v1586
    %v1603 = vadd.f32 %v1555, %v1588
    %v1604 = vadd.f32 %v1556, %v1590
    %v1605 = vadd.f32 %v1557, %v1592
    %v1606 = vadd.f32 %v1558, %v1594
    %s1607 = sld [smem:[#allocation9 + $0x105]]
    %v1608 = vstv %s1607
    %v1609 = vmul.f32 %v104, %v1608
    %v1610 = vmul.f32 %v105, %v1608
    %v1611 = vmul.f32 %v106, %v1608
    %v1612 = vmul.f32 %v107, %v1608
    %v1613 = vmul.f32 %v108, %v1608
    %v1614 = vmul.f32 %v109, %v1608
    %v1621 = vrot.slane %v1609, 1
    %v1622 = vrot.slane %v1610, 1
    %v1623 = vsel %vm231, %v1621, %v1622
    %v1624 = vrot.slane %v1611, 1
    %v1625 = vsel %vm231, %v1622, %v1624
    %v1626 = vrot.slane %v1612, 1
    %v1627 = vrot.slane %v1613, 1
    %v1628 = vsel %vm231, %v1626, %v1627
    %v1629 = vrot.slane %v1614, 1
    %v1630 = vsel %vm231, %v1627, %v1629
    %1631 = vrot.lane.b32.xlu0 %v1623, 126
    %v1632 = vpop.permute.xlu0 %1631
    %1633 = vrot.lane.b32.xlu0 %v1625, 126
    %v1634 = vpop.permute.xlu0 %1633
    %1635 = vrot.lane.b32.xlu0 %v1624, 126
    %v1636 = vpop.permute.xlu0 %1635
    %1637 = vrot.lane.b32.xlu0 %v1628, 126
    %v1638 = vpop.permute.xlu0 %1637
    %1639 = vrot.lane.b32.xlu0 %v1630, 126
    %v1640 = vpop.permute.xlu0 %1639
    %1641 = vrot.lane.b32.xlu0 %v1629, 126
    %v1642 = vpop.permute.xlu0 %1641
    %v1649 = vadd.f32 %v1601, %v1632
    %v1650 = vadd.f32 %v1602, %v1634
    %v1651 = vadd.f32 %v1603, %v1636
    %v1652 = vadd.f32 %v1604, %v1638
    %v1653 = vadd.f32 %v1605, %v1640
    %v1654 = vadd.f32 %v1606, %v1642
    %s1655 = sld [smem:[#allocation9 + $0x106]]
    %v1656 = vstv %s1655
    %v1657 = vmul.f32 %v104, %v1656
    %v1658 = vmul.f32 %v105, %v1656
    %v1659 = vmul.f32 %v106, %v1656
    %v1660 = vmul.f32 %v107, %v1656
    %v1661 = vmul.f32 %v108, %v1656
    %v1662 = vmul.f32 %v109, %v1656
    %v1669 = vrot.slane %v1657, 2
    %v1670 = vrot.slane %v1658, 2
    %v1671 = vsel %vm364, %v1669, %v1670
    %v1672 = vrot.slane %v1659, 2
    %v1673 = vsel %vm364, %v1670, %v1672
    %v1674 = vrot.slane %v1660, 2
    %v1675 = vrot.slane %v1661, 2
    %v1676 = vsel %vm364, %v1674, %v1675
    %v1677 = vrot.slane %v1662, 2
    %v1678 = vsel %vm364, %v1675, %v1677
    %v1685 = vadd.f32 %v1649, %v1671
    %v1686 = vadd.f32 %v1650, %v1673
    %v1687 = vadd.f32 %v1651, %v1672
    %v1688 = vadd.f32 %v1652, %v1676
    %v1689 = vadd.f32 %v1653, %v1678
    %v1690 = vadd.f32 %v1654, %v1677
    %s1691 = sld [smem:[#allocation9 + $0x107]]
    %v1692 = vstv %s1691
    %v1693 = vmul.f32 %v104, %v1692
    %v1694 = vmul.f32 %v105, %v1692
    %v1695 = vmul.f32 %v106, %v1692
    %v1696 = vmul.f32 %v107, %v1692
    %v1697 = vmul.f32 %v108, %v1692
    %v1698 = vmul.f32 %v109, %v1692
    %v1705 = vrot.slane %v1693, 2
    %v1706 = vrot.slane %v1694, 2
    %v1707 = vsel %vm364, %v1705, %v1706
    %v1708 = vrot.slane %v1695, 2
    %v1709 = vsel %vm364, %v1706, %v1708
    %v1710 = vrot.slane %v1696, 2
    %v1711 = vrot.slane %v1697, 2
    %v1712 = vsel %vm364, %v1710, %v1711
    %v1713 = vrot.slane %v1698, 2
    %v1714 = vsel %vm364, %v1711, %v1713
    %1715 = vrot.lane.b32.xlu0 %v1707, 127
    %v1716 = vpop.permute.xlu0 %1715
    %1717 = vrot.lane.b32.xlu0 %v1709, 127
    %v1718 = vpop.permute.xlu0 %1717
    %1719 = vrot.lane.b32.xlu0 %v1708, 127
    %v1720 = vpop.permute.xlu0 %1719
    %1721 = vrot.lane.b32.xlu0 %v1712, 127
    %v1722 = vpop.permute.xlu0 %1721
    %1723 = vrot.lane.b32.xlu0 %v1714, 127
    %v1724 = vpop.permute.xlu0 %1723
    %1725 = vrot.lane.b32.xlu0 %v1713, 127
    %v1726 = vpop.permute.xlu0 %1725
    %v1733 = vadd.f32 %v1685, %v1716
    %v1734 = vadd.f32 %v1686, %v1718
    %v1735 = vadd.f32 %v1687, %v1720
    %v1736 = vadd.f32 %v1688, %v1722
    %v1737 = vadd.f32 %v1689, %v1724
    %v1738 = vadd.f32 %v1690, %v1726
    %s1739 = sld [smem:[#allocation9 + $0x108]]
    %v1740 = vstv %s1739
    %v1741 = vmul.f32 %v104, %v1740
    %v1742 = vmul.f32 %v105, %v1740
    %v1743 = vmul.f32 %v106, %v1740
    %v1744 = vmul.f32 %v107, %v1740
    %v1745 = vmul.f32 %v108, %v1740
    %v1746 = vmul.f32 %v109, %v1740
    %v1753 = vrot.slane %v1741, 2
    %v1754 = vrot.slane %v1742, 2
    %v1755 = vsel %vm364, %v1753, %v1754
    %v1756 = vrot.slane %v1743, 2
    %v1757 = vsel %vm364, %v1754, %v1756
    %v1758 = vrot.slane %v1744, 2
    %v1759 = vrot.slane %v1745, 2
    %v1760 = vsel %vm364, %v1758, %v1759
    %v1761 = vrot.slane %v1746, 2
    %v1762 = vsel %vm364, %v1759, %v1761
    %1763 = vrot.lane.b32.xlu0 %v1755, 126
    %v1764 = vpop.permute.xlu0 %1763
    %1765 = vrot.lane.b32.xlu0 %v1757, 126
    %v1766 = vpop.permute.xlu0 %1765
    %1767 = vrot.lane.b32.xlu0 %v1756, 126
    %v1768 = vpop.permute.xlu0 %1767
    %1769 = vrot.lane.b32.xlu0 %v1760, 126
    %v1770 = vpop.permute.xlu0 %1769
    %1771 = vrot.lane.b32.xlu0 %v1762, 126
    %v1772 = vpop.permute.xlu0 %1771
    %1773 = vrot.lane.b32.xlu0 %v1761, 126
    %v1774 = vpop.permute.xlu0 %1773
    %v1781 = vadd.f32 %v1733, %v1764
    %v1782 = vadd.f32 %v1734, %v1766
    %v1783 = vadd.f32 %v1735, %v1768
    %v1784 = vadd.f32 %v1736, %v1770
    %v1785 = vadd.f32 %v1737, %v1772
    %v1786 = vadd.f32 %v1738, %v1774
    %s1787 = sld [smem:[#allocation10 + $0x2]]
    %v1788 = vstv %s1787
    %v1789 = vadd.f32 %v1781, %v1788
    %v1790 = vadd.f32 %v1782, %v1788
    %v1791 = vadd.f32 %v1783, %v1788
    %v1792 = vadd.f32 %v1784, %v1788
    %v1793 = vadd.f32 %v1785, %v1788
    %v1794 = vadd.f32 %v1786, %v1788
    %v1795 = vmax.f32 %v1789, 0.0
    %v1796 = vmax.f32 %v1790, 0.0
    %v1797 = vmax.f32 %v1791, 0.0
    %v1798 = vmax.f32 %v1792, 0.0
    %v1799 = vmax.f32 %v1793, 0.0
    %v1800 = vmax.f32 %v1794, 0.0
    %v1801 = vsel %vm130, %v1795, 0.0
    %v1802 = vsel %vm131, %v1796, 0.0
    %v1803 = vsel %vm132, %v1797, 0.0
    %v1804 = vsel %vm130, %v1798, 0.0
    %v1805 = vsel %vm131, %v1799, 0.0
    %v1806 = vsel %vm132, %v1800, 0.0
    %s1807 = sld [smem:[#allocation11 + $0x100]]
    %v1808 = vstv %s1807
    %v1809 = vmul.f32 %v1808, %v1801
    %v1810 = vmul.f32 %v1808, %v1802
    %v1811 = vmul.f32 %v1808, %v1804
    %v1812 = vmul.f32 %v1808, %v1805
    %v1813 = vadd.f32 %v1435, %v1809
    %v1814 = vadd.f32 %v1436, %v1810
    %v1815 = vadd.f32 %v1437, %v1811
    %v1816 = vadd.f32 %v1438, %v1812
    %s1817 = sld [smem:[#allocation11 + $0x101]]
    %v1818 = vstv %s1817
    %v1819 = vmul.f32 %v1818, %v1801
    %v1820 = vmul.f32 %v1818, %v1802
    %v1821 = vmul.f32 %v1818, %v1804
    %v1822 = vmul.f32 %v1818, %v1805
    %1827 = vrot.lane.b32.xlu0 %v1819, 127
    %v1828 = vpop.permute.xlu0 %1827
    %1829 = vrot.lane.b32.xlu0 %v1820, 127
    %v1830 = vpop.permute.xlu0 %1829
    %1831 = vrot.lane.b32.xlu0 %v1821, 127
    %v1832 = vpop.permute.xlu0 %1831
    %1833 = vrot.lane.b32.xlu0 %v1822, 127
    %v1834 = vpop.permute.xlu0 %1833
    %v1839 = vadd.f32 %v1813, %v1828
    %v1840 = vadd.f32 %v1814, %v1830
    %v1841 = vadd.f32 %v1815, %v1832
    %v1842 = vadd.f32 %v1816, %v1834
    %s1843 = sld [smem:[#allocation11 + $0x102]]
    %v1844 = vstv %s1843
    %v1845 = vmul.f32 %v1844, %v1801
    %v1846 = vmul.f32 %v1844, %v1802
    %v1847 = vmul.f32 %v1844, %v1804
    %v1848 = vmul.f32 %v1844, %v1805
    %1853 = vrot.lane.b32.xlu0 %v1845, 126
    %v1854 = vpop.permute.xlu0 %1853
    %1855 = vrot.lane.b32.xlu0 %v1846, 126
    %v1856 = vpop.permute.xlu0 %1855
    %1857 = vrot.lane.b32.xlu0 %v1847, 126
    %v1858 = vpop.permute.xlu0 %1857
    %1859 = vrot.lane.b32.xlu0 %v1848, 126
    %v1860 = vpop.permute.xlu0 %1859
    %v1865 = vadd.f32 %v1839, %v1854
    %v1866 = vadd.f32 %v1840, %v1856
    %v1867 = vadd.f32 %v1841, %v1858
    %v1868 = vadd.f32 %v1842, %v1860
    %s1869 = sld [smem:[#allocation11 + $0x103]]
    %v1870 = vstv %s1869
    %v1871 = vmul.f32 %v1870, %v1801
    %v1872 = vmul.f32 %v1870, %v1802
    %v1873 = vmul.f32 %v1870, %v1803
    %v1874 = vmul.f32 %v1870, %v1804
    %v1875 = vmul.f32 %v1870, %v1805
    %v1876 = vmul.f32 %v1870, %v1806
    %v1883 = vrot.slane %v1871, 1
    %v1884 = vrot.slane %v1872, 1
    %v1885 = vsel %vm231, %v1883, %v1884
    %v1886 = vrot.slane %v1873, 1
    %v1887 = vsel %vm231, %v1884, %v1886
    %v1888 = vrot.slane %v1874, 1
    %v1889 = vrot.slane %v1875, 1
    %v1890 = vsel %vm231, %v1888, %v1889
    %v1891 = vrot.slane %v1876, 1
    %v1892 = vsel %vm231, %v1889, %v1891
    %v1897 = vadd.f32 %v1865, %v1885
    %v1898 = vadd.f32 %v1866, %v1887
    %v1899 = vadd.f32 %v1867, %v1890
    %v1900 = vadd.f32 %v1868, %v1892
    %s1901 = sld [smem:[#allocation11 + $0x104]]
    %v1902 = vstv %s1901
    %v1903 = vmul.f32 %v1902, %v1801
    %v1904 = vmul.f32 %v1902, %v1802
    %v1905 = vmul.f32 %v1902, %v1803
    %v1906 = vmul.f32 %v1902, %v1804
    %v1907 = vmul.f32 %v1902, %v1805
    %v1908 = vmul.f32 %v1902, %v1806
    %v1915 = vrot.slane %v1903, 1
    %v1916 = vrot.slane %v1904, 1
    %v1917 = vsel %vm231, %v1915, %v1916
    %v1918 = vrot.slane %v1905, 1
    %v1919 = vsel %vm231, %v1916, %v1918
    %v1920 = vrot.slane %v1906, 1
    %v1921 = vrot.slane %v1907, 1
    %v1922 = vsel %vm231, %v1920, %v1921
    %v1923 = vrot.slane %v1908, 1
    %v1924 = vsel %vm231, %v1921, %v1923
    %1925 = vrot.lane.b32.xlu0 %v1917, 127
    %v1926 = vpop.permute.xlu0 %1925
    %1927 = vrot.lane.b32.xlu0 %v1919, 127
    %v1928 = vpop.permute.xlu0 %1927
    %1929 = vrot.lane.b32.xlu0 %v1922, 127
    %v1930 = vpop.permute.xlu0 %1929
    %1931 = vrot.lane.b32.xlu0 %v1924, 127
    %v1932 = vpop.permute.xlu0 %1931
    %v1937 = vadd.f32 %v1897, %v1926
    %v1938 = vadd.f32 %v1898, %v1928
    %v1939 = vadd.f32 %v1899, %v1930
    %v1940 = vadd.f32 %v1900, %v1932
    %s1941 = sld [smem:[#allocation11 + $0x105]]
    %v1942 = vstv %s1941
    %v1943 = vmul.f32 %v1942, %v1801
    %v1944 = vmul.f32 %v1942, %v1802
    %v1945 = vmul.f32 %v1942, %v1803
    %v1946 = vmul.f32 %v1942, %v1804
    %v1947 = vmul.f32 %v1942, %v1805
    %v1948 = vmul.f32 %v1942, %v1806
    %v1955 = vrot.slane %v1943, 1
    %v1956 = vrot.slane %v1944, 1
    %v1957 = vsel %vm231, %v1955, %v1956
    %v1958 = vrot.slane %v1945, 1
    %v1959 = vsel %vm231, %v1956, %v1958
    %v1960 = vrot.slane %v1946, 1
    %v1961 = vrot.slane %v1947, 1
    %v1962 = vsel %vm231, %v1960, %v1961
    %v1963 = vrot.slane %v1948, 1
    %v1964 = vsel %vm231, %v1961, %v1963
    %1965 = vrot.lane.b32.xlu0 %v1957, 126
    %v1966 = vpop.permute.xlu0 %1965
    %1967 = vrot.lane.b32.xlu0 %v1959, 126
    %v1968 = vpop.permute.xlu0 %1967
    %1969 = vrot.lane.b32.xlu0 %v1962, 126
    %v1970 = vpop.permute.xlu0 %1969
    %1971 = vrot.lane.b32.xlu0 %v1964, 126
    %v1972 = vpop.permute.xlu0 %1971
    %v1977 = vadd.f32 %v1937, %v1966
    %v1978 = vadd.f32 %v1938, %v1968
    %v1979 = vadd.f32 %v1939, %v1970
    %v1980 = vadd.f32 %v1940, %v1972
    %s1981 = sld [smem:[#allocation11 + $0x106]]
    %v1982 = vstv %s1981
    %v1983 = vmul.f32 %v1982, %v1801
    %v1984 = vmul.f32 %v1982, %v1802
    %v1985 = vmul.f32 %v1982, %v1803
    %v1986 = vmul.f32 %v1982, %v1804
    %v1987 = vmul.f32 %v1982, %v1805
    %v1988 = vmul.f32 %v1982, %v1806
    %v1995 = vrot.slane %v1983, 2
    %v1996 = vrot.slane %v1984, 2
    %v1997 = vsel %vm364, %v1995, %v1996
    %v1998 = vrot.slane %v1985, 2
    %v1999 = vsel %vm364, %v1996, %v1998
    %v2000 = vrot.slane %v1986, 2
    %v2001 = vrot.slane %v1987, 2
    %v2002 = vsel %vm364, %v2000, %v2001
    %v2003 = vrot.slane %v1988, 2
    %v2004 = vsel %vm364, %v2001, %v2003
    %v2009 = vadd.f32 %v1977, %v1997
    %v2010 = vadd.f32 %v1978, %v1999
    %v2011 = vadd.f32 %v1979, %v2002
    %v2012 = vadd.f32 %v1980, %v2004
    %s2013 = sld [smem:[#allocation11 + $0x107]]
    %v2014 = vstv %s2013
    %v2015 = vmul.f32 %v2014, %v1801
    %v2016 = vmul.f32 %v2014, %v1802
    %v2017 = vmul.f32 %v2014, %v1803
    %v2018 = vmul.f32 %v2014, %v1804
    %v2019 = vmul.f32 %v2014, %v1805
    %v2020 = vmul.f32 %v2014, %v1806
    %v2027 = vrot.slane %v2015, 2
    %v2028 = vrot.slane %v2016, 2
    %v2029 = vsel %vm364, %v2027, %v2028
    %v2030 = vrot.slane %v2017, 2
    %v2031 = vsel %vm364, %v2028, %v2030
    %v2032 = vrot.slane %v2018, 2
    %v2033 = vrot.slane %v2019, 2
    %v2034 = vsel %vm364, %v2032, %v2033
    %v2035 = vrot.slane %v2020, 2
    %v2036 = vsel %vm364, %v2033, %v2035
    %2037 = vrot.lane.b32.xlu0 %v2029, 127
    %v2038 = vpop.permute.xlu0 %2037
    %2039 = vrot.lane.b32.xlu0 %v2031, 127
    %v2040 = vpop.permute.xlu0 %2039
    %2041 = vrot.lane.b32.xlu0 %v2034, 127
    %v2042 = vpop.permute.xlu0 %2041
    %2043 = vrot.lane.b32.xlu0 %v2036, 127
    %v2044 = vpop.permute.xlu0 %2043
    %v2049 = vadd.f32 %v2009, %v2038
    %v2050 = vadd.f32 %v2010, %v2040
    %v2051 = vadd.f32 %v2011, %v2042
    %v2052 = vadd.f32 %v2012, %v2044
    %s2053 = sld [smem:[#allocation11 + $0x108]]
    %v2054 = vstv %s2053
    %v2055 = vmul.f32 %v2054, %v1801
    %v2056 = vmul.f32 %v2054, %v1802
    %v2057 = vmul.f32 %v2054, %v1803
    %v2058 = vmul.f32 %v2054, %v1804
    %v2059 = vmul.f32 %v2054, %v1805
    %v2060 = vmul.f32 %v2054, %v1806
    %v2067 = vrot.slane %v2055, 2
    %v2068 = vrot.slane %v2056, 2
    %v2069 = vsel %vm364, %v2067, %v2068
    %v2070 = vrot.slane %v2057, 2
    %v2071 = vsel %vm364, %v2068, %v2070
    %v2072 = vrot.slane %v2058, 2
    %v2073 = vrot.slane %v2059, 2
    %v2074 = vsel %vm364, %v2072, %v2073
    %v2075 = vrot.slane %v2060, 2
    %v2076 = vsel %vm364, %v2073, %v2075
    %2077 = vrot.lane.b32.xlu0 %v2069, 126
    %v2078 = vpop.permute.xlu0 %2077
    %2079 = vrot.lane.b32.xlu0 %v2071, 126
    %v2080 = vpop.permute.xlu0 %2079
    %2081 = vrot.lane.b32.xlu0 %v2074, 126
    %v2082 = vpop.permute.xlu0 %2081
    %2083 = vrot.lane.b32.xlu0 %v2076, 126
    %v2084 = vpop.permute.xlu0 %2083
    %v2089 = vadd.f32 %v2049, %v2078
    %v2090 = vadd.f32 %v2050, %v2080
    %v2091 = vadd.f32 %v2051, %v2082
    %v2092 = vadd.f32 %v2052, %v2084
    %s2093 = sld [smem:[#allocation9 + $0x180]]
    %v2094 = vstv %s2093
    %v2095 = vmul.f32 %v104, %v2094
    %v2096 = vmul.f32 %v105, %v2094
    %v2097 = vmul.f32 %v106, %v2094
    %v2098 = vmul.f32 %v107, %v2094
    %v2099 = vmul.f32 %v108, %v2094
    %v2100 = vmul.f32 %v109, %v2094
    %s2101 = sld [smem:[#allocation9 + $0x181]]
    %v2102 = vstv %s2101
    %v2103 = vmul.f32 %v104, %v2102
    %v2104 = vmul.f32 %v105, %v2102
    %v2105 = vmul.f32 %v106, %v2102
    %v2106 = vmul.f32 %v107, %v2102
    %v2107 = vmul.f32 %v108, %v2102
    %v2108 = vmul.f32 %v109, %v2102
    %2115 = vrot.lane.b32.xlu0 %v2103, 127
    %v2116 = vpop.permute.xlu0 %2115
    %2117 = vrot.lane.b32.xlu0 %v2104, 127
    %v2118 = vpop.permute.xlu0 %2117
    %2119 = vrot.lane.b32.xlu0 %v2105, 127
    %v2120 = vpop.permute.xlu0 %2119
    %2121 = vrot.lane.b32.xlu0 %v2106, 127
    %v2122 = vpop.permute.xlu0 %2121
    %2123 = vrot.lane.b32.xlu0 %v2107, 127
    %v2124 = vpop.permute.xlu0 %2123
    %2125 = vrot.lane.b32.xlu0 %v2108, 127
    %v2126 = vpop.permute.xlu0 %2125
    %v2133 = vadd.f32 %v2095, %v2116
    %v2134 = vadd.f32 %v2096, %v2118
    %v2135 = vadd.f32 %v2097, %v2120
    %v2136 = vadd.f32 %v2098, %v2122
    %v2137 = vadd.f32 %v2099, %v2124
    %v2138 = vadd.f32 %v2100, %v2126
    %s2139 = sld [smem:[#allocation9 + $0x182]]
    %v2140 = vstv %s2139
    %v2141 = vmul.f32 %v104, %v2140
    %v2142 = vmul.f32 %v105, %v2140
    %v2143 = vmul.f32 %v106, %v2140
    %v2144 = vmul.f32 %v107, %v2140
    %v2145 = vmul.f32 %v108, %v2140
    %v2146 = vmul.f32 %v109, %v2140
    %2153 = vrot.lane.b32.xlu0 %v2141, 126
    %v2154 = vpop.permute.xlu0 %2153
    %2155 = vrot.lane.b32.xlu0 %v2142, 126
    %v2156 = vpop.permute.xlu0 %2155
    %2157 = vrot.lane.b32.xlu0 %v2143, 126
    %v2158 = vpop.permute.xlu0 %2157
    %2159 = vrot.lane.b32.xlu0 %v2144, 126
    %v2160 = vpop.permute.xlu0 %2159
    %2161 = vrot.lane.b32.xlu0 %v2145, 126
    %v2162 = vpop.permute.xlu0 %2161
    %2163 = vrot.lane.b32.xlu0 %v2146, 126
    %v2164 = vpop.permute.xlu0 %2163
    %v2171 = vadd.f32 %v2133, %v2154
    %v2172 = vadd.f32 %v2134, %v2156
    %v2173 = vadd.f32 %v2135, %v2158
    %v2174 = vadd.f32 %v2136, %v2160
    %v2175 = vadd.f32 %v2137, %v2162
    %v2176 = vadd.f32 %v2138, %v2164
    %s2177 = sld [smem:[#allocation9 + $0x183]]
    %v2178 = vstv %s2177
    %v2179 = vmul.f32 %v104, %v2178
    %v2180 = vmul.f32 %v105, %v2178
    %v2181 = vmul.f32 %v106, %v2178
    %v2182 = vmul.f32 %v107, %v2178
    %v2183 = vmul.f32 %v108, %v2178
    %v2184 = vmul.f32 %v109, %v2178
    %v2191 = vrot.slane %v2179, 1
    %v2192 = vrot.slane %v2180, 1
    %v2193 = vsel %vm231, %v2191, %v2192
    %v2194 = vrot.slane %v2181, 1
    %v2195 = vsel %vm231, %v2192, %v2194
    %v2196 = vrot.slane %v2182, 1
    %v2197 = vrot.slane %v2183, 1
    %v2198 = vsel %vm231, %v2196, %v2197
    %v2199 = vrot.slane %v2184, 1
    %v2200 = vsel %vm231, %v2197, %v2199
    %v2207 = vadd.f32 %v2171, %v2193
    %v2208 = vadd.f32 %v2172, %v2195
    %v2209 = vadd.f32 %v2173, %v2194
    %v2210 = vadd.f32 %v2174, %v2198
    %v2211 = vadd.f32 %v2175, %v2200
    %v2212 = vadd.f32 %v2176, %v2199
    %s2213 = sld [smem:[#allocation9 + $0x184]]
    %v2214 = vstv %s2213
    %v2215 = vmul.f32 %v104, %v2214
    %v2216 = vmul.f32 %v105, %v2214
    %v2217 = vmul.f32 %v106, %v2214
    %v2218 = vmul.f32 %v107, %v2214
    %v2219 = vmul.f32 %v108, %v2214
    %v2220 = vmul.f32 %v109, %v2214
    %v2227 = vrot.slane %v2215, 1
    %v2228 = vrot.slane %v2216, 1
    %v2229 = vsel %vm231, %v2227, %v2228
    %v2230 = vrot.slane %v2217, 1
    %v2231 = vsel %vm231, %v2228, %v2230
    %v2232 = vrot.slane %v2218, 1
    %v2233 = vrot.slane %v2219, 1
    %v2234 = vsel %vm231, %v2232, %v2233
    %v2235 = vrot.slane %v2220, 1
    %v2236 = vsel %vm231, %v2233, %v2235
    %2237 = vrot.lane.b32.xlu0 %v2229, 127
    %v2238 = vpop.permute.xlu0 %2237
    %2239 = vrot.lane.b32.xlu0 %v2231, 127
    %v2240 = vpop.permute.xlu0 %2239
    %2241 = vrot.lane.b32.xlu0 %v2230, 127
    %v2242 = vpop.permute.xlu0 %2241
    %2243 = vrot.lane.b32.xlu0 %v2234, 127
    %v2244 = vpop.permute.xlu0 %2243
    %2245 = vrot.lane.b32.xlu0 %v2236, 127
    %v2246 = vpop.permute.xlu0 %2245
    %2247 = vrot.lane.b32.xlu0 %v2235, 127
    %v2248 = vpop.permute.xlu0 %2247
    %v2255 = vadd.f32 %v2207, %v2238
    %v2256 = vadd.f32 %v2208, %v2240
    %v2257 = vadd.f32 %v2209, %v2242
    %v2258 = vadd.f32 %v2210, %v2244
    %v2259 = vadd.f32 %v2211, %v2246
    %v2260 = vadd.f32 %v2212, %v2248
    %s2261 = sld [smem:[#allocation9 + $0x185]]
    %v2262 = vstv %s2261
    %v2263 = vmul.f32 %v104, %v2262
    %v2264 = vmul.f32 %v105, %v2262
    %v2265 = vmul.f32 %v106, %v2262
    %v2266 = vmul.f32 %v107, %v2262
    %v2267 = vmul.f32 %v108, %v2262
    %v2268 = vmul.f32 %v109, %v2262
    %v2275 = vrot.slane %v2263, 1
    %v2276 = vrot.slane %v2264, 1
    %v2277 = vsel %vm231, %v2275, %v2276
    %v2278 = vrot.slane %v2265, 1
    %v2279 = vsel %vm231, %v2276, %v2278
    %v2280 = vrot.slane %v2266, 1
    %v2281 = vrot.slane %v2267, 1
    %v2282 = vsel %vm231, %v2280, %v2281
    %v2283 = vrot.slane %v2268, 1
    %v2284 = vsel %vm231, %v2281, %v2283
    %2285 = vrot.lane.b32.xlu0 %v2277, 126
    %v2286 = vpop.permute.xlu0 %2285
    %2287 = vrot.lane.b32.xlu0 %v2279, 126
    %v2288 = vpop.permute.xlu0 %2287
    %2289 = vrot.lane.b32.xlu0 %v2278, 126
    %v2290 = vpop.permute.xlu0 %2289
    %2291 = vrot.lane.b32.xlu0 %v2282, 126
    %v2292 = vpop.permute.xlu0 %2291
    %2293 = vrot.lane.b32.xlu0 %v2284, 126
    %v2294 = vpop.permute.xlu0 %2293
    %2295 = vrot.lane.b32.xlu0 %v2283, 126
    %v2296 = vpop.permute.xlu0 %2295
    %v2303 = vadd.f32 %v2255, %v2286
    %v2304 = vadd.f32 %v2256, %v2288
    %v2305 = vadd.f32 %v2257, %v2290
    %v2306 = vadd.f32 %v2258, %v2292
    %v2307 = vadd.f32 %v2259, %v2294
    %v2308 = vadd.f32 %v2260, %v2296
    %s2309 = sld [smem:[#allocation9 + $0x186]]
    %v2310 = vstv %s2309
    %v2311 = vmul.f32 %v104, %v2310
    %v2312 = vmul.f32 %v105, %v2310
    %v2313 = vmul.f32 %v106, %v2310
    %v2314 = vmul.f32 %v107, %v2310
    %v2315 = vmul.f32 %v108, %v2310
    %v2316 = vmul.f32 %v109, %v2310
    %v2323 = vrot.slane %v2311, 2
    %v2324 = vrot.slane %v2312, 2
    %v2325 = vsel %vm364, %v2323, %v2324
    %v2326 = vrot.slane %v2313, 2
    %v2327 = vsel %vm364, %v2324, %v2326
    %v2328 = vrot.slane %v2314, 2
    %v2329 = vrot.slane %v2315, 2
    %v2330 = vsel %vm364, %v2328, %v2329
    %v2331 = vrot.slane %v2316, 2
    %v2332 = vsel %vm364, %v2329, %v2331
    %v2339 = vadd.f32 %v2303, %v2325
    %v2340 = vadd.f32 %v2304, %v2327
    %v2341 = vadd.f32 %v2305, %v2326
    %v2342 = vadd.f32 %v2306, %v2330
    %v2343 = vadd.f32 %v2307, %v2332
    %v2344 = vadd.f32 %v2308, %v2331
    %s2345 = sld [smem:[#allocation9 + $0x187]]
    %v2346 = vstv %s2345
    %v2347 = vmul.f32 %v104, %v2346
    %v2348 = vmul.f32 %v105, %v2346
    %v2349 = vmul.f32 %v106, %v2346
    %v2350 = vmul.f32 %v107, %v2346
    %v2351 = vmul.f32 %v108, %v2346
    %v2352 = vmul.f32 %v109, %v2346
    %v2359 = vrot.slane %v2347, 2
    %v2360 = vrot.slane %v2348, 2
    %v2361 = vsel %vm364, %v2359, %v2360
    %v2362 = vrot.slane %v2349, 2
    %v2363 = vsel %vm364, %v2360, %v2362
    %v2364 = vrot.slane %v2350, 2
    %v2365 = vrot.slane %v2351, 2
    %v2366 = vsel %vm364, %v2364, %v2365
    %v2367 = vrot.slane %v2352, 2
    %v2368 = vsel %vm364, %v2365, %v2367
    %2369 = vrot.lane.b32.xlu0 %v2361, 127
    %v2370 = vpop.permute.xlu0 %2369
    %2371 = vrot.lane.b32.xlu0 %v2363, 127
    %v2372 = vpop.permute.xlu0 %2371
    %2373 = vrot.lane.b32.xlu0 %v2362, 127
    %v2374 = vpop.permute.xlu0 %2373
    %2375 = vrot.lane.b32.xlu0 %v2366, 127
    %v2376 = vpop.permute.xlu0 %2375
    %2377 = vrot.lane.b32.xlu0 %v2368, 127
    %v2378 = vpop.permute.xlu0 %2377
    %2379 = vrot.lane.b32.xlu0 %v2367, 127
    %v2380 = vpop.permute.xlu0 %2379
    %v2387 = vadd.f32 %v2339, %v2370
    %v2388 = vadd.f32 %v2340, %v2372
    %v2389 = vadd.f32 %v2341, %v2374
    %v2390 = vadd.f32 %v2342, %v2376
    %v2391 = vadd.f32 %v2343, %v2378
    %v2392 = vadd.f32 %v2344, %v2380
    %s2393 = sld [smem:[#allocation9 + $0x188]]
    %v2394 = vstv %s2393
    %v2395 = vmul.f32 %v104, %v2394
    %v2396 = vmul.f32 %v105, %v2394
    %v2397 = vmul.f32 %v106, %v2394
    %v2398 = vmul.f32 %v107, %v2394
    %v2399 = vmul.f32 %v108, %v2394
    %v2400 = vmul.f32 %v109, %v2394
    %v2407 = vrot.slane %v2395, 2
    %v2408 = vrot.slane %v2396, 2
    %v2409 = vsel %vm364, %v2407, %v2408
    %v2410 = vrot.slane %v2397, 2
    %v2411 = vsel %vm364, %v2408, %v2410
    %v2412 = vrot.slane %v2398, 2
    %v2413 = vrot.slane %v2399, 2
    %v2414 = vsel %vm364, %v2412, %v2413
    %v2415 = vrot.slane %v2400, 2
    %v2416 = vsel %vm364, %v2413, %v2415
    %2417 = vrot.lane.b32.xlu0 %v2409, 126
    %v2418 = vpop.permute.xlu0 %2417
    %2419 = vrot.lane.b32.xlu0 %v2411, 126
    %v2420 = vpop.permute.xlu0 %2419
    %2421 = vrot.lane.b32.xlu0 %v2410, 126
    %v2422 = vpop.permute.xlu0 %2421
    %2423 = vrot.lane.b32.xlu0 %v2414, 126
    %v2424 = vpop.permute.xlu0 %2423
    %2425 = vrot.lane.b32.xlu0 %v2416, 126
    %v2426 = vpop.permute.xlu0 %2425
    %2427 = vrot.lane.b32.xlu0 %v2415, 126
    %v2428 = vpop.permute.xlu0 %2427
    %v2435 = vadd.f32 %v2387, %v2418
    %v2436 = vadd.f32 %v2388, %v2420
    %v2437 = vadd.f32 %v2389, %v2422
    %v2438 = vadd.f32 %v2390, %v2424
    %v2439 = vadd.f32 %v2391, %v2426
    %v2440 = vadd.f32 %v2392, %v2428
    %s2441 = sld [smem:[#allocation10 + $0x3]]
    %v2442 = vstv %s2441
    %v2443 = vadd.f32 %v2435, %v2442
    %v2444 = vadd.f32 %v2436, %v2442
    %v2445 = vadd.f32 %v2437, %v2442
    %v2446 = vadd.f32 %v2438, %v2442
    %v2447 = vadd.f32 %v2439, %v2442
    %v2448 = vadd.f32 %v2440, %v2442
    %v2449 = vmax.f32 %v2443, 0.0
    %v2450 = vmax.f32 %v2444, 0.0
    %v2451 = vmax.f32 %v2445, 0.0
    %v2452 = vmax.f32 %v2446, 0.0
    %v2453 = vmax.f32 %v2447, 0.0
    %v2454 = vmax.f32 %v2448, 0.0
    %v2455 = vsel %vm130, %v2449, 0.0
    %v2456 = vsel %vm131, %v2450, 0.0
    %v2457 = vsel %vm132, %v2451, 0.0
    %v2458 = vsel %vm130, %v2452, 0.0
    %v2459 = vsel %vm131, %v2453, 0.0
    %v2460 = vsel %vm132, %v2454, 0.0
    %s2461 = sld [smem:[#allocation11 + $0x180]]
    %v2462 = vstv %s2461
    %v2463 = vmul.f32 %v2462, %v2455
    %v2464 = vmul.f32 %v2462, %v2456
    %v2465 = vmul.f32 %v2462, %v2458
    %v2466 = vmul.f32 %v2462, %v2459
    %v2467 = vadd.f32 %v2089, %v2463
    %v2468 = vadd.f32 %v2090, %v2464
    %v2469 = vadd.f32 %v2091, %v2465
    %v2470 = vadd.f32 %v2092, %v2466
    %s2471 = sld [smem:[#allocation11 + $0x181]]
    %v2472 = vstv %s2471
    %v2473 = vmul.f32 %v2472, %v2455
    %v2474 = vmul.f32 %v2472, %v2456
    %v2475 = vmul.f32 %v2472, %v2458
    %v2476 = vmul.f32 %v2472, %v2459
    %2481 = vrot.lane.b32.xlu0 %v2473, 127
    %v2482 = vpop.permute.xlu0 %2481
    %2483 = vrot.lane.b32.xlu0 %v2474, 127
    %v2484 = vpop.permute.xlu0 %2483
    %2485 = vrot.lane.b32.xlu0 %v2475, 127
    %v2486 = vpop.permute.xlu0 %2485
    %2487 = vrot.lane.b32.xlu0 %v2476, 127
    %v2488 = vpop.permute.xlu0 %2487
    %v2493 = vadd.f32 %v2467, %v2482
    %v2494 = vadd.f32 %v2468, %v2484
    %v2495 = vadd.f32 %v2469, %v2486
    %v2496 = vadd.f32 %v2470, %v2488
    %s2497 = sld [smem:[#allocation11 + $0x182]]
    %v2498 = vstv %s2497
    %v2499 = vmul.f32 %v2498, %v2455
    %v2500 = vmul.f32 %v2498, %v2456
    %v2501 = vmul.f32 %v2498, %v2458
    %v2502 = vmul.f32 %v2498, %v2459
    %2507 = vrot.lane.b32.xlu0 %v2499, 126
    %v2508 = vpop.permute.xlu0 %2507
    %2509 = vrot.lane.b32.xlu0 %v2500, 126
    %v2510 = vpop.permute.xlu0 %2509
    %2511 = vrot.lane.b32.xlu0 %v2501, 126
    %v2512 = vpop.permute.xlu0 %2511
    %2513 = vrot.lane.b32.xlu0 %v2502, 126
    %v2514 = vpop.permute.xlu0 %2513
    %v2519 = vadd.f32 %v2493, %v2508
    %v2520 = vadd.f32 %v2494, %v2510
    %v2521 = vadd.f32 %v2495, %v2512
    %v2522 = vadd.f32 %v2496, %v2514
    %s2523 = sld [smem:[#allocation11 + $0x183]]
    %v2524 = vstv %s2523
    %v2525 = vmul.f32 %v2524, %v2455
    %v2526 = vmul.f32 %v2524, %v2456
    %v2527 = vmul.f32 %v2524, %v2457
    %v2528 = vmul.f32 %v2524, %v2458
    %v2529 = vmul.f32 %v2524, %v2459
    %v2530 = vmul.f32 %v2524, %v2460
    %v2537 = vrot.slane %v2525, 1
    %v2538 = vrot.slane %v2526, 1
    %v2539 = vsel %vm231, %v2537, %v2538
    %v2540 = vrot.slane %v2527, 1
    %v2541 = vsel %vm231, %v2538, %v2540
    %v2542 = vrot.slane %v2528, 1
    %v2543 = vrot.slane %v2529, 1
    %v2544 = vsel %vm231, %v2542, %v2543
    %v2545 = vrot.slane %v2530, 1
    %v2546 = vsel %vm231, %v2543, %v2545
    %v2551 = vadd.f32 %v2519, %v2539
    %v2552 = vadd.f32 %v2520, %v2541
    %v2553 = vadd.f32 %v2521, %v2544
    %v2554 = vadd.f32 %v2522, %v2546
    %s2555 = sld [smem:[#allocation11 + $0x184]]
    %v2556 = vstv %s2555
    %v2557 = vmul.f32 %v2556, %v2455
    %v2558 = vmul.f32 %v2556, %v2456
    %v2559 = vmul.f32 %v2556, %v2457
    %v2560 = vmul.f32 %v2556, %v2458
    %v2561 = vmul.f32 %v2556, %v2459
    %v2562 = vmul.f32 %v2556, %v2460
    %v2569 = vrot.slane %v2557, 1
    %v2570 = vrot.slane %v2558, 1
    %v2571 = vsel %vm231, %v2569, %v2570
    %v2572 = vrot.slane %v2559, 1
    %v2573 = vsel %vm231, %v2570, %v2572
    %v2574 = vrot.slane %v2560, 1
    %v2575 = vrot.slane %v2561, 1
    %v2576 = vsel %vm231, %v2574, %v2575
    %v2577 = vrot.slane %v2562, 1
    %v2578 = vsel %vm231, %v2575, %v2577
    %2579 = vrot.lane.b32.xlu0 %v2571, 127
    %v2580 = vpop.permute.xlu0 %2579
    %2581 = vrot.lane.b32.xlu0 %v2573, 127
    %v2582 = vpop.permute.xlu0 %2581
    %2583 = vrot.lane.b32.xlu0 %v2576, 127
    %v2584 = vpop.permute.xlu0 %2583
    %2585 = vrot.lane.b32.xlu0 %v2578, 127
    %v2586 = vpop.permute.xlu0 %2585
    %v2591 = vadd.f32 %v2551, %v2580
    %v2592 = vadd.f32 %v2552, %v2582
    %v2593 = vadd.f32 %v2553, %v2584
    %v2594 = vadd.f32 %v2554, %v2586
    %s2595 = sld [smem:[#allocation11 + $0x185]]
    %v2596 = vstv %s2595
    %v2597 = vmul.f32 %v2596, %v2455
    %v2598 = vmul.f32 %v2596, %v2456
    %v2599 = vmul.f32 %v2596, %v2457
    %v2600 = vmul.f32 %v2596, %v2458
    %v2601 = vmul.f32 %v2596, %v2459
    %v2602 = vmul.f32 %v2596, %v2460
    %v2609 = vrot.slane %v2597, 1
    %v2610 = vrot.slane %v2598, 1
    %v2611 = vsel %vm231, %v2609, %v2610
    %v2612 = vrot.slane %v2599, 1
    %v2613 = vsel %vm231, %v2610, %v2612
    %v2614 = vrot.slane %v2600, 1
    %v2615 = vrot.slane %v2601, 1
    %v2616 = vsel %vm231, %v2614, %v2615
    %v2617 = vrot.slane %v2602, 1
    %v2618 = vsel %vm231, %v2615, %v2617
    %2619 = vrot.lane.b32.xlu0 %v2611, 126
    %v2620 = vpop.permute.xlu0 %2619
    %2621 = vrot.lane.b32.xlu0 %v2613, 126
    %v2622 = vpop.permute.xlu0 %2621
    %2623 = vrot.lane.b32.xlu0 %v2616, 126
    %v2624 = vpop.permute.xlu0 %2623
    %2625 = vrot.lane.b32.xlu0 %v2618, 126
    %v2626 = vpop.permute.xlu0 %2625
    %v2631 = vadd.f32 %v2591, %v2620
    %v2632 = vadd.f32 %v2592, %v2622
    %v2633 = vadd.f32 %v2593, %v2624
    %v2634 = vadd.f32 %v2594, %v2626
    %s2635 = sld [smem:[#allocation11 + $0x186]]
    %v2636 = vstv %s2635
    %v2637 = vmul.f32 %v2636, %v2455
    %v2638 = vmul.f32 %v2636, %v2456
    %v2639 = vmul.f32 %v2636, %v2457
    %v2640 = vmul.f32 %v2636, %v2458
    %v2641 = vmul.f32 %v2636, %v2459
    %v2642 = vmul.f32 %v2636, %v2460
    %v2649 = vrot.slane %v2637, 2
    %v2650 = vrot.slane %v2638, 2
    %v2651 = vsel %vm364, %v2649, %v2650
    %v2652 = vrot.slane %v2639, 2
    %v2653 = vsel %vm364, %v2650, %v2652
    %v2654 = vrot.slane %v2640, 2
    %v2655 = vrot.slane %v2641, 2
    %v2656 = vsel %vm364, %v2654, %v2655
    %v2657 = vrot.slane %v2642, 2
    %v2658 = vsel %vm364, %v2655, %v2657
    %v2663 = vadd.f32 %v2631, %v2651
    %v2664 = vadd.f32 %v2632, %v2653
    %v2665 = vadd.f32 %v2633, %v2656
    %v2666 = vadd.f32 %v2634, %v2658
    %s2667 = sld [smem:[#allocation11 + $0x187]]
    %v2668 = vstv %s2667
    %v2669 = vmul.f32 %v2668, %v2455
    %v2670 = vmul.f32 %v2668, %v2456
    %v2671 = vmul.f32 %v2668, %v2457
    %v2672 = vmul.f32 %v2668, %v2458
    %v2673 = vmul.f32 %v2668, %v2459
    %v2674 = vmul.f32 %v2668, %v2460
    %v2681 = vrot.slane %v2669, 2
    %v2682 = vrot.slane %v2670, 2
    %v2683 = vsel %vm364, %v2681, %v2682
    %v2684 = vrot.slane %v2671, 2
    %v2685 = vsel %vm364, %v2682, %v2684
    %v2686 = vrot.slane %v2672, 2
    %v2687 = vrot.slane %v2673, 2
    %v2688 = vsel %vm364, %v2686, %v2687
    %v2689 = vrot.slane %v2674, 2
    %v2690 = vsel %vm364, %v2687, %v2689
    %2691 = vrot.lane.b32.xlu0 %v2683, 127
    %v2692 = vpop.permute.xlu0 %2691
    %2693 = vrot.lane.b32.xlu0 %v2685, 127
    %v2694 = vpop.permute.xlu0 %2693
    %2695 = vrot.lane.b32.xlu0 %v2688, 127
    %v2696 = vpop.permute.xlu0 %2695
    %2697 = vrot.lane.b32.xlu0 %v2690, 127
    %v2698 = vpop.permute.xlu0 %2697
    %v2703 = vadd.f32 %v2663, %v2692
    %v2704 = vadd.f32 %v2664, %v2694
    %v2705 = vadd.f32 %v2665, %v2696
    %v2706 = vadd.f32 %v2666, %v2698
    %s2707 = sld [smem:[#allocation11 + $0x188]]
    %v2708 = vstv %s2707
    %v2709 = vmul.f32 %v2708, %v2455
    %v2710 = vmul.f32 %v2708, %v2456
    %v2711 = vmul.f32 %v2708, %v2457
    %v2712 = vmul.f32 %v2708, %v2458
    %v2713 = vmul.f32 %v2708, %v2459
    %v2714 = vmul.f32 %v2708, %v2460
    %v2721 = vrot.slane %v2709, 2
    %v2722 = vrot.slane %v2710, 2
    %v2723 = vsel %vm364, %v2721, %v2722
    %v2724 = vrot.slane %v2711, 2
    %v2725 = vsel %vm364, %v2722, %v2724
    %v2726 = vrot.slane %v2712, 2
    %v2727 = vrot.slane %v2713, 2
    %v2728 = vsel %vm364, %v2726, %v2727
    %v2729 = vrot.slane %v2714, 2
    %v2730 = vsel %vm364, %v2727, %v2729
    %2731 = vrot.lane.b32.xlu0 %v2723, 126
    %v2732 = vpop.permute.xlu0 %2731
    %2733 = vrot.lane.b32.xlu0 %v2725, 126
    %v2734 = vpop.permute.xlu0 %2733
    %2735 = vrot.lane.b32.xlu0 %v2728, 126
    %v2736 = vpop.permute.xlu0 %2735
    %2737 = vrot.lane.b32.xlu0 %v2730, 126
    %v2738 = vpop.permute.xlu0 %2737
    %v2743 = vadd.f32 %v2703, %v2732
    %v2744 = vadd.f32 %v2704, %v2734
    %v2745 = vadd.f32 %v2705, %v2736
    %v2746 = vadd.f32 %v2706, %v2738
    %s2747 = sld [smem:[#allocation9 + $0x200]]
    %v2748 = vstv %s2747
    %v2749 = vmul.f32 %v104, %v2748
    %v2750 = vmul.f32 %v105, %v2748
    %v2751 = vmul.f32 %v106, %v2748
    %v2752 = vmul.f32 %v107, %v2748
    %v2753 = vmul.f32 %v108, %v2748
    %v2754 = vmul.f32 %v109, %v2748
    %s2755 = sld [smem:[#allocation9 + $0x201]]
    %v2756 = vstv %s2755
    %v2757 = vmul.f32 %v104, %v2756
    %v2758 = vmul.f32 %v105, %v2756
    %v2759 = vmul.f32 %v106, %v2756
    %v2760 = vmul.f32 %v107, %v2756
    %v2761 = vmul.f32 %v108, %v2756
    %v2762 = vmul.f32 %v109, %v2756
    %2769 = vrot.lane.b32.xlu0 %v2757, 127
    %v2770 = vpop.permute.xlu0 %2769
    %2771 = vrot.lane.b32.xlu0 %v2758, 127
    %v2772 = vpop.permute.xlu0 %2771
    %2773 = vrot.lane.b32.xlu0 %v2759, 127
    %v2774 = vpop.permute.xlu0 %2773
    %2775 = vrot.lane.b32.xlu0 %v2760, 127
    %v2776 = vpop.permute.xlu0 %2775
    %2777 = vrot.lane.b32.xlu0 %v2761, 127
    %v2778 = vpop.permute.xlu0 %2777
    %2779 = vrot.lane.b32.xlu0 %v2762, 127
    %v2780 = vpop.permute.xlu0 %2779
    %v2787 = vadd.f32 %v2749, %v2770
    %v2788 = vadd.f32 %v2750, %v2772
    %v2789 = vadd.f32 %v2751, %v2774
    %v2790 = vadd.f32 %v2752, %v2776
    %v2791 = vadd.f32 %v2753, %v2778
    %v2792 = vadd.f32 %v2754, %v2780
    %s2793 = sld [smem:[#allocation9 + $0x202]]
    %v2794 = vstv %s2793
    %v2795 = vmul.f32 %v104, %v2794
    %v2796 = vmul.f32 %v105, %v2794
    %v2797 = vmul.f32 %v106, %v2794
    %v2798 = vmul.f32 %v107, %v2794
    %v2799 = vmul.f32 %v108, %v2794
    %v2800 = vmul.f32 %v109, %v2794
    %2807 = vrot.lane.b32.xlu0 %v2795, 126
    %v2808 = vpop.permute.xlu0 %2807
    %2809 = vrot.lane.b32.xlu0 %v2796, 126
    %v2810 = vpop.permute.xlu0 %2809
    %2811 = vrot.lane.b32.xlu0 %v2797, 126
    %v2812 = vpop.permute.xlu0 %2811
    %2813 = vrot.lane.b32.xlu0 %v2798, 126
    %v2814 = vpop.permute.xlu0 %2813
    %2815 = vrot.lane.b32.xlu0 %v2799, 126
    %v2816 = vpop.permute.xlu0 %2815
    %2817 = vrot.lane.b32.xlu0 %v2800, 126
    %v2818 = vpop.permute.xlu0 %2817
    %v2825 = vadd.f32 %v2787, %v2808
    %v2826 = vadd.f32 %v2788, %v2810
    %v2827 = vadd.f32 %v2789, %v2812
    %v2828 = vadd.f32 %v2790, %v2814
    %v2829 = vadd.f32 %v2791, %v2816
    %v2830 = vadd.f32 %v2792, %v2818
    %s2831 = sld [smem:[#allocation9 + $0x203]]
    %v2832 = vstv %s2831
    %v2833 = vmul.f32 %v104, %v2832
    %v2834 = vmul.f32 %v105, %v2832
    %v2835 = vmul.f32 %v106, %v2832
    %v2836 = vmul.f32 %v107, %v2832
    %v2837 = vmul.f32 %v108, %v2832
    %v2838 = vmul.f32 %v109, %v2832
    %v2845 = vrot.slane %v2833, 1
    %v2846 = vrot.slane %v2834, 1
    %v2847 = vsel %vm231, %v2845, %v2846
    %v2848 = vrot.slane %v2835, 1
    %v2849 = vsel %vm231, %v2846, %v2848
    %v2850 = vrot.slane %v2836, 1
    %v2851 = vrot.slane %v2837, 1
    %v2852 = vsel %vm231, %v2850, %v2851
    %v2853 = vrot.slane %v2838, 1
    %v2854 = vsel %vm231, %v2851, %v2853
    %v2861 = vadd.f32 %v2825, %v2847
    %v2862 = vadd.f32 %v2826, %v2849
    %v2863 = vadd.f32 %v2827, %v2848
    %v2864 = vadd.f32 %v2828, %v2852
    %v2865 = vadd.f32 %v2829, %v2854
    %v2866 = vadd.f32 %v2830, %v2853
    %s2867 = sld [smem:[#allocation9 + $0x204]]
    %v2868 = vstv %s2867
    %v2869 = vmul.f32 %v104, %v2868
    %v2870 = vmul.f32 %v105, %v2868
    %v2871 = vmul.f32 %v106, %v2868
    %v2872 = vmul.f32 %v107, %v2868
    %v2873 = vmul.f32 %v108, %v2868
    %v2874 = vmul.f32 %v109, %v2868
    %v2881 = vrot.slane %v2869, 1
    %v2882 = vrot.slane %v2870, 1
    %v2883 = vsel %vm231, %v2881, %v2882
    %v2884 = vrot.slane %v2871, 1
    %v2885 = vsel %vm231, %v2882, %v2884
    %v2886 = vrot.slane %v2872, 1
    %v2887 = vrot.slane %v2873, 1
    %v2888 = vsel %vm231, %v2886, %v2887
    %v2889 = vrot.slane %v2874, 1
    %v2890 = vsel %vm231, %v2887, %v2889
    %2891 = vrot.lane.b32.xlu0 %v2883, 127
    %v2892 = vpop.permute.xlu0 %2891
    %2893 = vrot.lane.b32.xlu0 %v2885, 127
    %v2894 = vpop.permute.xlu0 %2893
    %2895 = vrot.lane.b32.xlu0 %v2884, 127
    %v2896 = vpop.permute.xlu0 %2895
    %2897 = vrot.lane.b32.xlu0 %v2888, 127
    %v2898 = vpop.permute.xlu0 %2897
    %2899 = vrot.lane.b32.xlu0 %v2890, 127
    %v2900 = vpop.permute.xlu0 %2899
    %2901 = vrot.lane.b32.xlu0 %v2889, 127
    %v2902 = vpop.permute.xlu0 %2901
    %v2909 = vadd.f32 %v2861, %v2892
    %v2910 = vadd.f32 %v2862, %v2894
    %v2911 = vadd.f32 %v2863, %v2896
    %v2912 = vadd.f32 %v2864, %v2898
    %v2913 = vadd.f32 %v2865, %v2900
    %v2914 = vadd.f32 %v2866, %v2902
    %s2915 = sld [smem:[#allocation9 + $0x205]]
    %v2916 = vstv %s2915
    %v2917 = vmul.f32 %v104, %v2916
    %v2918 = vmul.f32 %v105, %v2916
    %v2919 = vmul.f32 %v106, %v2916
    %v2920 = vmul.f32 %v107, %v2916
    %v2921 = vmul.f32 %v108, %v2916
    %v2922 = vmul.f32 %v109, %v2916
    %v2929 = vrot.slane %v2917, 1
    %v2930 = vrot.slane %v2918, 1
    %v2931 = vsel %vm231, %v2929, %v2930
    %v2932 = vrot.slane %v2919, 1
    %v2933 = vsel %vm231, %v2930, %v2932
    %v2934 = vrot.slane %v2920, 1
    %v2935 = vrot.slane %v2921, 1
    %v2936 = vsel %vm231, %v2934, %v2935
    %v2937 = vrot.slane %v2922, 1
    %v2938 = vsel %vm231, %v2935, %v2937
    %2939 = vrot.lane.b32.xlu0 %v2931, 126
    %v2940 = vpop.permute.xlu0 %2939
    %2941 = vrot.lane.b32.xlu0 %v2933, 126
    %v2942 = vpop.permute.xlu0 %2941
    %2943 = vrot.lane.b32.xlu0 %v2932, 126
    %v2944 = vpop.permute.xlu0 %2943
    %2945 = vrot.lane.b32.xlu0 %v2936, 126
    %v2946 = vpop.permute.xlu0 %2945
    %2947 = vrot.lane.b32.xlu0 %v2938, 126
    %v2948 = vpop.permute.xlu0 %2947
    %2949 = vrot.lane.b32.xlu0 %v2937, 126
    %v2950 = vpop.permute.xlu0 %2949
    %v2957 = vadd.f32 %v2909, %v2940
    %v2958 = vadd.f32 %v2910, %v2942
    %v2959 = vadd.f32 %v2911, %v2944
    %v2960 = vadd.f32 %v2912, %v2946
    %v2961 = vadd.f32 %v2913, %v2948
    %v2962 = vadd.f32 %v2914, %v2950
    %s2963 = sld [smem:[#allocation9 + $0x206]]
    %v2964 = vstv %s2963
    %v2965 = vmul.f32 %v104, %v2964
    %v2966 = vmul.f32 %v105, %v2964
    %v2967 = vmul.f32 %v106, %v2964
    %v2968 = vmul.f32 %v107, %v2964
    %v2969 = vmul.f32 %v108, %v2964
    %v2970 = vmul.f32 %v109, %v2964
    %v2977 = vrot.slane %v2965, 2
    %v2978 = vrot.slane %v2966, 2
    %v2979 = vsel %vm364, %v2977, %v2978
    %v2980 = vrot.slane %v2967, 2
    %v2981 = vsel %vm364, %v2978, %v2980
    %v2982 = vrot.slane %v2968, 2
    %v2983 = vrot.slane %v2969, 2
    %v2984 = vsel %vm364, %v2982, %v2983
    %v2985 = vrot.slane %v2970, 2
    %v2986 = vsel %vm364, %v2983, %v2985
    %v2993 = vadd.f32 %v2957, %v2979
    %v2994 = vadd.f32 %v2958, %v2981
    %v2995 = vadd.f32 %v2959, %v2980
    %v2996 = vadd.f32 %v2960, %v2984
    %v2997 = vadd.f32 %v2961, %v2986
    %v2998 = vadd.f32 %v2962, %v2985
    %s2999 = sld [smem:[#allocation9 + $0x207]]
    %v3000 = vstv %s2999
    %v3001 = vmul.f32 %v104, %v3000
    %v3002 = vmul.f32 %v105, %v3000
    %v3003 = vmul.f32 %v106, %v3000
    %v3004 = vmul.f32 %v107, %v3000
    %v3005 = vmul.f32 %v108, %v3000
    %v3006 = vmul.f32 %v109, %v3000
    %v3013 = vrot.slane %v3001, 2
    %v3014 = vrot.slane %v3002, 2
    %v3015 = vsel %vm364, %v3013, %v3014
    %v3016 = vrot.slane %v3003, 2
    %v3017 = vsel %vm364, %v3014, %v3016
    %v3018 = vrot.slane %v3004, 2
    %v3019 = vrot.slane %v3005, 2
    %v3020 = vsel %vm364, %v3018, %v3019
    %v3021 = vrot.slane %v3006, 2
    %v3022 = vsel %vm364, %v3019, %v3021
    %3023 = vrot.lane.b32.xlu0 %v3015, 127
    %v3024 = vpop.permute.xlu0 %3023
    %3025 = vrot.lane.b32.xlu0 %v3017, 127
    %v3026 = vpop.permute.xlu0 %3025
    %3027 = vrot.lane.b32.xlu0 %v3016, 127
    %v3028 = vpop.permute.xlu0 %3027
    %3029 = vrot.lane.b32.xlu0 %v3020, 127
    %v3030 = vpop.permute.xlu0 %3029
    %3031 = vrot.lane.b32.xlu0 %v3022, 127
    %v3032 = vpop.permute.xlu0 %3031
    %3033 = vrot.lane.b32.xlu0 %v3021, 127
    %v3034 = vpop.permute.xlu0 %3033
    %v3041 = vadd.f32 %v2993, %v3024
    %v3042 = vadd.f32 %v2994, %v3026
    %v3043 = vadd.f32 %v2995, %v3028
    %v3044 = vadd.f32 %v2996, %v3030
    %v3045 = vadd.f32 %v2997, %v3032
    %v3046 = vadd.f32 %v2998, %v3034
    %s3047 = sld [smem:[#allocation9 + $0x208]]
    %v3048 = vstv %s3047
    %v3049 = vmul.f32 %v104, %v3048
    %v3050 = vmul.f32 %v105, %v3048
    %v3051 = vmul.f32 %v106, %v3048
    %v3052 = vmul.f32 %v107, %v3048
    %v3053 = vmul.f32 %v108, %v3048
    %v3054 = vmul.f32 %v109, %v3048
    %v3061 = vrot.slane %v3049, 2
    %v3062 = vrot.slane %v3050, 2
    %v3063 = vsel %vm364, %v3061, %v3062
    %v3064 = vrot.slane %v3051, 2
    %v3065 = vsel %vm364, %v3062, %v3064
    %v3066 = vrot.slane %v3052, 2
    %v3067 = vrot.slane %v3053, 2
    %v3068 = vsel %vm364, %v3066, %v3067
    %v3069 = vrot.slane %v3054, 2
    %v3070 = vsel %vm364, %v3067, %v3069
    %3071 = vrot.lane.b32.xlu0 %v3063, 126
    %v3072 = vpop.permute.xlu0 %3071
    %3073 = vrot.lane.b32.xlu0 %v3065, 126
    %v3074 = vpop.permute.xlu0 %3073
    %3075 = vrot.lane.b32.xlu0 %v3064, 126
    %v3076 = vpop.permute.xlu0 %3075
    %3077 = vrot.lane.b32.xlu0 %v3068, 126
    %v3078 = vpop.permute.xlu0 %3077
    %3079 = vrot.lane.b32.xlu0 %v3070, 126
    %v3080 = vpop.permute.xlu0 %3079
    %3081 = vrot.lane.b32.xlu0 %v3069, 126
    %v3082 = vpop.permute.xlu0 %3081
    %v3089 = vadd.f32 %v3041, %v3072
    %v3090 = vadd.f32 %v3042, %v3074
    %v3091 = vadd.f32 %v3043, %v3076
    %v3092 = vadd.f32 %v3044, %v3078
    %v3093 = vadd.f32 %v3045, %v3080
    %v3094 = vadd.f32 %v3046, %v3082
    %s3095 = sld [smem:[#allocation10 + $0x4]]
    %v3096 = vstv %s3095
    %v3097 = vadd.f32 %v3089, %v3096
    %v3098 = vadd.f32 %v3090, %v3096
    %v3099 = vadd.f32 %v3091, %v3096
    %v3100 = vadd.f32 %v3092, %v3096
    %v3101 = vadd.f32 %v3093, %v3096
    %v3102 = vadd.f32 %v3094, %v3096
    %v3103 = vmax.f32 %v3097, 0.0
    %v3104 = vmax.f32 %v3098, 0.0
    %v3105 = vmax.f32 %v3099, 0.0
    %v3106 = vmax.f32 %v3100, 0.0
    %v3107 = vmax.f32 %v3101, 0.0
    %v3108 = vmax.f32 %v3102, 0.0
    %v3109 = vsel %vm130, %v3103, 0.0
    %v3110 = vsel %vm131, %v3104, 0.0
    %v3111 = vsel %vm132, %v3105, 0.0
    %v3112 = vsel %vm130, %v3106, 0.0
    %v3113 = vsel %vm131, %v3107, 0.0
    %v3114 = vsel %vm132, %v3108, 0.0
    %s3115 = sld [smem:[#allocation11 + $0x200]]
    %v3116 = vstv %s3115
    %v3117 = vmul.f32 %v3116, %v3109
    %v3118 = vmul.f32 %v3116, %v3110
    %v3119 = vmul.f32 %v3116, %v3112
    %v3120 = vmul.f32 %v3116, %v3113
    %v3121 = vadd.f32 %v2743, %v3117
    %v3122 = vadd.f32 %v2744, %v3118
    %v3123 = vadd.f32 %v2745, %v3119
    %v3124 = vadd.f32 %v2746, %v3120
    %s3125 = sld [smem:[#allocation11 + $0x201]]
    %v3126 = vstv %s3125
    %v3127 = vmul.f32 %v3126, %v3109
    %v3128 = vmul.f32 %v3126, %v3110
    %v3129 = vmul.f32 %v3126, %v3112
    %v3130 = vmul.f32 %v3126, %v3113
    %3135 = vrot.lane.b32.xlu0 %v3127, 127
    %v3136 = vpop.permute.xlu0 %3135
    %3137 = vrot.lane.b32.xlu0 %v3128, 127
    %v3138 = vpop.permute.xlu0 %3137
    %3139 = vrot.lane.b32.xlu0 %v3129, 127
    %v3140 = vpop.permute.xlu0 %3139
    %3141 = vrot.lane.b32.xlu0 %v3130, 127
    %v3142 = vpop.permute.xlu0 %3141
    %v3147 = vadd.f32 %v3121, %v3136
    %v3148 = vadd.f32 %v3122, %v3138
    %v3149 = vadd.f32 %v3123, %v3140
    %v3150 = vadd.f32 %v3124, %v3142
    %s3151 = sld [smem:[#allocation11 + $0x202]]
    %v3152 = vstv %s3151
    %v3153 = vmul.f32 %v3152, %v3109
    %v3154 = vmul.f32 %v3152, %v3110
    %v3155 = vmul.f32 %v3152, %v3112
    %v3156 = vmul.f32 %v3152, %v3113
    %3161 = vrot.lane.b32.xlu0 %v3153, 126
    %v3162 = vpop.permute.xlu0 %3161
    %3163 = vrot.lane.b32.xlu0 %v3154, 126
    %v3164 = vpop.permute.xlu0 %3163
    %3165 = vrot.lane.b32.xlu0 %v3155, 126
    %v3166 = vpop.permute.xlu0 %3165
    %3167 = vrot.lane.b32.xlu0 %v3156, 126
    %v3168 = vpop.permute.xlu0 %3167
    %v3173 = vadd.f32 %v3147, %v3162
    %v3174 = vadd.f32 %v3148, %v3164
    %v3175 = vadd.f32 %v3149, %v3166
    %v3176 = vadd.f32 %v3150, %v3168
    %s3177 = sld [smem:[#allocation11 + $0x203]]
    %v3178 = vstv %s3177
    %v3179 = vmul.f32 %v3178, %v3109
    %v3180 = vmul.f32 %v3178, %v3110
    %v3181 = vmul.f32 %v3178, %v3111
    %v3182 = vmul.f32 %v3178, %v3112
    %v3183 = vmul.f32 %v3178, %v3113
    %v3184 = vmul.f32 %v3178, %v3114
    %v3191 = vrot.slane %v3179, 1
    %v3192 = vrot.slane %v3180, 1
    %v3193 = vsel %vm231, %v3191, %v3192
    %v3194 = vrot.slane %v3181, 1
    %v3195 = vsel %vm231, %v3192, %v3194
    %v3196 = vrot.slane %v3182, 1
    %v3197 = vrot.slane %v3183, 1
    %v3198 = vsel %vm231, %v3196, %v3197
    %v3199 = vrot.slane %v3184, 1
    %v3200 = vsel %vm231, %v3197, %v3199
    %v3205 = vadd.f32 %v3173, %v3193
    %v3206 = vadd.f32 %v3174, %v3195
    %v3207 = vadd.f32 %v3175, %v3198
    %v3208 = vadd.f32 %v3176, %v3200
    %s3209 = sld [smem:[#allocation11 + $0x204]]
    %v3210 = vstv %s3209
    %v3211 = vmul.f32 %v3210, %v3109
    %v3212 = vmul.f32 %v3210, %v3110
    %v3213 = vmul.f32 %v3210, %v3111
    %v3214 = vmul.f32 %v3210, %v3112
    %v3215 = vmul.f32 %v3210, %v3113
    %v3216 = vmul.f32 %v3210, %v3114
    %v3223 = vrot.slane %v3211, 1
    %v3224 = vrot.slane %v3212, 1
    %v3225 = vsel %vm231, %v3223, %v3224
    %v3226 = vrot.slane %v3213, 1
    %v3227 = vsel %vm231, %v3224, %v3226
    %v3228 = vrot.slane %v3214, 1
    %v3229 = vrot.slane %v3215, 1
    %v3230 = vsel %vm231, %v3228, %v3229
    %v3231 = vrot.slane %v3216, 1
    %v3232 = vsel %vm231, %v3229, %v3231
    %3233 = vrot.lane.b32.xlu0 %v3225, 127
    %v3234 = vpop.permute.xlu0 %3233
    %3235 = vrot.lane.b32.xlu0 %v3227, 127
    %v3236 = vpop.permute.xlu0 %3235
    %3237 = vrot.lane.b32.xlu0 %v3230, 127
    %v3238 = vpop.permute.xlu0 %3237
    %3239 = vrot.lane.b32.xlu0 %v3232, 127
    %v3240 = vpop.permute.xlu0 %3239
    %v3245 = vadd.f32 %v3205, %v3234
    %v3246 = vadd.f32 %v3206, %v3236
    %v3247 = vadd.f32 %v3207, %v3238
    %v3248 = vadd.f32 %v3208, %v3240
    %s3249 = sld [smem:[#allocation11 + $0x205]]
    %v3250 = vstv %s3249
    %v3251 = vmul.f32 %v3250, %v3109
    %v3252 = vmul.f32 %v3250, %v3110
    %v3253 = vmul.f32 %v3250, %v3111
    %v3254 = vmul.f32 %v3250, %v3112
    %v3255 = vmul.f32 %v3250, %v3113
    %v3256 = vmul.f32 %v3250, %v3114
    %v3263 = vrot.slane %v3251, 1
    %v3264 = vrot.slane %v3252, 1
    %v3265 = vsel %vm231, %v3263, %v3264
    %v3266 = vrot.slane %v3253, 1
    %v3267 = vsel %vm231, %v3264, %v3266
    %v3268 = vrot.slane %v3254, 1
    %v3269 = vrot.slane %v3255, 1
    %v3270 = vsel %vm231, %v3268, %v3269
    %v3271 = vrot.slane %v3256, 1
    %v3272 = vsel %vm231, %v3269, %v3271
    %3273 = vrot.lane.b32.xlu0 %v3265, 126
    %v3274 = vpop.permute.xlu0 %3273
    %3275 = vrot.lane.b32.xlu0 %v3267, 126
    %v3276 = vpop.permute.xlu0 %3275
    %3277 = vrot.lane.b32.xlu0 %v3270, 126
    %v3278 = vpop.permute.xlu0 %3277
    %3279 = vrot.lane.b32.xlu0 %v3272, 126
    %v3280 = vpop.permute.xlu0 %3279
    %v3285 = vadd.f32 %v3245, %v3274
    %v3286 = vadd.f32 %v3246, %v3276
    %v3287 = vadd.f32 %v3247, %v3278
    %v3288 = vadd.f32 %v3248, %v3280
    %s3289 = sld [smem:[#allocation11 + $0x206]]
    %v3290 = vstv %s3289
    %v3291 = vmul.f32 %v3290, %v3109
    %v3292 = vmul.f32 %v3290, %v3110
    %v3293 = vmul.f32 %v3290, %v3111
    %v3294 = vmul.f32 %v3290, %v3112
    %v3295 = vmul.f32 %v3290, %v3113
    %v3296 = vmul.f32 %v3290, %v3114
    %v3303 = vrot.slane %v3291, 2
    %v3304 = vrot.slane %v3292, 2
    %v3305 = vsel %vm364, %v3303, %v3304
    %v3306 = vrot.slane %v3293, 2
    %v3307 = vsel %vm364, %v3304, %v3306
    %v3308 = vrot.slane %v3294, 2
    %v3309 = vrot.slane %v3295, 2
    %v3310 = vsel %vm364, %v3308, %v3309
    %v3311 = vrot.slane %v3296, 2
    %v3312 = vsel %vm364, %v3309, %v3311
    %v3317 = vadd.f32 %v3285, %v3305
    %v3318 = vadd.f32 %v3286, %v3307
    %v3319 = vadd.f32 %v3287, %v3310
    %v3320 = vadd.f32 %v3288, %v3312
    %s3321 = sld [smem:[#allocation11 + $0x207]]
    %v3322 = vstv %s3321
    %v3323 = vmul.f32 %v3322, %v3109
    %v3324 = vmul.f32 %v3322, %v3110
    %v3325 = vmul.f32 %v3322, %v3111
    %v3326 = vmul.f32 %v3322, %v3112
    %v3327 = vmul.f32 %v3322, %v3113
    %v3328 = vmul.f32 %v3322, %v3114
    %v3335 = vrot.slane %v3323, 2
    %v3336 = vrot.slane %v3324, 2
    %v3337 = vsel %vm364, %v3335, %v3336
    %v3338 = vrot.slane %v3325, 2
    %v3339 = vsel %vm364, %v3336, %v3338
    %v3340 = vrot.slane %v3326, 2
    %v3341 = vrot.slane %v3327, 2
    %v3342 = vsel %vm364, %v3340, %v3341
    %v3343 = vrot.slane %v3328, 2
    %v3344 = vsel %vm364, %v3341, %v3343
    %3345 = vrot.lane.b32.xlu0 %v3337, 127
    %v3346 = vpop.permute.xlu0 %3345
    %3347 = vrot.lane.b32.xlu0 %v3339, 127
    %v3348 = vpop.permute.xlu0 %3347
    %3349 = vrot.lane.b32.xlu0 %v3342, 127
    %v3350 = vpop.permute.xlu0 %3349
    %3351 = vrot.lane.b32.xlu0 %v3344, 127
    %v3352 = vpop.permute.xlu0 %3351
    %v3357 = vadd.f32 %v3317, %v3346
    %v3358 = vadd.f32 %v3318, %v3348
    %v3359 = vadd.f32 %v3319, %v3350
    %v3360 = vadd.f32 %v3320, %v3352
    %s3361 = sld [smem:[#allocation11 + $0x208]]
    %v3362 = vstv %s3361
    %v3363 = vmul.f32 %v3362, %v3109
    %v3364 = vmul.f32 %v3362, %v3110
    %v3365 = vmul.f32 %v3362, %v3111
    %v3366 = vmul.f32 %v3362, %v3112
    %v3367 = vmul.f32 %v3362, %v3113
    %v3368 = vmul.f32 %v3362, %v3114
    %v3375 = vrot.slane %v3363, 2
    %v3376 = vrot.slane %v3364, 2
    %v3377 = vsel %vm364, %v3375, %v3376
    %v3378 = vrot.slane %v3365, 2
    %v3379 = vsel %vm364, %v3376, %v3378
    %v3380 = vrot.slane %v3366, 2
    %v3381 = vrot.slane %v3367, 2
    %v3382 = vsel %vm364, %v3380, %v3381
    %v3383 = vrot.slane %v3368, 2
    %v3384 = vsel %vm364, %v3381, %v3383
    %3385 = vrot.lane.b32.xlu0 %v3377, 126
    %v3386 = vpop.permute.xlu0 %3385
    %3387 = vrot.lane.b32.xlu0 %v3379, 126
    %v3388 = vpop.permute.xlu0 %3387
    %3389 = vrot.lane.b32.xlu0 %v3382, 126
    %v3390 = vpop.permute.xlu0 %3389
    %3391 = vrot.lane.b32.xlu0 %v3384, 126
    %v3392 = vpop.permute.xlu0 %3391
    %v3397 = vadd.f32 %v3357, %v3386
    %v3398 = vadd.f32 %v3358, %v3388
    %v3399 = vadd.f32 %v3359, %v3390
    %v3400 = vadd.f32 %v3360, %v3392
    %s3401 = sld [smem:[#allocation9 + $0x280]]
    %v3402 = vstv %s3401
    %v3403 = vmul.f32 %v104, %v3402
    %v3404 = vmul.f32 %v105, %v3402
    %v3405 = vmul.f32 %v106, %v3402
    %v3406 = vmul.f32 %v107, %v3402
    %v3407 = vmul.f32 %v108, %v3402
    %v3408 = vmul.f32 %v109, %v3402
    %s3409 = sld [smem:[#allocation9 + $0x281]]
    %v3410 = vstv %s3409
    %v3411 = vmul.f32 %v104, %v3410
    %v3412 = vmul.f32 %v105, %v3410
    %v3413 = vmul.f32 %v106, %v3410
    %v3414 = vmul.f32 %v107, %v3410
    %v3415 = vmul.f32 %v108, %v3410
    %v3416 = vmul.f32 %v109, %v3410
    %3423 = vrot.lane.b32.xlu0 %v3411, 127
    %v3424 = vpop.permute.xlu0 %3423
    %3425 = vrot.lane.b32.xlu0 %v3412, 127
    %v3426 = vpop.permute.xlu0 %3425
    %3427 = vrot.lane.b32.xlu0 %v3413, 127
    %v3428 = vpop.permute.xlu0 %3427
    %3429 = vrot.lane.b32.xlu0 %v3414, 127
    %v3430 = vpop.permute.xlu0 %3429
    %3431 = vrot.lane.b32.xlu0 %v3415, 127
    %v3432 = vpop.permute.xlu0 %3431
    %3433 = vrot.lane.b32.xlu0 %v3416, 127
    %v3434 = vpop.permute.xlu0 %3433
    %v3441 = vadd.f32 %v3403, %v3424
    %v3442 = vadd.f32 %v3404, %v3426
    %v3443 = vadd.f32 %v3405, %v3428
    %v3444 = vadd.f32 %v3406, %v3430
    %v3445 = vadd.f32 %v3407, %v3432
    %v3446 = vadd.f32 %v3408, %v3434
    %s3447 = sld [smem:[#allocation9 + $0x282]]
    %v3448 = vstv %s3447
    %v3449 = vmul.f32 %v104, %v3448
    %v3450 = vmul.f32 %v105, %v3448
    %v3451 = vmul.f32 %v106, %v3448
    %v3452 = vmul.f32 %v107, %v3448
    %v3453 = vmul.f32 %v108, %v3448
    %v3454 = vmul.f32 %v109, %v3448
    %3461 = vrot.lane.b32.xlu0 %v3449, 126
    %v3462 = vpop.permute.xlu0 %3461
    %3463 = vrot.lane.b32.xlu0 %v3450, 126
    %v3464 = vpop.permute.xlu0 %3463
    %3465 = vrot.lane.b32.xlu0 %v3451, 126
    %v3466 = vpop.permute.xlu0 %3465
    %3467 = vrot.lane.b32.xlu0 %v3452, 126
    %v3468 = vpop.permute.xlu0 %3467
    %3469 = vrot.lane.b32.xlu0 %v3453, 126
    %v3470 = vpop.permute.xlu0 %3469
    %3471 = vrot.lane.b32.xlu0 %v3454, 126
    %v3472 = vpop.permute.xlu0 %3471
    %v3479 = vadd.f32 %v3441, %v3462
    %v3480 = vadd.f32 %v3442, %v3464
    %v3481 = vadd.f32 %v3443, %v3466
    %v3482 = vadd.f32 %v3444, %v3468
    %v3483 = vadd.f32 %v3445, %v3470
    %v3484 = vadd.f32 %v3446, %v3472
    %s3485 = sld [smem:[#allocation9 + $0x283]]
    %v3486 = vstv %s3485
    %v3487 = vmul.f32 %v104, %v3486
    %v3488 = vmul.f32 %v105, %v3486
    %v3489 = vmul.f32 %v106, %v3486
    %v3490 = vmul.f32 %v107, %v3486
    %v3491 = vmul.f32 %v108, %v3486
    %v3492 = vmul.f32 %v109, %v3486
    %v3499 = vrot.slane %v3487, 1
    %v3500 = vrot.slane %v3488, 1
    %v3501 = vsel %vm231, %v3499, %v3500
    %v3502 = vrot.slane %v3489, 1
    %v3503 = vsel %vm231, %v3500, %v3502
    %v3504 = vrot.slane %v3490, 1
    %v3505 = vrot.slane %v3491, 1
    %v3506 = vsel %vm231, %v3504, %v3505
    %v3507 = vrot.slane %v3492, 1
    %v3508 = vsel %vm231, %v3505, %v3507
    %v3515 = vadd.f32 %v3479, %v3501
    %v3516 = vadd.f32 %v3480, %v3503
    %v3517 = vadd.f32 %v3481, %v3502
    %v3518 = vadd.f32 %v3482, %v3506
    %v3519 = vadd.f32 %v3483, %v3508
    %v3520 = vadd.f32 %v3484, %v3507
    %s3521 = sld [smem:[#allocation9 + $0x284]]
    %v3522 = vstv %s3521
    %v3523 = vmul.f32 %v104, %v3522
    %v3524 = vmul.f32 %v105, %v3522
    %v3525 = vmul.f32 %v106, %v3522
    %v3526 = vmul.f32 %v107, %v3522
    %v3527 = vmul.f32 %v108, %v3522
    %v3528 = vmul.f32 %v109, %v3522
    %v3535 = vrot.slane %v3523, 1
    %v3536 = vrot.slane %v3524, 1
    %v3537 = vsel %vm231, %v3535, %v3536
    %v3538 = vrot.slane %v3525, 1
    %v3539 = vsel %vm231, %v3536, %v3538
    %v3540 = vrot.slane %v3526, 1
    %v3541 = vrot.slane %v3527, 1
    %v3542 = vsel %vm231, %v3540, %v3541
    %v3543 = vrot.slane %v3528, 1
    %v3544 = vsel %vm231, %v3541, %v3543
    %3545 = vrot.lane.b32.xlu0 %v3537, 127
    %v3546 = vpop.permute.xlu0 %3545
    %3547 = vrot.lane.b32.xlu0 %v3539, 127
    %v3548 = vpop.permute.xlu0 %3547
    %3549 = vrot.lane.b32.xlu0 %v3538, 127
    %v3550 = vpop.permute.xlu0 %3549
    %3551 = vrot.lane.b32.xlu0 %v3542, 127
    %v3552 = vpop.permute.xlu0 %3551
    %3553 = vrot.lane.b32.xlu0 %v3544, 127
    %v3554 = vpop.permute.xlu0 %3553
    %3555 = vrot.lane.b32.xlu0 %v3543, 127
    %v3556 = vpop.permute.xlu0 %3555
    %v3563 = vadd.f32 %v3515, %v3546
    %v3564 = vadd.f32 %v3516, %v3548
    %v3565 = vadd.f32 %v3517, %v3550
    %v3566 = vadd.f32 %v3518, %v3552
    %v3567 = vadd.f32 %v3519, %v3554
    %v3568 = vadd.f32 %v3520, %v3556
    %s3569 = sld [smem:[#allocation9 + $0x285]]
    %v3570 = vstv %s3569
    %v3571 = vmul.f32 %v104, %v3570
    %v3572 = vmul.f32 %v105, %v3570
    %v3573 = vmul.f32 %v106, %v3570
    %v3574 = vmul.f32 %v107, %v3570
    %v3575 = vmul.f32 %v108, %v3570
    %v3576 = vmul.f32 %v109, %v3570
    %v3583 = vrot.slane %v3571, 1
    %v3584 = vrot.slane %v3572, 1
    %v3585 = vsel %vm231, %v3583, %v3584
    %v3586 = vrot.slane %v3573, 1
    %v3587 = vsel %vm231, %v3584, %v3586
    %v3588 = vrot.slane %v3574, 1
    %v3589 = vrot.slane %v3575, 1
    %v3590 = vsel %vm231, %v3588, %v3589
    %v3591 = vrot.slane %v3576, 1
    %v3592 = vsel %vm231, %v3589, %v3591
    %3593 = vrot.lane.b32.xlu0 %v3585, 126
    %v3594 = vpop.permute.xlu0 %3593
    %3595 = vrot.lane.b32.xlu0 %v3587, 126
    %v3596 = vpop.permute.xlu0 %3595
    %3597 = vrot.lane.b32.xlu0 %v3586, 126
    %v3598 = vpop.permute.xlu0 %3597
    %3599 = vrot.lane.b32.xlu0 %v3590, 126
    %v3600 = vpop.permute.xlu0 %3599
    %3601 = vrot.lane.b32.xlu0 %v3592, 126
    %v3602 = vpop.permute.xlu0 %3601
    %3603 = vrot.lane.b32.xlu0 %v3591, 126
    %v3604 = vpop.permute.xlu0 %3603
    %v3611 = vadd.f32 %v3563, %v3594
    %v3612 = vadd.f32 %v3564, %v3596
    %v3613 = vadd.f32 %v3565, %v3598
    %v3614 = vadd.f32 %v3566, %v3600
    %v3615 = vadd.f32 %v3567, %v3602
    %v3616 = vadd.f32 %v3568, %v3604
    %s3617 = sld [smem:[#allocation9 + $0x286]]
    %v3618 = vstv %s3617
    %v3619 = vmul.f32 %v104, %v3618
    %v3620 = vmul.f32 %v105, %v3618
    %v3621 = vmul.f32 %v106, %v3618
    %v3622 = vmul.f32 %v107, %v3618
    %v3623 = vmul.f32 %v108, %v3618
    %v3624 = vmul.f32 %v109, %v3618
    %v3631 = vrot.slane %v3619, 2
    %v3632 = vrot.slane %v3620, 2
    %v3633 = vsel %vm364, %v3631, %v3632
    %v3634 = vrot.slane %v3621, 2
    %v3635 = vsel %vm364, %v3632, %v3634
    %v3636 = vrot.slane %v3622, 2
    %v3637 = vrot.slane %v3623, 2
    %v3638 = vsel %vm364, %v3636, %v3637
    %v3639 = vrot.slane %v3624, 2
    %v3640 = vsel %vm364, %v3637, %v3639
    %v3647 = vadd.f32 %v3611, %v3633
    %v3648 = vadd.f32 %v3612, %v3635
    %v3649 = vadd.f32 %v3613, %v3634
    %v3650 = vadd.f32 %v3614, %v3638
    %v3651 = vadd.f32 %v3615, %v3640
    %v3652 = vadd.f32 %v3616, %v3639
    %s3653 = sld [smem:[#allocation9 + $0x287]]
    %v3654 = vstv %s3653
    %v3655 = vmul.f32 %v104, %v3654
    %v3656 = vmul.f32 %v105, %v3654
    %v3657 = vmul.f32 %v106, %v3654
    %v3658 = vmul.f32 %v107, %v3654
    %v3659 = vmul.f32 %v108, %v3654
    %v3660 = vmul.f32 %v109, %v3654
    %v3667 = vrot.slane %v3655, 2
    %v3668 = vrot.slane %v3656, 2
    %v3669 = vsel %vm364, %v3667, %v3668
    %v3670 = vrot.slane %v3657, 2
    %v3671 = vsel %vm364, %v3668, %v3670
    %v3672 = vrot.slane %v3658, 2
    %v3673 = vrot.slane %v3659, 2
    %v3674 = vsel %vm364, %v3672, %v3673
    %v3675 = vrot.slane %v3660, 2
    %v3676 = vsel %vm364, %v3673, %v3675
    %3677 = vrot.lane.b32.xlu0 %v3669, 127
    %v3678 = vpop.permute.xlu0 %3677
    %3679 = vrot.lane.b32.xlu0 %v3671, 127
    %v3680 = vpop.permute.xlu0 %3679
    %3681 = vrot.lane.b32.xlu0 %v3670, 127
    %v3682 = vpop.permute.xlu0 %3681
    %3683 = vrot.lane.b32.xlu0 %v3674, 127
    %v3684 = vpop.permute.xlu0 %3683
    %3685 = vrot.lane.b32.xlu0 %v3676, 127
    %v3686 = vpop.permute.xlu0 %3685
    %3687 = vrot.lane.b32.xlu0 %v3675, 127
    %v3688 = vpop.permute.xlu0 %3687
    %v3695 = vadd.f32 %v3647, %v3678
    %v3696 = vadd.f32 %v3648, %v3680
    %v3697 = vadd.f32 %v3649, %v3682
    %v3698 = vadd.f32 %v3650, %v3684
    %v3699 = vadd.f32 %v3651, %v3686
    %v3700 = vadd.f32 %v3652, %v3688
    %s3701 = sld [smem:[#allocation9 + $0x288]]
    %v3702 = vstv %s3701
    %v3703 = vmul.f32 %v104, %v3702
    %v3704 = vmul.f32 %v105, %v3702
    %v3705 = vmul.f32 %v106, %v3702
    %v3706 = vmul.f32 %v107, %v3702
    %v3707 = vmul.f32 %v108, %v3702
    %v3708 = vmul.f32 %v109, %v3702
    %v3715 = vrot.slane %v3703, 2
    %v3716 = vrot.slane %v3704, 2
    %v3717 = vsel %vm364, %v3715, %v3716
    %v3718 = vrot.slane %v3705, 2
    %v3719 = vsel %vm364, %v3716, %v3718
    %v3720 = vrot.slane %v3706, 2
    %v3721 = vrot.slane %v3707, 2
    %v3722 = vsel %vm364, %v3720, %v3721
    %v3723 = vrot.slane %v3708, 2
    %v3724 = vsel %vm364, %v3721, %v3723
    %3725 = vrot.lane.b32.xlu0 %v3717, 126
    %v3726 = vpop.permute.xlu0 %3725
    %3727 = vrot.lane.b32.xlu0 %v3719, 126
    %v3728 = vpop.permute.xlu0 %3727
    %3729 = vrot.lane.b32.xlu0 %v3718, 126
    %v3730 = vpop.permute.xlu0 %3729
    %3731 = vrot.lane.b32.xlu0 %v3722, 126
    %v3732 = vpop.permute.xlu0 %3731
    %3733 = vrot.lane.b32.xlu0 %v3724, 126
    %v3734 = vpop.permute.xlu0 %3733
    %3735 = vrot.lane.b32.xlu0 %v3723, 126
    %v3736 = vpop.permute.xlu0 %3735
    %v3743 = vadd.f32 %v3695, %v3726
    %v3744 = vadd.f32 %v3696, %v3728
    %v3745 = vadd.f32 %v3697, %v3730
    %v3746 = vadd.f32 %v3698, %v3732
    %v3747 = vadd.f32 %v3699, %v3734
    %v3748 = vadd.f32 %v3700, %v3736
    %s3749 = sld [smem:[#allocation10 + $0x5]]
    %v3750 = vstv %s3749
    %v3751 = vadd.f32 %v3743, %v3750
    %v3752 = vadd.f32 %v3744, %v3750
    %v3753 = vadd.f32 %v3745, %v3750
    %v3754 = vadd.f32 %v3746, %v3750
    %v3755 = vadd.f32 %v3747, %v3750
    %v3756 = vadd.f32 %v3748, %v3750
    %v3757 = vmax.f32 %v3751, 0.0
    %v3758 = vmax.f32 %v3752, 0.0
    %v3759 = vmax.f32 %v3753, 0.0
    %v3760 = vmax.f32 %v3754, 0.0
    %v3761 = vmax.f32 %v3755, 0.0
    %v3762 = vmax.f32 %v3756, 0.0
    %v3763 = vsel %vm130, %v3757, 0.0
    %v3764 = vsel %vm131, %v3758, 0.0
    %v3765 = vsel %vm132, %v3759, 0.0
    %v3766 = vsel %vm130, %v3760, 0.0
    %v3767 = vsel %vm131, %v3761, 0.0
    %v3768 = vsel %vm132, %v3762, 0.0
    %s3769 = sld [smem:[#allocation11 + $0x280]]
    %v3770 = vstv %s3769
    %v3771 = vmul.f32 %v3770, %v3763
    %v3772 = vmul.f32 %v3770, %v3764
    %v3773 = vmul.f32 %v3770, %v3766
    %v3774 = vmul.f32 %v3770, %v3767
    %v3775 = vadd.f32 %v3397, %v3771
    %v3776 = vadd.f32 %v3398, %v3772
    %v3777 = vadd.f32 %v3399, %v3773
    %v3778 = vadd.f32 %v3400, %v3774
    %s3779 = sld [smem:[#allocation11 + $0x281]]
    %v3780 = vstv %s3779
    %v3781 = vmul.f32 %v3780, %v3763
    %v3782 = vmul.f32 %v3780, %v3764
    %v3783 = vmul.f32 %v3780, %v3766
    %v3784 = vmul.f32 %v3780, %v3767
    %3789 = vrot.lane.b32.xlu0 %v3781, 127
    %v3790 = vpop.permute.xlu0 %3789
    %3791 = vrot.lane.b32.xlu0 %v3782, 127
    %v3792 = vpop.permute.xlu0 %3791
    %3793 = vrot.lane.b32.xlu0 %v3783, 127
    %v3794 = vpop.permute.xlu0 %3793
    %3795 = vrot.lane.b32.xlu0 %v3784, 127
    %v3796 = vpop.permute.xlu0 %3795
    %v3801 = vadd.f32 %v3775, %v3790
    %v3802 = vadd.f32 %v3776, %v3792
    %v3803 = vadd.f32 %v3777, %v3794
    %v3804 = vadd.f32 %v3778, %v3796
    %s3805 = sld [smem:[#allocation11 + $0x282]]
    %v3806 = vstv %s3805
    %v3807 = vmul.f32 %v3806, %v3763
    %v3808 = vmul.f32 %v3806, %v3764
    %v3809 = vmul.f32 %v3806, %v3766
    %v3810 = vmul.f32 %v3806, %v3767
    %3815 = vrot.lane.b32.xlu0 %v3807, 126
    %v3816 = vpop.permute.xlu0 %3815
    %3817 = vrot.lane.b32.xlu0 %v3808, 126
    %v3818 = vpop.permute.xlu0 %3817
    %3819 = vrot.lane.b32.xlu0 %v3809, 126
    %v3820 = vpop.permute.xlu0 %3819
    %3821 = vrot.lane.b32.xlu0 %v3810, 126
    %v3822 = vpop.permute.xlu0 %3821
    %v3827 = vadd.f32 %v3801, %v3816
    %v3828 = vadd.f32 %v3802, %v3818
    %v3829 = vadd.f32 %v3803, %v3820
    %v3830 = vadd.f32 %v3804, %v3822
    %s3831 = sld [smem:[#allocation11 + $0x283]]
    %v3832 = vstv %s3831
    %v3833 = vmul.f32 %v3832, %v3763
    %v3834 = vmul.f32 %v3832, %v3764
    %v3835 = vmul.f32 %v3832, %v3765
    %v3836 = vmul.f32 %v3832, %v3766
    %v3837 = vmul.f32 %v3832, %v3767
    %v3838 = vmul.f32 %v3832, %v3768
    %v3845 = vrot.slane %v3833, 1
    %v3846 = vrot.slane %v3834, 1
    %v3847 = vsel %vm231, %v3845, %v3846
    %v3848 = vrot.slane %v3835, 1
    %v3849 = vsel %vm231, %v3846, %v3848
    %v3850 = vrot.slane %v3836, 1
    %v3851 = vrot.slane %v3837, 1
    %v3852 = vsel %vm231, %v3850, %v3851
    %v3853 = vrot.slane %v3838, 1
    %v3854 = vsel %vm231, %v3851, %v3853
    %v3859 = vadd.f32 %v3827, %v3847
    %v3860 = vadd.f32 %v3828, %v3849
    %v3861 = vadd.f32 %v3829, %v3852
    %v3862 = vadd.f32 %v3830, %v3854
    %s3863 = sld [smem:[#allocation11 + $0x284]]
    %v3864 = vstv %s3863
    %v3865 = vmul.f32 %v3864, %v3763
    %v3866 = vmul.f32 %v3864, %v3764
    %v3867 = vmul.f32 %v3864, %v3765
    %v3868 = vmul.f32 %v3864, %v3766
    %v3869 = vmul.f32 %v3864, %v3767
    %v3870 = vmul.f32 %v3864, %v3768
    %v3877 = vrot.slane %v3865, 1
    %v3878 = vrot.slane %v3866, 1
    %v3879 = vsel %vm231, %v3877, %v3878
    %v3880 = vrot.slane %v3867, 1
    %v3881 = vsel %vm231, %v3878, %v3880
    %v3882 = vrot.slane %v3868, 1
    %v3883 = vrot.slane %v3869, 1
    %v3884 = vsel %vm231, %v3882, %v3883
    %v3885 = vrot.slane %v3870, 1
    %v3886 = vsel %vm231, %v3883, %v3885
    %3887 = vrot.lane.b32.xlu0 %v3879, 127
    %v3888 = vpop.permute.xlu0 %3887
    %3889 = vrot.lane.b32.xlu0 %v3881, 127
    %v3890 = vpop.permute.xlu0 %3889
    %3891 = vrot.lane.b32.xlu0 %v3884, 127
    %v3892 = vpop.permute.xlu0 %3891
    %3893 = vrot.lane.b32.xlu0 %v3886, 127
    %v3894 = vpop.permute.xlu0 %3893
    %v3899 = vadd.f32 %v3859, %v3888
    %v3900 = vadd.f32 %v3860, %v3890
    %v3901 = vadd.f32 %v3861, %v3892
    %v3902 = vadd.f32 %v3862, %v3894
    %s3903 = sld [smem:[#allocation11 + $0x285]]
    %v3904 = vstv %s3903
    %v3905 = vmul.f32 %v3904, %v3763
    %v3906 = vmul.f32 %v3904, %v3764
    %v3907 = vmul.f32 %v3904, %v3765
    %v3908 = vmul.f32 %v3904, %v3766
    %v3909 = vmul.f32 %v3904, %v3767
    %v3910 = vmul.f32 %v3904, %v3768
    %v3917 = vrot.slane %v3905, 1
    %v3918 = vrot.slane %v3906, 1
    %v3919 = vsel %vm231, %v3917, %v3918
    %v3920 = vrot.slane %v3907, 1
    %v3921 = vsel %vm231, %v3918, %v3920
    %v3922 = vrot.slane %v3908, 1
    %v3923 = vrot.slane %v3909, 1
    %v3924 = vsel %vm231, %v3922, %v3923
    %v3925 = vrot.slane %v3910, 1
    %v3926 = vsel %vm231, %v3923, %v3925
    %3927 = vrot.lane.b32.xlu0 %v3919, 126
    %v3928 = vpop.permute.xlu0 %3927
    %3929 = vrot.lane.b32.xlu0 %v3921, 126
    %v3930 = vpop.permute.xlu0 %3929
    %3931 = vrot.lane.b32.xlu0 %v3924, 126
    %v3932 = vpop.permute.xlu0 %3931
    %3933 = vrot.lane.b32.xlu0 %v3926, 126
    %v3934 = vpop.permute.xlu0 %3933
    %v3939 = vadd.f32 %v3899, %v3928
    %v3940 = vadd.f32 %v3900, %v3930
    %v3941 = vadd.f32 %v3901, %v3932
    %v3942 = vadd.f32 %v3902, %v3934
    %s3943 = sld [smem:[#allocation11 + $0x286]]
    %v3944 = vstv %s3943
    %v3945 = vmul.f32 %v3944, %v3763
    %v3946 = vmul.f32 %v3944, %v3764
    %v3947 = vmul.f32 %v3944, %v3765
    %v3948 = vmul.f32 %v3944, %v3766
    %v3949 = vmul.f32 %v3944, %v3767
    %v3950 = vmul.f32 %v3944, %v3768
    %v3957 = vrot.slane %v3945, 2
    %v3958 = vrot.slane %v3946, 2
    %v3959 = vsel %vm364, %v3957, %v3958
    %v3960 = vrot.slane %v3947, 2
    %v3961 = vsel %vm364, %v3958, %v3960
    %v3962 = vrot.slane %v3948, 2
    %v3963 = vrot.slane %v3949, 2
    %v3964 = vsel %vm364, %v3962, %v3963
    %v3965 = vrot.slane %v3950, 2
    %v3966 = vsel %vm364, %v3963, %v3965
    %v3971 = vadd.f32 %v3939, %v3959
    %v3972 = vadd.f32 %v3940, %v3961
    %v3973 = vadd.f32 %v3941, %v3964
    %v3974 = vadd.f32 %v3942, %v3966
    %s3975 = sld [smem:[#allocation11 + $0x287]]
    %v3976 = vstv %s3975
    %v3977 = vmul.f32 %v3976, %v3763
    %v3978 = vmul.f32 %v3976, %v3764
    %v3979 = vmul.f32 %v3976, %v3765
    %v3980 = vmul.f32 %v3976, %v3766
    %v3981 = vmul.f32 %v3976, %v3767
    %v3982 = vmul.f32 %v3976, %v3768
    %v3989 = vrot.slane %v3977, 2
    %v3990 = vrot.slane %v3978, 2
    %v3991 = vsel %vm364, %v3989, %v3990
    %v3992 = vrot.slane %v3979, 2
    %v3993 = vsel %vm364, %v3990, %v3992
    %v3994 = vrot.slane %v3980, 2
    %v3995 = vrot.slane %v3981, 2
    %v3996 = vsel %vm364, %v3994, %v3995
    %v3997 = vrot.slane %v3982, 2
    %v3998 = vsel %vm364, %v3995, %v3997
    %3999 = vrot.lane.b32.xlu0 %v3991, 127
    %v4000 = vpop.permute.xlu0 %3999
    %4001 = vrot.lane.b32.xlu0 %v3993, 127
    %v4002 = vpop.permute.xlu0 %4001
    %4003 = vrot.lane.b32.xlu0 %v3996, 127
    %v4004 = vpop.permute.xlu0 %4003
    %4005 = vrot.lane.b32.xlu0 %v3998, 127
    %v4006 = vpop.permute.xlu0 %4005
    %v4011 = vadd.f32 %v3971, %v4000
    %v4012 = vadd.f32 %v3972, %v4002
    %v4013 = vadd.f32 %v3973, %v4004
    %v4014 = vadd.f32 %v3974, %v4006
    %s4015 = sld [smem:[#allocation11 + $0x288]]
    %v4016 = vstv %s4015
    %v4017 = vmul.f32 %v4016, %v3763
    %v4018 = vmul.f32 %v4016, %v3764
    %v4019 = vmul.f32 %v4016, %v3765
    %v4020 = vmul.f32 %v4016, %v3766
    %v4021 = vmul.f32 %v4016, %v3767
    %v4022 = vmul.f32 %v4016, %v3768
    %v4029 = vrot.slane %v4017, 2
    %v4030 = vrot.slane %v4018, 2
    %v4031 = vsel %vm364, %v4029, %v4030
    %v4032 = vrot.slane %v4019, 2
    %v4033 = vsel %vm364, %v4030, %v4032
    %v4034 = vrot.slane %v4020, 2
    %v4035 = vrot.slane %v4021, 2
    %v4036 = vsel %vm364, %v4034, %v4035
    %v4037 = vrot.slane %v4022, 2
    %v4038 = vsel %vm364, %v4035, %v4037
    %4039 = vrot.lane.b32.xlu0 %v4031, 126
    %v4040 = vpop.permute.xlu0 %4039
    %4041 = vrot.lane.b32.xlu0 %v4033, 126
    %v4042 = vpop.permute.xlu0 %4041
    %4043 = vrot.lane.b32.xlu0 %v4036, 126
    %v4044 = vpop.permute.xlu0 %4043
    %4045 = vrot.lane.b32.xlu0 %v4038, 126
    %v4046 = vpop.permute.xlu0 %4045
    %v4051 = vadd.f32 %v4011, %v4040
    %v4052 = vadd.f32 %v4012, %v4042
    %v4053 = vadd.f32 %v4013, %v4044
    %v4054 = vadd.f32 %v4014, %v4046
    %s4055 = sld [smem:[#allocation9 + $0x300]]
    %v4056 = vstv %s4055
    %v4057 = vmul.f32 %v104, %v4056
    %v4058 = vmul.f32 %v105, %v4056
    %v4059 = vmul.f32 %v106, %v4056
    %v4060 = vmul.f32 %v107, %v4056
    %v4061 = vmul.f32 %v108, %v4056
    %v4062 = vmul.f32 %v109, %v4056
    %s4063 = sld [smem:[#allocation9 + $0x301]]
    %v4064 = vstv %s4063
    %v4065 = vmul.f32 %v104, %v4064
    %v4066 = vmul.f32 %v105, %v4064
    %v4067 = vmul.f32 %v106, %v4064
    %v4068 = vmul.f32 %v107, %v4064
    %v4069 = vmul.f32 %v108, %v4064
    %v4070 = vmul.f32 %v109, %v4064
    %4077 = vrot.lane.b32.xlu0 %v4065, 127
    %v4078 = vpop.permute.xlu0 %4077
    %4079 = vrot.lane.b32.xlu0 %v4066, 127
    %v4080 = vpop.permute.xlu0 %4079
    %4081 = vrot.lane.b32.xlu0 %v4067, 127
    %v4082 = vpop.permute.xlu0 %4081
    %4083 = vrot.lane.b32.xlu0 %v4068, 127
    %v4084 = vpop.permute.xlu0 %4083
    %4085 = vrot.lane.b32.xlu0 %v4069, 127
    %v4086 = vpop.permute.xlu0 %4085
    %4087 = vrot.lane.b32.xlu0 %v4070, 127
    %v4088 = vpop.permute.xlu0 %4087
    %v4095 = vadd.f32 %v4057, %v4078
    %v4096 = vadd.f32 %v4058, %v4080
    %v4097 = vadd.f32 %v4059, %v4082
    %v4098 = vadd.f32 %v4060, %v4084
    %v4099 = vadd.f32 %v4061, %v4086
    %v4100 = vadd.f32 %v4062, %v4088
    %s4101 = sld [smem:[#allocation9 + $0x302]]
    %v4102 = vstv %s4101
    %v4103 = vmul.f32 %v104, %v4102
    %v4104 = vmul.f32 %v105, %v4102
    %v4105 = vmul.f32 %v106, %v4102
    %v4106 = vmul.f32 %v107, %v4102
    %v4107 = vmul.f32 %v108, %v4102
    %v4108 = vmul.f32 %v109, %v4102
    %4115 = vrot.lane.b32.xlu0 %v4103, 126
    %v4116 = vpop.permute.xlu0 %4115
    %4117 = vrot.lane.b32.xlu0 %v4104, 126
    %v4118 = vpop.permute.xlu0 %4117
    %4119 = vrot.lane.b32.xlu0 %v4105, 126
    %v4120 = vpop.permute.xlu0 %4119
    %4121 = vrot.lane.b32.xlu0 %v4106, 126
    %v4122 = vpop.permute.xlu0 %4121
    %4123 = vrot.lane.b32.xlu0 %v4107, 126
    %v4124 = vpop.permute.xlu0 %4123
    %4125 = vrot.lane.b32.xlu0 %v4108, 126
    %v4126 = vpop.permute.xlu0 %4125
    %v4133 = vadd.f32 %v4095, %v4116
    %v4134 = vadd.f32 %v4096, %v4118
    %v4135 = vadd.f32 %v4097, %v4120
    %v4136 = vadd.f32 %v4098, %v4122
    %v4137 = vadd.f32 %v4099, %v4124
    %v4138 = vadd.f32 %v4100, %v4126
    %s4139 = sld [smem:[#allocation9 + $0x303]]
    %v4140 = vstv %s4139
    %v4141 = vmul.f32 %v104, %v4140
    %v4142 = vmul.f32 %v105, %v4140
    %v4143 = vmul.f32 %v106, %v4140
    %v4144 = vmul.f32 %v107, %v4140
    %v4145 = vmul.f32 %v108, %v4140
    %v4146 = vmul.f32 %v109, %v4140
    %v4153 = vrot.slane %v4141, 1
    %v4154 = vrot.slane %v4142, 1
    %v4155 = vsel %vm231, %v4153, %v4154
    %v4156 = vrot.slane %v4143, 1
    %v4157 = vsel %vm231, %v4154, %v4156
    %v4158 = vrot.slane %v4144, 1
    %v4159 = vrot.slane %v4145, 1
    %v4160 = vsel %vm231, %v4158, %v4159
    %v4161 = vrot.slane %v4146, 1
    %v4162 = vsel %vm231, %v4159, %v4161
    %v4169 = vadd.f32 %v4133, %v4155
    %v4170 = vadd.f32 %v4134, %v4157
    %v4171 = vadd.f32 %v4135, %v4156
    %v4172 = vadd.f32 %v4136, %v4160
    %v4173 = vadd.f32 %v4137, %v4162
    %v4174 = vadd.f32 %v4138, %v4161
    %s4175 = sld [smem:[#allocation9 + $0x304]]
    %v4176 = vstv %s4175
    %v4177 = vmul.f32 %v104, %v4176
    %v4178 = vmul.f32 %v105, %v4176
    %v4179 = vmul.f32 %v106, %v4176
    %v4180 = vmul.f32 %v107, %v4176
    %v4181 = vmul.f32 %v108, %v4176
    %v4182 = vmul.f32 %v109, %v4176
    %v4189 = vrot.slane %v4177, 1
    %v4190 = vrot.slane %v4178, 1
    %v4191 = vsel %vm231, %v4189, %v4190
    %v4192 = vrot.slane %v4179, 1
    %v4193 = vsel %vm231, %v4190, %v4192
    %v4194 = vrot.slane %v4180, 1
    %v4195 = vrot.slane %v4181, 1
    %v4196 = vsel %vm231, %v4194, %v4195
    %v4197 = vrot.slane %v4182, 1
    %v4198 = vsel %vm231, %v4195, %v4197
    %4199 = vrot.lane.b32.xlu0 %v4191, 127
    %v4200 = vpop.permute.xlu0 %4199
    %4201 = vrot.lane.b32.xlu0 %v4193, 127
    %v4202 = vpop.permute.xlu0 %4201
    %4203 = vrot.lane.b32.xlu0 %v4192, 127
    %v4204 = vpop.permute.xlu0 %4203
    %4205 = vrot.lane.b32.xlu0 %v4196, 127
    %v4206 = vpop.permute.xlu0 %4205
    %4207 = vrot.lane.b32.xlu0 %v4198, 127
    %v4208 = vpop.permute.xlu0 %4207
    %4209 = vrot.lane.b32.xlu0 %v4197, 127
    %v4210 = vpop.permute.xlu0 %4209
    %v4217 = vadd.f32 %v4169, %v4200
    %v4218 = vadd.f32 %v4170, %v4202
    %v4219 = vadd.f32 %v4171, %v4204
    %v4220 = vadd.f32 %v4172, %v4206
    %v4221 = vadd.f32 %v4173, %v4208
    %v4222 = vadd.f32 %v4174, %v4210
    %s4223 = sld [smem:[#allocation9 + $0x305]]
    %v4224 = vstv %s4223
    %v4225 = vmul.f32 %v104, %v4224
    %v4226 = vmul.f32 %v105, %v4224
    %v4227 = vmul.f32 %v106, %v4224
    %v4228 = vmul.f32 %v107, %v4224
    %v4229 = vmul.f32 %v108, %v4224
    %v4230 = vmul.f32 %v109, %v4224
    %v4237 = vrot.slane %v4225, 1
    %v4238 = vrot.slane %v4226, 1
    %v4239 = vsel %vm231, %v4237, %v4238
    %v4240 = vrot.slane %v4227, 1
    %v4241 = vsel %vm231, %v4238, %v4240
    %v4242 = vrot.slane %v4228, 1
    %v4243 = vrot.slane %v4229, 1
    %v4244 = vsel %vm231, %v4242, %v4243
    %v4245 = vrot.slane %v4230, 1
    %v4246 = vsel %vm231, %v4243, %v4245
    %4247 = vrot.lane.b32.xlu0 %v4239, 126
    %v4248 = vpop.permute.xlu0 %4247
    %4249 = vrot.lane.b32.xlu0 %v4241, 126
    %v4250 = vpop.permute.xlu0 %4249
    %4251 = vrot.lane.b32.xlu0 %v4240, 126
    %v4252 = vpop.permute.xlu0 %4251
    %4253 = vrot.lane.b32.xlu0 %v4244, 126
    %v4254 = vpop.permute.xlu0 %4253
    %4255 = vrot.lane.b32.xlu0 %v4246, 126
    %v4256 = vpop.permute.xlu0 %4255
    %4257 = vrot.lane.b32.xlu0 %v4245, 126
    %v4258 = vpop.permute.xlu0 %4257
    %v4265 = vadd.f32 %v4217, %v4248
    %v4266 = vadd.f32 %v4218, %v4250
    %v4267 = vadd.f32 %v4219, %v4252
    %v4268 = vadd.f32 %v4220, %v4254
    %v4269 = vadd.f32 %v4221, %v4256
    %v4270 = vadd.f32 %v4222, %v4258
    %s4271 = sld [smem:[#allocation9 + $0x306]]
    %v4272 = vstv %s4271
    %v4273 = vmul.f32 %v104, %v4272
    %v4274 = vmul.f32 %v105, %v4272
    %v4275 = vmul.f32 %v106, %v4272
    %v4276 = vmul.f32 %v107, %v4272
    %v4277 = vmul.f32 %v108, %v4272
    %v4278 = vmul.f32 %v109, %v4272
    %v4285 = vrot.slane %v4273, 2
    %v4286 = vrot.slane %v4274, 2
    %v4287 = vsel %vm364, %v4285, %v4286
    %v4288 = vrot.slane %v4275, 2
    %v4289 = vsel %vm364, %v4286, %v4288
    %v4290 = vrot.slane %v4276, 2
    %v4291 = vrot.slane %v4277, 2
    %v4292 = vsel %vm364, %v4290, %v4291
    %v4293 = vrot.slane %v4278, 2
    %v4294 = vsel %vm364, %v4291, %v4293
    %v4301 = vadd.f32 %v4265, %v4287
    %v4302 = vadd.f32 %v4266, %v4289
    %v4303 = vadd.f32 %v4267, %v4288
    %v4304 = vadd.f32 %v4268, %v4292
    %v4305 = vadd.f32 %v4269, %v4294
    %v4306 = vadd.f32 %v4270, %v4293
    %s4307 = sld [smem:[#allocation9 + $0x307]]
    %v4308 = vstv %s4307
    %v4309 = vmul.f32 %v104, %v4308
    %v4310 = vmul.f32 %v105, %v4308
    %v4311 = vmul.f32 %v106, %v4308
    %v4312 = vmul.f32 %v107, %v4308
    %v4313 = vmul.f32 %v108, %v4308
    %v4314 = vmul.f32 %v109, %v4308
    %v4321 = vrot.slane %v4309, 2
    %v4322 = vrot.slane %v4310, 2
    %v4323 = vsel %vm364, %v4321, %v4322
    %v4324 = vrot.slane %v4311, 2
    %v4325 = vsel %vm364, %v4322, %v4324
    %v4326 = vrot.slane %v4312, 2
    %v4327 = vrot.slane %v4313, 2
    %v4328 = vsel %vm364, %v4326, %v4327
    %v4329 = vrot.slane %v4314, 2
    %v4330 = vsel %vm364, %v4327, %v4329
    %4331 = vrot.lane.b32.xlu0 %v4323, 127
    %v4332 = vpop.permute.xlu0 %4331
    %4333 = vrot.lane.b32.xlu0 %v4325, 127
    %v4334 = vpop.permute.xlu0 %4333
    %4335 = vrot.lane.b32.xlu0 %v4324, 127
    %v4336 = vpop.permute.xlu0 %4335
    %4337 = vrot.lane.b32.xlu0 %v4328, 127
    %v4338 = vpop.permute.xlu0 %4337
    %4339 = vrot.lane.b32.xlu0 %v4330, 127
    %v4340 = vpop.permute.xlu0 %4339
    %4341 = vrot.lane.b32.xlu0 %v4329, 127
    %v4342 = vpop.permute.xlu0 %4341
    %v4349 = vadd.f32 %v4301, %v4332
    %v4350 = vadd.f32 %v4302, %v4334
    %v4351 = vadd.f32 %v4303, %v4336
    %v4352 = vadd.f32 %v4304, %v4338
    %v4353 = vadd.f32 %v4305, %v4340
    %v4354 = vadd.f32 %v4306, %v4342
    %s4355 = sld [smem:[#allocation9 + $0x308]]
    %v4356 = vstv %s4355
    %v4357 = vmul.f32 %v104, %v4356
    %v4358 = vmul.f32 %v105, %v4356
    %v4359 = vmul.f32 %v106, %v4356
    %v4360 = vmul.f32 %v107, %v4356
    %v4361 = vmul.f32 %v108, %v4356
    %v4362 = vmul.f32 %v109, %v4356
    %v4369 = vrot.slane %v4357, 2
    %v4370 = vrot.slane %v4358, 2
    %v4371 = vsel %vm364, %v4369, %v4370
    %v4372 = vrot.slane %v4359, 2
    %v4373 = vsel %vm364, %v4370, %v4372
    %v4374 = vrot.slane %v4360, 2
    %v4375 = vrot.slane %v4361, 2
    %v4376 = vsel %vm364, %v4374, %v4375
    %v4377 = vrot.slane %v4362, 2
    %v4378 = vsel %vm364, %v4375, %v4377
    %4379 = vrot.lane.b32.xlu0 %v4371, 126
    %v4380 = vpop.permute.xlu0 %4379
    %4381 = vrot.lane.b32.xlu0 %v4373, 126
    %v4382 = vpop.permute.xlu0 %4381
    %4383 = vrot.lane.b32.xlu0 %v4372, 126
    %v4384 = vpop.permute.xlu0 %4383
    %4385 = vrot.lane.b32.xlu0 %v4376, 126
    %v4386 = vpop.permute.xlu0 %4385
    %4387 = vrot.lane.b32.xlu0 %v4378, 126
    %v4388 = vpop.permute.xlu0 %4387
    %4389 = vrot.lane.b32.xlu0 %v4377, 126
    %v4390 = vpop.permute.xlu0 %4389
    %v4397 = vadd.f32 %v4349, %v4380
    %v4398 = vadd.f32 %v4350, %v4382
    %v4399 = vadd.f32 %v4351, %v4384
    %v4400 = vadd.f32 %v4352, %v4386
    %v4401 = vadd.f32 %v4353, %v4388
    %v4402 = vadd.f32 %v4354, %v4390
    %s4403 = sld [smem:[#allocation10 + $0x6]]
    %v4404 = vstv %s4403
    %v4405 = vadd.f32 %v4397, %v4404
    %v4406 = vadd.f32 %v4398, %v4404
    %v4407 = vadd.f32 %v4399, %v4404
    %v4408 = vadd.f32 %v4400, %v4404
    %v4409 = vadd.f32 %v4401, %v4404
    %v4410 = vadd.f32 %v4402, %v4404
    %v4411 = vmax.f32 %v4405, 0.0
    %v4412 = vmax.f32 %v4406, 0.0
    %v4413 = vmax.f32 %v4407, 0.0
    %v4414 = vmax.f32 %v4408, 0.0
    %v4415 = vmax.f32 %v4409, 0.0
    %v4416 = vmax.f32 %v4410, 0.0
    %v4417 = vsel %vm130, %v4411, 0.0
    %v4418 = vsel %vm131, %v4412, 0.0
    %v4419 = vsel %vm132, %v4413, 0.0
    %v4420 = vsel %vm130, %v4414, 0.0
    %v4421 = vsel %vm131, %v4415, 0.0
    %v4422 = vsel %vm132, %v4416, 0.0
    %s4423 = sld [smem:[#allocation11 + $0x300]]
    %v4424 = vstv %s4423
    %v4425 = vmul.f32 %v4424, %v4417
    %v4426 = vmul.f32 %v4424, %v4418
    %v4427 = vmul.f32 %v4424, %v4420
    %v4428 = vmul.f32 %v4424, %v4421
    %v4429 = vadd.f32 %v4051, %v4425
    %v4430 = vadd.f32 %v4052, %v4426
    %v4431 = vadd.f32 %v4053, %v4427
    %v4432 = vadd.f32 %v4054, %v4428
    %s4433 = sld [smem:[#allocation11 + $0x301]]
    %v4434 = vstv %s4433
    %v4435 = vmul.f32 %v4434, %v4417
    %v4436 = vmul.f32 %v4434, %v4418
    %v4437 = vmul.f32 %v4434, %v4420
    %v4438 = vmul.f32 %v4434, %v4421
    %4443 = vrot.lane.b32.xlu0 %v4435, 127
    %v4444 = vpop.permute.xlu0 %4443
    %4445 = vrot.lane.b32.xlu0 %v4436, 127
    %v4446 = vpop.permute.xlu0 %4445
    %4447 = vrot.lane.b32.xlu0 %v4437, 127
    %v4448 = vpop.permute.xlu0 %4447
    %4449 = vrot.lane.b32.xlu0 %v4438, 127
    %v4450 = vpop.permute.xlu0 %4449
    %v4455 = vadd.f32 %v4429, %v4444
    %v4456 = vadd.f32 %v4430, %v4446
    %v4457 = vadd.f32 %v4431, %v4448
    %v4458 = vadd.f32 %v4432, %v4450
    %s4459 = sld [smem:[#allocation11 + $0x302]]
    %v4460 = vstv %s4459
    %v4461 = vmul.f32 %v4460, %v4417
    %v4462 = vmul.f32 %v4460, %v4418
    %v4463 = vmul.f32 %v4460, %v4420
    %v4464 = vmul.f32 %v4460, %v4421
    %4469 = vrot.lane.b32.xlu0 %v4461, 126
    %v4470 = vpop.permute.xlu0 %4469
    %4471 = vrot.lane.b32.xlu0 %v4462, 126
    %v4472 = vpop.permute.xlu0 %4471
    %4473 = vrot.lane.b32.xlu0 %v4463, 126
    %v4474 = vpop.permute.xlu0 %4473
    %4475 = vrot.lane.b32.xlu0 %v4464, 126
    %v4476 = vpop.permute.xlu0 %4475
    %v4481 = vadd.f32 %v4455, %v4470
    %v4482 = vadd.f32 %v4456, %v4472
    %v4483 = vadd.f32 %v4457, %v4474
    %v4484 = vadd.f32 %v4458, %v4476
    %s4485 = sld [smem:[#allocation11 + $0x303]]
    %v4486 = vstv %s4485
    %v4487 = vmul.f32 %v4486, %v4417
    %v4488 = vmul.f32 %v4486, %v4418
    %v4489 = vmul.f32 %v4486, %v4419
    %v4490 = vmul.f32 %v4486, %v4420
    %v4491 = vmul.f32 %v4486, %v4421
    %v4492 = vmul.f32 %v4486, %v4422
    %v4499 = vrot.slane %v4487, 1
    %v4500 = vrot.slane %v4488, 1
    %v4501 = vsel %vm231, %v4499, %v4500
    %v4502 = vrot.slane %v4489, 1
    %v4503 = vsel %vm231, %v4500, %v4502
    %v4504 = vrot.slane %v4490, 1
    %v4505 = vrot.slane %v4491, 1
    %v4506 = vsel %vm231, %v4504, %v4505
    %v4507 = vrot.slane %v4492, 1
    %v4508 = vsel %vm231, %v4505, %v4507
    %v4513 = vadd.f32 %v4481, %v4501
    %v4514 = vadd.f32 %v4482, %v4503
    %v4515 = vadd.f32 %v4483, %v4506
    %v4516 = vadd.f32 %v4484, %v4508
    %s4517 = sld [smem:[#allocation11 + $0x304]]
    %v4518 = vstv %s4517
    %v4519 = vmul.f32 %v4518, %v4417
    %v4520 = vmul.f32 %v4518, %v4418
    %v4521 = vmul.f32 %v4518, %v4419
    %v4522 = vmul.f32 %v4518, %v4420
    %v4523 = vmul.f32 %v4518, %v4421
    %v4524 = vmul.f32 %v4518, %v4422
    %v4531 = vrot.slane %v4519, 1
    %v4532 = vrot.slane %v4520, 1
    %v4533 = vsel %vm231, %v4531, %v4532
    %v4534 = vrot.slane %v4521, 1
    %v4535 = vsel %vm231, %v4532, %v4534
    %v4536 = vrot.slane %v4522, 1
    %v4537 = vrot.slane %v4523, 1
    %v4538 = vsel %vm231, %v4536, %v4537
    %v4539 = vrot.slane %v4524, 1
    %v4540 = vsel %vm231, %v4537, %v4539
    %4541 = vrot.lane.b32.xlu0 %v4533, 127
    %v4542 = vpop.permute.xlu0 %4541
    %4543 = vrot.lane.b32.xlu0 %v4535, 127
    %v4544 = vpop.permute.xlu0 %4543
    %4545 = vrot.lane.b32.xlu0 %v4538, 127
    %v4546 = vpop.permute.xlu0 %4545
    %4547 = vrot.lane.b32.xlu0 %v4540, 127
    %v4548 = vpop.permute.xlu0 %4547
    %v4553 = vadd.f32 %v4513, %v4542
    %v4554 = vadd.f32 %v4514, %v4544
    %v4555 = vadd.f32 %v4515, %v4546
    %v4556 = vadd.f32 %v4516, %v4548
    %s4557 = sld [smem:[#allocation11 + $0x305]]
    %v4558 = vstv %s4557
    %v4559 = vmul.f32 %v4558, %v4417
    %v4560 = vmul.f32 %v4558, %v4418
    %v4561 = vmul.f32 %v4558, %v4419
    %v4562 = vmul.f32 %v4558, %v4420
    %v4563 = vmul.f32 %v4558, %v4421
    %v4564 = vmul.f32 %v4558, %v4422
    %v4571 = vrot.slane %v4559, 1
    %v4572 = vrot.slane %v4560, 1
    %v4573 = vsel %vm231, %v4571, %v4572
    %v4574 = vrot.slane %v4561, 1
    %v4575 = vsel %vm231, %v4572, %v4574
    %v4576 = vrot.slane %v4562, 1
    %v4577 = vrot.slane %v4563, 1
    %v4578 = vsel %vm231, %v4576, %v4577
    %v4579 = vrot.slane %v4564, 1
    %v4580 = vsel %vm231, %v4577, %v4579
    %4581 = vrot.lane.b32.xlu0 %v4573, 126
    %v4582 = vpop.permute.xlu0 %4581
    %4583 = vrot.lane.b32.xlu0 %v4575, 126
    %v4584 = vpop.permute.xlu0 %4583
    %4585 = vrot.lane.b32.xlu0 %v4578, 126
    %v4586 = vpop.permute.xlu0 %4585
    %4587 = vrot.lane.b32.xlu0 %v4580, 126
    %v4588 = vpop.permute.xlu0 %4587
    %v4593 = vadd.f32 %v4553, %v4582
    %v4594 = vadd.f32 %v4554, %v4584
    %v4595 = vadd.f32 %v4555, %v4586
    %v4596 = vadd.f32 %v4556, %v4588
    %s4597 = sld [smem:[#allocation11 + $0x306]]
    %v4598 = vstv %s4597
    %v4599 = vmul.f32 %v4598, %v4417
    %v4600 = vmul.f32 %v4598, %v4418
    %v4601 = vmul.f32 %v4598, %v4419
    %v4602 = vmul.f32 %v4598, %v4420
    %v4603 = vmul.f32 %v4598, %v4421
    %v4604 = vmul.f32 %v4598, %v4422
    %v4611 = vrot.slane %v4599, 2
    %v4612 = vrot.slane %v4600, 2
    %v4613 = vsel %vm364, %v4611, %v4612
    %v4614 = vrot.slane %v4601, 2
    %v4615 = vsel %vm364, %v4612, %v4614
    %v4616 = vrot.slane %v4602, 2
    %v4617 = vrot.slane %v4603, 2
    %v4618 = vsel %vm364, %v4616, %v4617
    %v4619 = vrot.slane %v4604, 2
    %v4620 = vsel %vm364, %v4617, %v4619
    %v4625 = vadd.f32 %v4593, %v4613
    %v4626 = vadd.f32 %v4594, %v4615
    %v4627 = vadd.f32 %v4595, %v4618
    %v4628 = vadd.f32 %v4596, %v4620
    %s4629 = sld [smem:[#allocation11 + $0x307]]
    %v4630 = vstv %s4629
    %v4631 = vmul.f32 %v4630, %v4417
    %v4632 = vmul.f32 %v4630, %v4418
    %v4633 = vmul.f32 %v4630, %v4419
    %v4634 = vmul.f32 %v4630, %v4420
    %v4635 = vmul.f32 %v4630, %v4421
    %v4636 = vmul.f32 %v4630, %v4422
    %v4643 = vrot.slane %v4631, 2
    %v4644 = vrot.slane %v4632, 2
    %v4645 = vsel %vm364, %v4643, %v4644
    %v4646 = vrot.slane %v4633, 2
    %v4647 = vsel %vm364, %v4644, %v4646
    %v4648 = vrot.slane %v4634, 2
    %v4649 = vrot.slane %v4635, 2
    %v4650 = vsel %vm364, %v4648, %v4649
    %v4651 = vrot.slane %v4636, 2
    %v4652 = vsel %vm364, %v4649, %v4651
    %4653 = vrot.lane.b32.xlu0 %v4645, 127
    %v4654 = vpop.permute.xlu0 %4653
    %4655 = vrot.lane.b32.xlu0 %v4647, 127
    %v4656 = vpop.permute.xlu0 %4655
    %4657 = vrot.lane.b32.xlu0 %v4650, 127
    %v4658 = vpop.permute.xlu0 %4657
    %4659 = vrot.lane.b32.xlu0 %v4652, 127
    %v4660 = vpop.permute.xlu0 %4659
    %v4665 = vadd.f32 %v4625, %v4654
    %v4666 = vadd.f32 %v4626, %v4656
    %v4667 = vadd.f32 %v4627, %v4658
    %v4668 = vadd.f32 %v4628, %v4660
    %s4669 = sld [smem:[#allocation11 + $0x308]]
    %v4670 = vstv %s4669
    %v4671 = vmul.f32 %v4670, %v4417
    %v4672 = vmul.f32 %v4670, %v4418
    %v4673 = vmul.f32 %v4670, %v4419
    %v4674 = vmul.f32 %v4670, %v4420
    %v4675 = vmul.f32 %v4670, %v4421
    %v4676 = vmul.f32 %v4670, %v4422
    %v4683 = vrot.slane %v4671, 2
    %v4684 = vrot.slane %v4672, 2
    %v4685 = vsel %vm364, %v4683, %v4684
    %v4686 = vrot.slane %v4673, 2
    %v4687 = vsel %vm364, %v4684, %v4686
    %v4688 = vrot.slane %v4674, 2
    %v4689 = vrot.slane %v4675, 2
    %v4690 = vsel %vm364, %v4688, %v4689
    %v4691 = vrot.slane %v4676, 2
    %v4692 = vsel %vm364, %v4689, %v4691
    %4693 = vrot.lane.b32.xlu0 %v4685, 126
    %v4694 = vpop.permute.xlu0 %4693
    %4695 = vrot.lane.b32.xlu0 %v4687, 126
    %v4696 = vpop.permute.xlu0 %4695
    %4697 = vrot.lane.b32.xlu0 %v4690, 126
    %v4698 = vpop.permute.xlu0 %4697
    %4699 = vrot.lane.b32.xlu0 %v4692, 126
    %v4700 = vpop.permute.xlu0 %4699
    %v4705 = vadd.f32 %v4665, %v4694
    %v4706 = vadd.f32 %v4666, %v4696
    %v4707 = vadd.f32 %v4667, %v4698
    %v4708 = vadd.f32 %v4668, %v4700
    %s4709 = sld [smem:[#allocation9 + $0x380]]
    %v4710 = vstv %s4709
    %v4711 = vmul.f32 %v104, %v4710
    %v4712 = vmul.f32 %v105, %v4710
    %v4713 = vmul.f32 %v106, %v4710
    %v4714 = vmul.f32 %v107, %v4710
    %v4715 = vmul.f32 %v108, %v4710
    %v4716 = vmul.f32 %v109, %v4710
    %s4717 = sld [smem:[#allocation9 + $0x381]]
    %v4718 = vstv %s4717
    %v4719 = vmul.f32 %v104, %v4718
    %v4720 = vmul.f32 %v105, %v4718
    %v4721 = vmul.f32 %v106, %v4718
    %v4722 = vmul.f32 %v107, %v4718
    %v4723 = vmul.f32 %v108, %v4718
    %v4724 = vmul.f32 %v109, %v4718
    %4731 = vrot.lane.b32.xlu0 %v4719, 127
    %v4732 = vpop.permute.xlu0 %4731
    %4733 = vrot.lane.b32.xlu0 %v4720, 127
    %v4734 = vpop.permute.xlu0 %4733
    %4735 = vrot.lane.b32.xlu0 %v4721, 127
    %v4736 = vpop.permute.xlu0 %4735
    %4737 = vrot.lane.b32.xlu0 %v4722, 127
    %v4738 = vpop.permute.xlu0 %4737
    %4739 = vrot.lane.b32.xlu0 %v4723, 127
    %v4740 = vpop.permute.xlu0 %4739
    %4741 = vrot.lane.b32.xlu0 %v4724, 127
    %v4742 = vpop.permute.xlu0 %4741
    %v4749 = vadd.f32 %v4711, %v4732
    %v4750 = vadd.f32 %v4712, %v4734
    %v4751 = vadd.f32 %v4713, %v4736
    %v4752 = vadd.f32 %v4714, %v4738
    %v4753 = vadd.f32 %v4715, %v4740
    %v4754 = vadd.f32 %v4716, %v4742
    %s4755 = sld [smem:[#allocation9 + $0x382]]
    %v4756 = vstv %s4755
    %v4757 = vmul.f32 %v104, %v4756
    %v4758 = vmul.f32 %v105, %v4756
    %v4759 = vmul.f32 %v106, %v4756
    %v4760 = vmul.f32 %v107, %v4756
    %v4761 = vmul.f32 %v108, %v4756
    %v4762 = vmul.f32 %v109, %v4756
    %4769 = vrot.lane.b32.xlu0 %v4757, 126
    %v4770 = vpop.permute.xlu0 %4769
    %4771 = vrot.lane.b32.xlu0 %v4758, 126
    %v4772 = vpop.permute.xlu0 %4771
    %4773 = vrot.lane.b32.xlu0 %v4759, 126
    %v4774 = vpop.permute.xlu0 %4773
    %4775 = vrot.lane.b32.xlu0 %v4760, 126
    %v4776 = vpop.permute.xlu0 %4775
    %4777 = vrot.lane.b32.xlu0 %v4761, 126
    %v4778 = vpop.permute.xlu0 %4777
    %4779 = vrot.lane.b32.xlu0 %v4762, 126
    %v4780 = vpop.permute.xlu0 %4779
    %v4787 = vadd.f32 %v4749, %v4770
    %v4788 = vadd.f32 %v4750, %v4772
    %v4789 = vadd.f32 %v4751, %v4774
    %v4790 = vadd.f32 %v4752, %v4776
    %v4791 = vadd.f32 %v4753, %v4778
    %v4792 = vadd.f32 %v4754, %v4780
    %s4793 = sld [smem:[#allocation9 + $0x383]]
    %v4794 = vstv %s4793
    %v4795 = vmul.f32 %v104, %v4794
    %v4796 = vmul.f32 %v105, %v4794
    %v4797 = vmul.f32 %v106, %v4794
    %v4798 = vmul.f32 %v107, %v4794
    %v4799 = vmul.f32 %v108, %v4794
    %v4800 = vmul.f32 %v109, %v4794
    %v4807 = vrot.slane %v4795, 1
    %v4808 = vrot.slane %v4796, 1
    %v4809 = vsel %vm231, %v4807, %v4808
    %v4810 = vrot.slane %v4797, 1
    %v4811 = vsel %vm231, %v4808, %v4810
    %v4812 = vrot.slane %v4798, 1
    %v4813 = vrot.slane %v4799, 1
    %v4814 = vsel %vm231, %v4812, %v4813
    %v4815 = vrot.slane %v4800, 1
    %v4816 = vsel %vm231, %v4813, %v4815
    %v4823 = vadd.f32 %v4787, %v4809
    %v4824 = vadd.f32 %v4788, %v4811
    %v4825 = vadd.f32 %v4789, %v4810
    %v4826 = vadd.f32 %v4790, %v4814
    %v4827 = vadd.f32 %v4791, %v4816
    %v4828 = vadd.f32 %v4792, %v4815
    %s4829 = sld [smem:[#allocation9 + $0x384]]
    %v4830 = vstv %s4829
    %v4831 = vmul.f32 %v104, %v4830
    %v4832 = vmul.f32 %v105, %v4830
    %v4833 = vmul.f32 %v106, %v4830
    %v4834 = vmul.f32 %v107, %v4830
    %v4835 = vmul.f32 %v108, %v4830
    %v4836 = vmul.f32 %v109, %v4830
    %v4843 = vrot.slane %v4831, 1
    %v4844 = vrot.slane %v4832, 1
    %v4845 = vsel %vm231, %v4843, %v4844
    %v4846 = vrot.slane %v4833, 1
    %v4847 = vsel %vm231, %v4844, %v4846
    %v4848 = vrot.slane %v4834, 1
    %v4849 = vrot.slane %v4835, 1
    %v4850 = vsel %vm231, %v4848, %v4849
    %v4851 = vrot.slane %v4836, 1
    %v4852 = vsel %vm231, %v4849, %v4851
    %4853 = vrot.lane.b32.xlu0 %v4845, 127
    %v4854 = vpop.permute.xlu0 %4853
    %4855 = vrot.lane.b32.xlu0 %v4847, 127
    %v4856 = vpop.permute.xlu0 %4855
    %4857 = vrot.lane.b32.xlu0 %v4846, 127
    %v4858 = vpop.permute.xlu0 %4857
    %4859 = vrot.lane.b32.xlu0 %v4850, 127
    %v4860 = vpop.permute.xlu0 %4859
    %4861 = vrot.lane.b32.xlu0 %v4852, 127
    %v4862 = vpop.permute.xlu0 %4861
    %4863 = vrot.lane.b32.xlu0 %v4851, 127
    %v4864 = vpop.permute.xlu0 %4863
    %v4871 = vadd.f32 %v4823, %v4854
    %v4872 = vadd.f32 %v4824, %v4856
    %v4873 = vadd.f32 %v4825, %v4858
    %v4874 = vadd.f32 %v4826, %v4860
    %v4875 = vadd.f32 %v4827, %v4862
    %v4876 = vadd.f32 %v4828, %v4864
    %s4877 = sld [smem:[#allocation9 + $0x385]]
    %v4878 = vstv %s4877
    %v4879 = vmul.f32 %v104, %v4878
    %v4880 = vmul.f32 %v105, %v4878
    %v4881 = vmul.f32 %v106, %v4878
    %v4882 = vmul.f32 %v107, %v4878
    %v4883 = vmul.f32 %v108, %v4878
    %v4884 = vmul.f32 %v109, %v4878
    %v4891 = vrot.slane %v4879, 1
    %v4892 = vrot.slane %v4880, 1
    %v4893 = vsel %vm231, %v4891, %v4892
    %v4894 = vrot.slane %v4881, 1
    %v4895 = vsel %vm231, %v4892, %v4894
    %v4896 = vrot.slane %v4882, 1
    %v4897 = vrot.slane %v4883, 1
    %v4898 = vsel %vm231, %v4896, %v4897
    %v4899 = vrot.slane %v4884, 1
    %v4900 = vsel %vm231, %v4897, %v4899
    %4901 = vrot.lane.b32.xlu0 %v4893, 126
    %v4902 = vpop.permute.xlu0 %4901
    %4903 = vrot.lane.b32.xlu0 %v4895, 126
    %v4904 = vpop.permute.xlu0 %4903
    %4905 = vrot.lane.b32.xlu0 %v4894, 126
    %v4906 = vpop.permute.xlu0 %4905
    %4907 = vrot.lane.b32.xlu0 %v4898, 126
    %v4908 = vpop.permute.xlu0 %4907
    %4909 = vrot.lane.b32.xlu0 %v4900, 126
    %v4910 = vpop.permute.xlu0 %4909
    %4911 = vrot.lane.b32.xlu0 %v4899, 126
    %v4912 = vpop.permute.xlu0 %4911
    %v4919 = vadd.f32 %v4871, %v4902
    %v4920 = vadd.f32 %v4872, %v4904
    %v4921 = vadd.f32 %v4873, %v4906
    %v4922 = vadd.f32 %v4874, %v4908
    %v4923 = vadd.f32 %v4875, %v4910
    %v4924 = vadd.f32 %v4876, %v4912
    %s4925 = sld [smem:[#allocation9 + $0x386]]
    %v4926 = vstv %s4925
    %v4927 = vmul.f32 %v104, %v4926
    %v4928 = vmul.f32 %v105, %v4926
    %v4929 = vmul.f32 %v106, %v4926
    %v4930 = vmul.f32 %v107, %v4926
    %v4931 = vmul.f32 %v108, %v4926
    %v4932 = vmul.f32 %v109, %v4926
    %v4939 = vrot.slane %v4927, 2
    %v4940 = vrot.slane %v4928, 2
    %v4941 = vsel %vm364, %v4939, %v4940
    %v4942 = vrot.slane %v4929, 2
    %v4943 = vsel %vm364, %v4940, %v4942
    %v4944 = vrot.slane %v4930, 2
    %v4945 = vrot.slane %v4931, 2
    %v4946 = vsel %vm364, %v4944, %v4945
    %v4947 = vrot.slane %v4932, 2
    %v4948 = vsel %vm364, %v4945, %v4947
    %v4955 = vadd.f32 %v4919, %v4941
    %v4956 = vadd.f32 %v4920, %v4943
    %v4957 = vadd.f32 %v4921, %v4942
    %v4958 = vadd.f32 %v4922, %v4946
    %v4959 = vadd.f32 %v4923, %v4948
    %v4960 = vadd.f32 %v4924, %v4947
    %s4961 = sld [smem:[#allocation9 + $0x387]]
    %v4962 = vstv %s4961
    %v4963 = vmul.f32 %v104, %v4962
    %v4964 = vmul.f32 %v105, %v4962
    %v4965 = vmul.f32 %v106, %v4962
    %v4966 = vmul.f32 %v107, %v4962
    %v4967 = vmul.f32 %v108, %v4962
    %v4968 = vmul.f32 %v109, %v4962
    %v4975 = vrot.slane %v4963, 2
    %v4976 = vrot.slane %v4964, 2
    %v4977 = vsel %vm364, %v4975, %v4976
    %v4978 = vrot.slane %v4965, 2
    %v4979 = vsel %vm364, %v4976, %v4978
    %v4980 = vrot.slane %v4966, 2
    %v4981 = vrot.slane %v4967, 2
    %v4982 = vsel %vm364, %v4980, %v4981
    %v4983 = vrot.slane %v4968, 2
    %v4984 = vsel %vm364, %v4981, %v4983
    %4985 = vrot.lane.b32.xlu0 %v4977, 127
    %v4986 = vpop.permute.xlu0 %4985
    %4987 = vrot.lane.b32.xlu0 %v4979, 127
    %v4988 = vpop.permute.xlu0 %4987
    %4989 = vrot.lane.b32.xlu0 %v4978, 127
    %v4990 = vpop.permute.xlu0 %4989
    %4991 = vrot.lane.b32.xlu0 %v4982, 127
    %v4992 = vpop.permute.xlu0 %4991
    %4993 = vrot.lane.b32.xlu0 %v4984, 127
    %v4994 = vpop.permute.xlu0 %4993
    %4995 = vrot.lane.b32.xlu0 %v4983, 127
    %v4996 = vpop.permute.xlu0 %4995
    %v5003 = vadd.f32 %v4955, %v4986
    %v5004 = vadd.f32 %v4956, %v4988
    %v5005 = vadd.f32 %v4957, %v4990
    %v5006 = vadd.f32 %v4958, %v4992
    %v5007 = vadd.f32 %v4959, %v4994
    %v5008 = vadd.f32 %v4960, %v4996
    %s5009 = sld [smem:[#allocation9 + $0x388]]
    %v5010 = vstv %s5009
    %v5011 = vmul.f32 %v104, %v5010
    %v5012 = vmul.f32 %v105, %v5010
    %v5013 = vmul.f32 %v106, %v5010
    %v5014 = vmul.f32 %v107, %v5010
    %v5015 = vmul.f32 %v108, %v5010
    %v5016 = vmul.f32 %v109, %v5010
    %v5023 = vrot.slane %v5011, 2
    %v5024 = vrot.slane %v5012, 2
    %v5025 = vsel %vm364, %v5023, %v5024
    %v5026 = vrot.slane %v5013, 2
    %v5027 = vsel %vm364, %v5024, %v5026
    %v5028 = vrot.slane %v5014, 2
    %v5029 = vrot.slane %v5015, 2
    %v5030 = vsel %vm364, %v5028, %v5029
    %v5031 = vrot.slane %v5016, 2
    %v5032 = vsel %vm364, %v5029, %v5031
    %5033 = vrot.lane.b32.xlu0 %v5025, 126
    %v5034 = vpop.permute.xlu0 %5033
    %5035 = vrot.lane.b32.xlu0 %v5027, 126
    %v5036 = vpop.permute.xlu0 %5035
    %5037 = vrot.lane.b32.xlu0 %v5026, 126
    %v5038 = vpop.permute.xlu0 %5037
    %5039 = vrot.lane.b32.xlu0 %v5030, 126
    %v5040 = vpop.permute.xlu0 %5039
    %5041 = vrot.lane.b32.xlu0 %v5032, 126
    %v5042 = vpop.permute.xlu0 %5041
    %5043 = vrot.lane.b32.xlu0 %v5031, 126
    %v5044 = vpop.permute.xlu0 %5043
    %v5051 = vadd.f32 %v5003, %v5034
    %v5052 = vadd.f32 %v5004, %v5036
    %v5053 = vadd.f32 %v5005, %v5038
    %v5054 = vadd.f32 %v5006, %v5040
    %v5055 = vadd.f32 %v5007, %v5042
    %v5056 = vadd.f32 %v5008, %v5044
    %s5057 = sld [smem:[#allocation10 + $0x7]]
    %v5058 = vstv %s5057
    %v5059 = vadd.f32 %v5051, %v5058
    %v5060 = vadd.f32 %v5052, %v5058
    %v5061 = vadd.f32 %v5053, %v5058
    %v5062 = vadd.f32 %v5054, %v5058
    %v5063 = vadd.f32 %v5055, %v5058
    %v5064 = vadd.f32 %v5056, %v5058
    %v5065 = vmax.f32 %v5059, 0.0
    %v5066 = vmax.f32 %v5060, 0.0
    %v5067 = vmax.f32 %v5061, 0.0
    %v5068 = vmax.f32 %v5062, 0.0
    %v5069 = vmax.f32 %v5063, 0.0
    %v5070 = vmax.f32 %v5064, 0.0
    %v5071 = vsel %vm130, %v5065, 0.0
    %v5072 = vsel %vm131, %v5066, 0.0
    %v5073 = vsel %vm132, %v5067, 0.0
    %v5074 = vsel %vm130, %v5068, 0.0
    %v5075 = vsel %vm131, %v5069, 0.0
    %v5076 = vsel %vm132, %v5070, 0.0
    %s5077 = sld [smem:[#allocation11 + $0x380]]
    %v5078 = vstv %s5077
    %v5079 = vmul.f32 %v5078, %v5071
    %v5080 = vmul.f32 %v5078, %v5072
    %v5081 = vmul.f32 %v5078, %v5074
    %v5082 = vmul.f32 %v5078, %v5075
    %v5083 = vadd.f32 %v4705, %v5079
    %v5084 = vadd.f32 %v4706, %v5080
    %v5085 = vadd.f32 %v4707, %v5081
    %v5086 = vadd.f32 %v4708, %v5082
    %s5087 = sld [smem:[#allocation11 + $0x381]]
    %v5088 = vstv %s5087
    %v5089 = vmul.f32 %v5088, %v5071
    %v5090 = vmul.f32 %v5088, %v5072
    %v5091 = vmul.f32 %v5088, %v5074
    %v5092 = vmul.f32 %v5088, %v5075
    %5097 = vrot.lane.b32.xlu0 %v5089, 127
    %v5098 = vpop.permute.xlu0 %5097
    %5099 = vrot.lane.b32.xlu0 %v5090, 127
    %v5100 = vpop.permute.xlu0 %5099
    %5101 = vrot.lane.b32.xlu0 %v5091, 127
    %v5102 = vpop.permute.xlu0 %5101
    %5103 = vrot.lane.b32.xlu0 %v5092, 127
    %v5104 = vpop.permute.xlu0 %5103
    %v5109 = vadd.f32 %v5083, %v5098
    %v5110 = vadd.f32 %v5084, %v5100
    %v5111 = vadd.f32 %v5085, %v5102
    %v5112 = vadd.f32 %v5086, %v5104
    %s5113 = sld [smem:[#allocation11 + $0x382]]
    %v5114 = vstv %s5113
    %v5115 = vmul.f32 %v5114, %v5071
    %v5116 = vmul.f32 %v5114, %v5072
    %v5117 = vmul.f32 %v5114, %v5074
    %v5118 = vmul.f32 %v5114, %v5075
    %5123 = vrot.lane.b32.xlu0 %v5115, 126
    %v5124 = vpop.permute.xlu0 %5123
    %5125 = vrot.lane.b32.xlu0 %v5116, 126
    %v5126 = vpop.permute.xlu0 %5125
    %5127 = vrot.lane.b32.xlu0 %v5117, 126
    %v5128 = vpop.permute.xlu0 %5127
    %5129 = vrot.lane.b32.xlu0 %v5118, 126
    %v5130 = vpop.permute.xlu0 %5129
    %v5135 = vadd.f32 %v5109, %v5124
    %v5136 = vadd.f32 %v5110, %v5126
    %v5137 = vadd.f32 %v5111, %v5128
    %v5138 = vadd.f32 %v5112, %v5130
    %s5139 = sld [smem:[#allocation11 + $0x383]]
    %v5140 = vstv %s5139
    %v5141 = vmul.f32 %v5140, %v5071
    %v5142 = vmul.f32 %v5140, %v5072
    %v5143 = vmul.f32 %v5140, %v5073
    %v5144 = vmul.f32 %v5140, %v5074
    %v5145 = vmul.f32 %v5140, %v5075
    %v5146 = vmul.f32 %v5140, %v5076
    %v5153 = vrot.slane %v5141, 1
    %v5154 = vrot.slane %v5142, 1
    %v5155 = vsel %vm231, %v5153, %v5154
    %v5156 = vrot.slane %v5143, 1
    %v5157 = vsel %vm231, %v5154, %v5156
    %v5158 = vrot.slane %v5144, 1
    %v5159 = vrot.slane %v5145, 1
    %v5160 = vsel %vm231, %v5158, %v5159
    %v5161 = vrot.slane %v5146, 1
    %v5162 = vsel %vm231, %v5159, %v5161
    %v5167 = vadd.f32 %v5135, %v5155
    %v5168 = vadd.f32 %v5136, %v5157
    %v5169 = vadd.f32 %v5137, %v5160
    %v5170 = vadd.f32 %v5138, %v5162
    %s5171 = sld [smem:[#allocation11 + $0x384]]
    %v5172 = vstv %s5171
    %v5173 = vmul.f32 %v5172, %v5071
    %v5174 = vmul.f32 %v5172, %v5072
    %v5175 = vmul.f32 %v5172, %v5073
    %v5176 = vmul.f32 %v5172, %v5074
    %v5177 = vmul.f32 %v5172, %v5075
    %v5178 = vmul.f32 %v5172, %v5076
    %v5185 = vrot.slane %v5173, 1
    %v5186 = vrot.slane %v5174, 1
    %v5187 = vsel %vm231, %v5185, %v5186
    %v5188 = vrot.slane %v5175, 1
    %v5189 = vsel %vm231, %v5186, %v5188
    %v5190 = vrot.slane %v5176, 1
    %v5191 = vrot.slane %v5177, 1
    %v5192 = vsel %vm231, %v5190, %v5191
    %v5193 = vrot.slane %v5178, 1
    %v5194 = vsel %vm231, %v5191, %v5193
    %5195 = vrot.lane.b32.xlu0 %v5187, 127
    %v5196 = vpop.permute.xlu0 %5195
    %5197 = vrot.lane.b32.xlu0 %v5189, 127
    %v5198 = vpop.permute.xlu0 %5197
    %5199 = vrot.lane.b32.xlu0 %v5192, 127
    %v5200 = vpop.permute.xlu0 %5199
    %5201 = vrot.lane.b32.xlu0 %v5194, 127
    %v5202 = vpop.permute.xlu0 %5201
    %v5207 = vadd.f32 %v5167, %v5196
    %v5208 = vadd.f32 %v5168, %v5198
    %v5209 = vadd.f32 %v5169, %v5200
    %v5210 = vadd.f32 %v5170, %v5202
    %s5211 = sld [smem:[#allocation11 + $0x385]]
    %v5212 = vstv %s5211
    %v5213 = vmul.f32 %v5212, %v5071
    %v5214 = vmul.f32 %v5212, %v5072
    %v5215 = vmul.f32 %v5212, %v5073
    %v5216 = vmul.f32 %v5212, %v5074
    %v5217 = vmul.f32 %v5212, %v5075
    %v5218 = vmul.f32 %v5212, %v5076
    %v5225 = vrot.slane %v5213, 1
    %v5226 = vrot.slane %v5214, 1
    %v5227 = vsel %vm231, %v5225, %v5226
    %v5228 = vrot.slane %v5215, 1
    %v5229 = vsel %vm231, %v5226, %v5228
    %v5230 = vrot.slane %v5216, 1
    %v5231 = vrot.slane %v5217, 1
    %v5232 = vsel %vm231, %v5230, %v5231
    %v5233 = vrot.slane %v5218, 1
    %v5234 = vsel %vm231, %v5231, %v5233
    %5235 = vrot.lane.b32.xlu0 %v5227, 126
    %v5236 = vpop.permute.xlu0 %5235
    %5237 = vrot.lane.b32.xlu0 %v5229, 126
    %v5238 = vpop.permute.xlu0 %5237
    %5239 = vrot.lane.b32.xlu0 %v5232, 126
    %v5240 = vpop.permute.xlu0 %5239
    %5241 = vrot.lane.b32.xlu0 %v5234, 126
    %v5242 = vpop.permute.xlu0 %5241
    %v5247 = vadd.f32 %v5207, %v5236
    %v5248 = vadd.f32 %v5208, %v5238
    %v5249 = vadd.f32 %v5209, %v5240
    %v5250 = vadd.f32 %v5210, %v5242
    %s5251 = sld [smem:[#allocation11 + $0x386]]
    %v5252 = vstv %s5251
    %v5253 = vmul.f32 %v5252, %v5071
    %v5254 = vmul.f32 %v5252, %v5072
    %v5255 = vmul.f32 %v5252, %v5073
    %v5256 = vmul.f32 %v5252, %v5074
    %v5257 = vmul.f32 %v5252, %v5075
    %v5258 = vmul.f32 %v5252, %v5076
    %v5265 = vrot.slane %v5253, 2
    %v5266 = vrot.slane %v5254, 2
    %v5267 = vsel %vm364, %v5265, %v5266
    %v5268 = vrot.slane %v5255, 2
    %v5269 = vsel %vm364, %v5266, %v5268
    %v5270 = vrot.slane %v5256, 2
    %v5271 = vrot.slane %v5257, 2
    %v5272 = vsel %vm364, %v5270, %v5271
    %v5273 = vrot.slane %v5258, 2
    %v5274 = vsel %vm364, %v5271, %v5273
    %v5279 = vadd.f32 %v5247, %v5267
    %v5280 = vadd.f32 %v5248, %v5269
    %v5281 = vadd.f32 %v5249, %v5272
    %v5282 = vadd.f32 %v5250, %v5274
    %s5283 = sld [smem:[#allocation11 + $0x387]]
    %v5284 = vstv %s5283
    %v5285 = vmul.f32 %v5284, %v5071
    %v5286 = vmul.f32 %v5284, %v5072
    %v5287 = vmul.f32 %v5284, %v5073
    %v5288 = vmul.f32 %v5284, %v5074
    %v5289 = vmul.f32 %v5284, %v5075
    %v5290 = vmul.f32 %v5284, %v5076
    %v5297 = vrot.slane %v5285, 2
    %v5298 = vrot.slane %v5286, 2
    %v5299 = vsel %vm364, %v5297, %v5298
    %v5300 = vrot.slane %v5287, 2
    %v5301 = vsel %vm364, %v5298, %v5300
    %v5302 = vrot.slane %v5288, 2
    %v5303 = vrot.slane %v5289, 2
    %v5304 = vsel %vm364, %v5302, %v5303
    %v5305 = vrot.slane %v5290, 2
    %v5306 = vsel %vm364, %v5303, %v5305
    %5307 = vrot.lane.b32.xlu0 %v5299, 127
    %v5308 = vpop.permute.xlu0 %5307
    %5309 = vrot.lane.b32.xlu0 %v5301, 127
    %v5310 = vpop.permute.xlu0 %5309
    %5311 = vrot.lane.b32.xlu0 %v5304, 127
    %v5312 = vpop.permute.xlu0 %5311
    %5313 = vrot.lane.b32.xlu0 %v5306, 127
    %v5314 = vpop.permute.xlu0 %5313
    %v5319 = vadd.f32 %v5279, %v5308
    %v5320 = vadd.f32 %v5280, %v5310
    %v5321 = vadd.f32 %v5281, %v5312
    %v5322 = vadd.f32 %v5282, %v5314
    %s5323 = sld [smem:[#allocation11 + $0x388]]
    %v5324 = vstv %s5323
    %v5325 = vmul.f32 %v5324, %v5071
    %v5326 = vmul.f32 %v5324, %v5072
    %v5327 = vmul.f32 %v5324, %v5073
    %v5328 = vmul.f32 %v5324, %v5074
    %v5329 = vmul.f32 %v5324, %v5075
    %v5330 = vmul.f32 %v5324, %v5076
    %v5337 = vrot.slane %v5325, 2
    %v5338 = vrot.slane %v5326, 2
    %v5339 = vsel %vm364, %v5337, %v5338
    %v5340 = vrot.slane %v5327, 2
    %v5341 = vsel %vm364, %v5338, %v5340
    %v5342 = vrot.slane %v5328, 2
    %v5343 = vrot.slane %v5329, 2
    %v5344 = vsel %vm364, %v5342, %v5343
    %v5345 = vrot.slane %v5330, 2
    %v5346 = vsel %vm364, %v5343, %v5345
    %5347 = vrot.lane.b32.xlu0 %v5339, 126
    %v5348 = vpop.permute.xlu0 %5347
    %5349 = vrot.lane.b32.xlu0 %v5341, 126
    %v5350 = vpop.permute.xlu0 %5349
    %5351 = vrot.lane.b32.xlu0 %v5344, 126
    %v5352 = vpop.permute.xlu0 %5351
    %5353 = vrot.lane.b32.xlu0 %v5346, 126
    %v5354 = vpop.permute.xlu0 %5353
    %v5359 = vadd.f32 %v5319, %v5348
    %v5360 = vadd.f32 %v5320, %v5350
    %v5361 = vadd.f32 %v5321, %v5352
    %v5362 = vadd.f32 %v5322, %v5354
    %s5363 = sld [smem:[#allocation3]]
    %v5364 = vstv %s5363
    %v5365 = vadd.f32 %v5359, %v5364
    %v5366 = vadd.f32 %v5360, %v5364
    %v5367 = vadd.f32 %v5361, %v5364
    %v5368 = vadd.f32 %v5362, %v5364
    %v5369 = vsub.f32 0.0, %v5365
    %v5370 = vsub.f32 0.0, %v5366
    %v5371 = vsub.f32 0.0, %v5367
    %v5372 = vsub.f32 0.0, %v5368
    %v5373 = vmul.f32 %v5369, 1.442695
    %v5374 = vpow.pop %v5373
    %v5375 = vmul.f32 %v5370, 1.442695
    %v5376 = vpow.pop %v5375
    %v5377 = vmul.f32 %v5371, 1.442695
    %v5378 = vpow.pop %v5377
    %v5379 = vmul.f32 %v5372, 1.442695
    %v5380 = vpow.pop %v5379
    %v5381 = vadd.f32 %v5374, 1.0
    %v5382 = vadd.f32 %v5376, 1.0
    %v5383 = vadd.f32 %v5378, 1.0
    %v5384 = vadd.f32 %v5380, 1.0
    %v5385 = vrcp.pop %v5381
    %v5386 = vmul.f32 1.0, %v5385
    %v5387 = vrcp.pop %v5382
    %v5388 = vmul.f32 1.0, %v5387
    %v5389 = vrcp.pop %v5383
    %v5390 = vmul.f32 1.0, %v5389
    %v5391 = vrcp.pop %v5384
    %v5392 = vmul.f32 1.0, %v5391
    %v5393 = vld [vmem:[#allocation4] sm:$0xff]
    %v5394 = vld [vmem:[#allocation4 + $0x8] sm:$0xff]
    %v5395 = vld [vmem:[#allocation4 + $0x10] sm:$0xff]
    %v5396 = vld [vmem:[#allocation4 + $0x18] sm:$0xff]
    %v5397 = vmul.f32 %v5386, %v5393
    %v5398 = vmul.f32 %v5388, %v5394
    %v5399 = vmul.f32 %v5390, %v5395
    %v5400 = vmul.f32 %v5392, %v5396
    %vm5401 = vcmask 130048
    %5402 = vst.msk [vmem:[#allocation13] sm:$0xff] %vm5401, %v5397
    %5403 = vst.msk [vmem:[#allocation13 + $0x8] sm:$0xff] %vm5401, %v5398
    %5404 = vst.msk [vmem:[#allocation13 + $0x10] sm:$0xff] %vm5401, %v5399
    %5405 = vst.msk [vmem:[#allocation13 + $0x18] sm:$0xff] %vm5401, %v5400
    // Predicated region
    $region38: #{tpu_custom_call.1} parent=1 // pred_check
      _
    $region39: #{tpu_custom_call.1} parent=1 // pred_check_branch
      %5407 = sbr.rel (0) target = $region41
    $region40: #{tpu_custom_call.1} parent=1 // pred_region
      %s5409 = ssub.s32 512, 512
      %5410 = vsyncadd [#allocation6], %s5409
      %s5411 = sshll.u32 [#allocation13], 4
      %s5412 = int_to_ptr.vmem [resolvable:$true] %s5411
      %5417 = dma.vmem_to_hbm [thread:$0]  %s5412, 512, %s5, [#allocation6], 128, 128, 8
    $region41: #{tpu_custom_call.1} parent=1 // pred_fallthru
      _
    // Predicated region
    $region42: #{tpu_custom_call.1} parent=1 // pred_check
      _
    $region43: #{tpu_custom_call.1} parent=1 // pred_check_branch
      %5419 = sbr.rel (0) target = $region45
    $region44: #{tpu_custom_call.1} parent=1 // pred_region
      %5420 = dma.done [#allocation6], 512
    $region45: #{tpu_custom_call.1} parent=1 // pred_fallthru
      _
    %5421 = vsyncpa [#allocation5], 1
    %5422 = vsyncpa [#allocation6], 1
    %5423 = vsyncpa [#allocation7], 1
    %5424 = vsyncpa [#allocation8], 1
    %5425 = vsyncpa [#allocation12], 1

</llo_original>
